<compile_context>
chip_gen: v7x
topology: tpu7x:2x2x1
jax: 0.10.0
libtpu: 0.0.40
codegen_flags: <defaults>
</compile_context>

<pallas_src>
import jax
import jax.numpy as jnp
from jax.experimental import pallas as pl
from jax.experimental.pallas import tpu as pltpu


def _ast_model_kernel(x_ref, adj_ref, a2_ref, a3_ref,
                      w11_ref, w12_ref, w21_ref, w22_ref, w31_ref, w32_ref,
                      wffn_ref, bffn_ref, o_ref):
    cdt = x_ref.dtype                       # matmul operand dtype (bf16 by default)

    x = x_ref[...]                          # (BB, N, F)
    adj = adj_ref[...]                      # (BB, N, N)
    a2 = a2_ref[...]
    a3 = a3_ref[...]

    def gcn(inp_c, a_c, w_c):
        # A @ (inp @ W): two MXU matmuls per batch element, f32 accumulation.
        s = jnp.einsum("bnf,bfg->bng", inp_c, w_c,
                       preferred_element_type=jnp.float32)
        return jnp.einsum("bnm,bmg->bng", a_c, s.astype(cdt),
                          preferred_element_type=jnp.float32)

    def gcn_two(inp_c, a_c, wa_c, wb_c):
        h = jnp.maximum(gcn(inp_c, a_c, wa_c), 0.0)                   # f32
        # TODO(synk): training-mode dropout not implemented (identity in eval mode).
        return jnp.maximum(gcn(h.astype(cdt), a_c, wb_c), 0.0) + h    # f32

    # Incremental mix accumulation keeps the live set to {o_prev, mix, h}.
    o1 = gcn_two(x, adj, w11_ref[...], w12_ref[...])
    mix = 0.1 * o1
    o2 = gcn_two(o1.astype(cdt), a2, w21_ref[...], w22_ref[...])
    mix = mix + 0.2 * o2
    o3 = gcn_two(o2.astype(cdt), a3, w31_ref[...], w32_ref[...])
    mix = mix + 0.7 * o3

    out = jnp.einsum("bnf,fd->bnd", mix.astype(cdt), wffn_ref[...],
                     preferred_element_type=jnp.float32)
    out = out + bffn_ref[...][jnp.newaxis]          # (1, 1, d_model) broadcast
    o_ref[...] = out.astype(o_ref.dtype)


def _footprint_bytes(bb, n, f, d, itemsize):
    """Estimated per-grid-step VMEM bytes (inputs/outputs double-buffered)."""
    io = (bb * n * f                       # x tile
          + 3 * bb * n * n                 # adj / A2 / A3 tiles
          + 6 * bb * f * f                 # six per-batch GCN weight tiles
          + f * d) * itemsize              # ffn weight (compute dtype)
    io += d * 4                            # ffn bias (f32)
    io += bb * n * d * 4                   # output tile (f32)
    interm = 5 * bb * n * max(f, d) * 4    # o_prev, h, support, mix, ffn out (f32)
    return 2 * io + interm


def _vmem_budget_bytes():
    """Generation-aware VMEM budget with ~15% headroom."""
    try:
        cap = int(pltpu.get_tpu_info().vmem_capacity_bytes)
    except Exception:
        cap = 64 << 20                     # conservative fallback (v7x physical)
    return int(cap * 0.85)


def _pick_batch_block(batch, n, f, d, itemsize, budget, target=8):
    """Largest divisor of batch <= target that fits VMEM and keeps grid >= 2."""
    max_bb = batch if batch < 2 else max(1, batch // 2)   # v7x: give both TCs work
    bb = 1
    for cand in range(1, min(target, max_bb) + 1):
        if batch % cand != 0:
            continue
        if _footprint_bytes(cand, n, f, d, itemsize) + (4 << 20) <= budget:
            bb = cand
    return bb


def ast_model_forward(x, adj, a2, a3, a4, a5, params,
                      compute_dtype=jnp.bfloat16, batch_block=8):
    """x: [B, N, F]; adj/A2..A5: [B, N, N]; params: dict of weights.

    gcnK_w1 / gcnK_w2: [B, F, F]   (GraphConvolution requires in == out features
                                    for its `outputs[i] = output` write to be valid)
    ffn_w: [d_model, F] (PyTorch Linear layout), ffn_b: [d_model]
    """
    batch, n_nodes, nfeat = x.shape
    w11, w12 = params["gcn1_w1"], params["gcn1_w2"]
    w21, w22 = params["gcn2_w1"], params["gcn2_w2"]
    w31, w32 = params["gcn3_w1"], params["gcn3_w2"]
    wffn, bffn = params["ffn_w"], params["ffn_b"]
    d_model = wffn.shape[0]

    assert w11.shape == (batch, nfeat, nfeat), "GraphConvolution needs in==out feats"

    # output4/output5 (and therefore A4/A5, gcn4/gcn5 weights) never reach the
    # returned value in AST_Model.forward -> skip the dead computation.
    del a4, a5

    cdt = jnp.dtype(compute_dtype)
    itemsize = cdt.itemsize

    budget = _vmem_budget_bytes()
    bb = _pick_batch_block(batch, n_nodes, nfeat, d_model, itemsize, budget,
                           target=batch_block)
    grid = (batch // bb,)

    # Cast matmul operands to the compute dtype (halves HBM bytes / VMEM tiles);
    # accumulation inside the kernel stays f32 via preferred_element_type.
    cast = lambda a: a.astype(cdt)
    xc, adjc, a2c, a3c = cast(x), cast(adj), cast(a2), cast(a3)
    wc = [cast(w) for w in (w11, w12, w21, w22, w31, w32)]
    # Ideally done once at parameter-load time; cheap at these sizes.
    wffn_t = cast(wffn.T)                          # (F, d_model): kernel does mix @ W
    bffn_2d = bffn.astype(jnp.float32).reshape(1, d_model)

    per_block = lambda b: (b, 0, 0)
    shared2d = lambda b: (0, 0)

    def bspec(arr):
        return pl.BlockSpec((bb,) + arr.shape[1:], per_block)

    in_specs = [
        bspec(xc),                                     # x
        bspec(adjc), bspec(a2c), bspec(a3c),           # adjacencies
        bspec(wc[0]), bspec(wc[1]),                    # gcn1 weights
        bspec(wc[2]), bspec(wc[3]),                    # gcn2 weights
        bspec(wc[4]), bspec(wc[5]),                    # gcn3 weights
        pl.BlockSpec((nfeat, d_model), shared2d),      # ffn weight (shared)
        pl.BlockSpec((1, d_model), shared2d),          # ffn bias (shared)
    ]
    out_spec = pl.BlockSpec((bb, n_nodes, d_model), per_block)

    vmem_limit = int(min(
        max(32 << 20,
            _footprint_bytes(bb, n_nodes, nfeat, d_model, itemsize) + (4 << 20)),
        budget))

    out = pl.pallas_call(
        _ast_model_kernel,
        out_shape=jax.ShapeDtypeStruct((batch, n_nodes, d_model), x.dtype),
        grid_spec=pltpu.PrefetchScalarGridSpec(
            num_scalar_prefetch=0,
            grid=grid,
            in_specs=in_specs,
            out_specs=out_spec,
        ),
        compiler_params=pltpu.CompilerParams(
            dimension_semantics=("parallel",),
            vmem_limit_bytes=vmem_limit,
        ),
    )(xc, adjc, a2c, a3c, *wc, wffn_t, bffn_2d)

    return out


def _reference(x, adj, a2, a3, params, compute_dtype=jnp.bfloat16):
    # Pure-JAX reference mirroring the PyTorch forward (eval mode) with the same
    # bf16-operand / f32-accumulation precision policy as the kernel.
    cdt = jnp.dtype(compute_dtype)
    c = lambda a: a.astype(cdt)

    def gcn(inp, a, w):
        s = jnp.einsum("bnf,bfg->bng", c(inp), c(w),
                       preferred_element_type=jnp.float32)
        return jnp.einsum("bnm,bmg->bng", c(a), c(s),
                          preferred_element_type=jnp.float32)

    def gcn_two(inp, a, wa, wb):
        h = jnp.maximum(gcn(inp, a, wa), 0.0)
        return jnp.maximum(gcn(h, a, wb), 0.0) + h

    o1 = gcn_two(x, adj, params["gcn1_w1"], params["gcn1_w2"])
    o2 = gcn_two(o1, a2, params["gcn2_w1"], params["gcn2_w2"])
    o3 = gcn_two(o2, a3, params["gcn3_w1"], params["gcn3_w2"])
    mix = 0.1 * o1 + 0.2 * o2 + 0.7 * o3
    out = jnp.einsum("bnf,fd->bnd", c(mix), c(params["ffn_w"].T),
                     preferred_element_type=jnp.float32)
    return out + params["ffn_b"].astype(jnp.float32)


if __name__ == "__main__":
    batch, n_nodes = 8, 16
    nfeat = nhid = nout = 32          # GraphConvolution requires in == out feats
    d_model = 32

    key = jax.random.PRNGKey(0)
    keys = jax.random.split(key, 16)

    x = jax.random.normal(keys[0], (batch, n_nodes, nfeat), dtype=jnp.float32)
    adj = jax.random.uniform(keys[1], (batch, n_nodes, n_nodes), jnp.float32)
    a2 = jax.random.uniform(keys[2], (batch, n_nodes, n_nodes), jnp.float32)
    a3 = jax.random.uniform(keys[3], (batch, n_nodes, n_nodes), jnp.float32)
    a4 = jax.random.uniform(keys[4], (batch, n_nodes, n_nodes), jnp.float32)
    a5 = jax.random.uniform(keys[5], (batch, n_nodes, n_nodes), jnp.float32)

    stdv = 1.0 / (nfeat ** 0.5)

    def w(k):
        return jax.random.uniform(k, (batch, nfeat, nfeat), jnp.float32, -stdv, stdv)

    params = {
        "gcn1_w1": w(keys[6]), "gcn1_w2": w(keys[7]),
        "gcn2_w1": w(keys[8]), "gcn2_w2": w(keys[9]),
        "gcn3_w1": w(keys[10]), "gcn3_w2": w(keys[11]),
        # PyTorch nn.Linear(nout, d_model): weight [d_model, nout], bias [d_model]
        "ffn_w": jax.random.uniform(keys[12], (d_model, nout), jnp.float32,
                                    -1.0 / (nout ** 0.5), 1.0 / (nout ** 0.5)),
        "ffn_b": jax.random.uniform(keys[13], (d_model,), jnp.float32,
                                    -1.0 / (nout ** 0.5), 1.0 / (nout ** 0.5)),
    }

    out = ast_model_forward(x, adj, a2, a3, a4, a5, params)
    out = jax.block_until_ready(out)

    ref = _reference(x, adj, a2, a3, params)
    assert out.shape == (batch, n_nodes, d_model)
    assert jnp.allclose(out, ref, atol=2e-2, rtol=2e-2), "mismatch vs reference"

    print("KERNEL_OK")
</pallas_src>

<mosaic_0001>
module attributes {stable_mosaic.version = 11 : i64} {
  func.func @_ast_model_kernel(%arg0: i32, %arg1: memref<4x16x32xbf16, #tpu.memory_space<vmem>>, %arg2: memref<4x16x16xbf16, #tpu.memory_space<vmem>>, %arg3: memref<4x16x16xbf16, #tpu.memory_space<vmem>>, %arg4: memref<4x16x16xbf16, #tpu.memory_space<vmem>>, %arg5: memref<4x32x32xbf16, #tpu.memory_space<vmem>>, %arg6: memref<4x32x32xbf16, #tpu.memory_space<vmem>>, %arg7: memref<4x32x32xbf16, #tpu.memory_space<vmem>>, %arg8: memref<4x32x32xbf16, #tpu.memory_space<vmem>>, %arg9: memref<4x32x32xbf16, #tpu.memory_space<vmem>>, %arg10: memref<4x32x32xbf16, #tpu.memory_space<vmem>>, %arg11: memref<32x32xbf16, #tpu.memory_space<vmem>>, %arg12: memref<1x32xf32, #tpu.memory_space<vmem>>, %arg13: memref<4x16x32xf32, #tpu.memory_space<vmem>>) attributes {dimension_semantics = [#tpu.dimension_semantics<parallel>], iteration_bounds = array<i64: 2>, scalar_prefetch = 0 : i64, scratch_operands = 0 : i64, tpu.core_type = #tpu.core_type<tc>, window_params = [{transform_indices = @transform_0, window_bounds = array<i64: 4, 16, 32>}, {transform_indices = @transform_1, window_bounds = array<i64: 4, 16, 16>}, {transform_indices = @transform_2, window_bounds = array<i64: 4, 16, 16>}, {transform_indices = @transform_3, window_bounds = array<i64: 4, 16, 16>}, {transform_indices = @transform_4, window_bounds = array<i64: 4, 32, 32>}, {transform_indices = @transform_5, window_bounds = array<i64: 4, 32, 32>}, {transform_indices = @transform_6, window_bounds = array<i64: 4, 32, 32>}, {transform_indices = @transform_7, window_bounds = array<i64: 4, 32, 32>}, {transform_indices = @transform_8, window_bounds = array<i64: 4, 32, 32>}, {transform_indices = @transform_9, window_bounds = array<i64: 4, 32, 32>}, {pipeline_mode = #tpu.pipeline_mode<synchronous>, transform_indices = @transform_10, window_bounds = array<i64: 32, 32>}, {pipeline_mode = #tpu.pipeline_mode<synchronous>, transform_indices = @transform_11, window_bounds = array<i64: 1, 32>}, {transform_indices = @transform_12, window_bounds = array<i64: 4, 16, 32>}]} {
    %c0 = arith.constant 0 : index
    %c0_0 = arith.constant 0 : index
    %c0_1 = arith.constant 0 : index
    %0 = vector.load %arg1[%c0, %c0_0, %c0_1] : memref<4x16x32xbf16, #tpu.memory_space<vmem>>, vector<4x16x32xbf16>
    %c0_2 = arith.constant 0 : index
    %c0_3 = arith.constant 0 : index
    %c0_4 = arith.constant 0 : index
    %1 = vector.load %arg2[%c0_2, %c0_3, %c0_4] : memref<4x16x16xbf16, #tpu.memory_space<vmem>>, vector<4x16x16xbf16>
    %c0_5 = arith.constant 0 : index
    %c0_6 = arith.constant 0 : index
    %c0_7 = arith.constant 0 : index
    %2 = vector.load %arg3[%c0_5, %c0_6, %c0_7] : memref<4x16x16xbf16, #tpu.memory_space<vmem>>, vector<4x16x16xbf16>
    %c0_8 = arith.constant 0 : index
    %c0_9 = arith.constant 0 : index
    %c0_10 = arith.constant 0 : index
    %3 = vector.load %arg4[%c0_8, %c0_9, %c0_10] : memref<4x16x16xbf16, #tpu.memory_space<vmem>>, vector<4x16x16xbf16>
    %c0_11 = arith.constant 0 : index
    %c0_12 = arith.constant 0 : index
    %c0_13 = arith.constant 0 : index
    %4 = vector.load %arg5[%c0_11, %c0_12, %c0_13] : memref<4x32x32xbf16, #tpu.memory_space<vmem>>, vector<4x32x32xbf16>
    %c0_14 = arith.constant 0 : index
    %c0_15 = arith.constant 0 : index
    %c0_16 = arith.constant 0 : index
    %5 = vector.load %arg6[%c0_14, %c0_15, %c0_16] : memref<4x32x32xbf16, #tpu.memory_space<vmem>>, vector<4x32x32xbf16>
    "tpu.trace_start"() <{level = 10 : i32, message = "bnf,bfg->bng"}> : () -> ()
    %cst = arith.constant dense<0.000000e+00> : vector<4x16x32xf32>
    %6 = tpu.matmul %0, %4, %cst {dimension_numbers = #tpu.dot_dimension_numbers<[2], [1], [1], [2], [0, 0, 0, 1, 1, 2], [0], [0]>} : vector<4x16x32xbf16>, vector<4x32x32xbf16>, vector<4x16x32xf32> -> vector<4x16x32xf32>
    "tpu.trace_stop"() : () -> ()
    %7 = arith.truncf %6 : vector<4x16x32xf32> to vector<4x16x32xbf16>
    "tpu.trace_start"() <{level = 10 : i32, message = "bnm,bmg->bng"}> : () -> ()
    %cst_17 = arith.constant dense<0.000000e+00> : vector<4x16x32xf32>
    %8 = tpu.matmul %1, %7, %cst_17 {dimension_numbers = #tpu.dot_dimension_numbers<[2], [1], [1], [2], [0, 0, 0, 1, 1, 2], [0], [0]>} : vector<4x16x16xbf16>, vector<4x16x32xbf16>, vector<4x16x32xf32> -> vector<4x16x32xf32>
    "tpu.trace_stop"() : () -> ()
    %cst_18 = arith.constant 0.000000e+00 : f32
    %9 = vector.broadcast %cst_18 : f32 to vector<4x16x32xf32>
    %10 = arith.maximumf %8, %9 : vector<4x16x32xf32>
    %11 = arith.truncf %10 : vector<4x16x32xf32> to vector<4x16x32xbf16>
    "tpu.trace_start"() <{level = 10 : i32, message = "bnf,bfg->bng"}> : () -> ()
    %cst_19 = arith.constant dense<0.000000e+00> : vector<4x16x32xf32>
    %12 = tpu.matmul %11, %5, %cst_19 {dimension_numbers = #tpu.dot_dimension_numbers<[2], [1], [1], [2], [0, 0, 0, 1, 1, 2], [0], [0]>} : vector<4x16x32xbf16>, vector<4x32x32xbf16>, vector<4x16x32xf32> -> vector<4x16x32xf32>
    "tpu.trace_stop"() : () -> ()
    %13 = arith.truncf %12 : vector<4x16x32xf32> to vector<4x16x32xbf16>
    "tpu.trace_start"() <{level = 10 : i32, message = "bnm,bmg->bng"}> : () -> ()
    %cst_20 = arith.constant dense<0.000000e+00> : vector<4x16x32xf32>
    %14 = tpu.matmul %1, %13, %cst_20 {dimension_numbers = #tpu.dot_dimension_numbers<[2], [1], [1], [2], [0, 0, 0, 1, 1, 2], [0], [0]>} : vector<4x16x16xbf16>, vector<4x16x32xbf16>, vector<4x16x32xf32> -> vector<4x16x32xf32>
    "tpu.trace_stop"() : () -> ()
    %cst_21 = arith.constant 0.000000e+00 : f32
    %15 = vector.broadcast %cst_21 : f32 to vector<4x16x32xf32>
    %16 = arith.maximumf %14, %15 : vector<4x16x32xf32>
    %17 = arith.addf %16, %10 : vector<4x16x32xf32>
    %cst_22 = arith.constant 1.000000e-01 : f32
    %18 = vector.broadcast %cst_22 : f32 to vector<4x16x32xf32>
    %19 = arith.mulf %18, %17 : vector<4x16x32xf32>
    %20 = arith.truncf %17 : vector<4x16x32xf32> to vector<4x16x32xbf16>
    %c0_23 = arith.constant 0 : index
    %c0_24 = arith.constant 0 : index
    %c0_25 = arith.constant 0 : index
    %21 = vector.load %arg7[%c0_23, %c0_24, %c0_25] : memref<4x32x32xbf16, #tpu.memory_space<vmem>>, vector<4x32x32xbf16>
    %c0_26 = arith.constant 0 : index
    %c0_27 = arith.constant 0 : index
    %c0_28 = arith.constant 0 : index
    %22 = vector.load %arg8[%c0_26, %c0_27, %c0_28] : memref<4x32x32xbf16, #tpu.memory_space<vmem>>, vector<4x32x32xbf16>
    "tpu.trace_start"() <{level = 10 : i32, message = "bnf,bfg->bng"}> : () -> ()
    %cst_29 = arith.constant dense<0.000000e+00> : vector<4x16x32xf32>
    %23 = tpu.matmul %20, %21, %cst_29 {dimension_numbers = #tpu.dot_dimension_numbers<[2], [1], [1], [2], [0, 0, 0, 1, 1, 2], [0], [0]>} : vector<4x16x32xbf16>, vector<4x32x32xbf16>, vector<4x16x32xf32> -> vector<4x16x32xf32>
    "tpu.trace_stop"() : () -> ()
    %24 = arith.truncf %23 : vector<4x16x32xf32> to vector<4x16x32xbf16>
    "tpu.trace_start"() <{level = 10 : i32, message = "bnm,bmg->bng"}> : () -> ()
    %cst_30 = arith.constant dense<0.000000e+00> : vector<4x16x32xf32>
    %25 = tpu.matmul %2, %24, %cst_30 {dimension_numbers = #tpu.dot_dimension_numbers<[2], [1], [1], [2], [0, 0, 0, 1, 1, 2], [0], [0]>} : vector<4x16x16xbf16>, vector<4x16x32xbf16>, vector<4x16x32xf32> -> vector<4x16x32xf32>
    "tpu.trace_stop"() : () -> ()
    %cst_31 = arith.constant 0.000000e+00 : f32
    %26 = vector.broadcast %cst_31 : f32 to vector<4x16x32xf32>
    %27 = arith.maximumf %25, %26 : vector<4x16x32xf32>
    %28 = arith.truncf %27 : vector<4x16x32xf32> to vector<4x16x32xbf16>
    "tpu.trace_start"() <{level = 10 : i32, message = "bnf,bfg->bng"}> : () -> ()
    %cst_32 = arith.constant dense<0.000000e+00> : vector<4x16x32xf32>
    %29 = tpu.matmul %28, %22, %cst_32 {dimension_numbers = #tpu.dot_dimension_numbers<[2], [1], [1], [2], [0, 0, 0, 1, 1, 2], [0], [0]>} : vector<4x16x32xbf16>, vector<4x32x32xbf16>, vector<4x16x32xf32> -> vector<4x16x32xf32>
    "tpu.trace_stop"() : () -> ()
    %30 = arith.truncf %29 : vector<4x16x32xf32> to vector<4x16x32xbf16>
    "tpu.trace_start"() <{level = 10 : i32, message = "bnm,bmg->bng"}> : () -> ()
    %cst_33 = arith.constant dense<0.000000e+00> : vector<4x16x32xf32>
    %31 = tpu.matmul %2, %30, %cst_33 {dimension_numbers = #tpu.dot_dimension_numbers<[2], [1], [1], [2], [0, 0, 0, 1, 1, 2], [0], [0]>} : vector<4x16x16xbf16>, vector<4x16x32xbf16>, vector<4x16x32xf32> -> vector<4x16x32xf32>
    "tpu.trace_stop"() : () -> ()
    %cst_34 = arith.constant 0.000000e+00 : f32
    %32 = vector.broadcast %cst_34 : f32 to vector<4x16x32xf32>
    %33 = arith.maximumf %31, %32 : vector<4x16x32xf32>
    %34 = arith.addf %33, %27 : vector<4x16x32xf32>
    %cst_35 = arith.constant 2.000000e-01 : f32
    %35 = vector.broadcast %cst_35 : f32 to vector<4x16x32xf32>
    %36 = arith.mulf %35, %34 : vector<4x16x32xf32>
    %37 = arith.addf %19, %36 : vector<4x16x32xf32>
    %38 = arith.truncf %34 : vector<4x16x32xf32> to vector<4x16x32xbf16>
    %c0_36 = arith.constant 0 : index
    %c0_37 = arith.constant 0 : index
    %c0_38 = arith.constant 0 : index
    %39 = vector.load %arg9[%c0_36, %c0_37, %c0_38] : memref<4x32x32xbf16, #tpu.memory_space<vmem>>, vector<4x32x32xbf16>
    %c0_39 = arith.constant 0 : index
    %c0_40 = arith.constant 0 : index
    %c0_41 = arith.constant 0 : index
    %40 = vector.load %arg10[%c0_39, %c0_40, %c0_41] : memref<4x32x32xbf16, #tpu.memory_space<vmem>>, vector<4x32x32xbf16>
    "tpu.trace_start"() <{level = 10 : i32, message = "bnf,bfg->bng"}> : () -> ()
    %cst_42 = arith.constant dense<0.000000e+00> : vector<4x16x32xf32>
    %41 = tpu.matmul %38, %39, %cst_42 {dimension_numbers = #tpu.dot_dimension_numbers<[2], [1], [1], [2], [0, 0, 0, 1, 1, 2], [0], [0]>} : vector<4x16x32xbf16>, vector<4x32x32xbf16>, vector<4x16x32xf32> -> vector<4x16x32xf32>
    "tpu.trace_stop"() : () -> ()
    %42 = arith.truncf %41 : vector<4x16x32xf32> to vector<4x16x32xbf16>
    "tpu.trace_start"() <{level = 10 : i32, message = "bnm,bmg->bng"}> : () -> ()
    %cst_43 = arith.constant dense<0.000000e+00> : vector<4x16x32xf32>
    %43 = tpu.matmul %3, %42, %cst_43 {dimension_numbers = #tpu.dot_dimension_numbers<[2], [1], [1], [2], [0, 0, 0, 1, 1, 2], [0], [0]>} : vector<4x16x16xbf16>, vector<4x16x32xbf16>, vector<4x16x32xf32> -> vector<4x16x32xf32>
    "tpu.trace_stop"() : () -> ()
    %cst_44 = arith.constant 0.000000e+00 : f32
    %44 = vector.broadcast %cst_44 : f32 to vector<4x16x32xf32>
    %45 = arith.maximumf %43, %44 : vector<4x16x32xf32>
    %46 = arith.truncf %45 : vector<4x16x32xf32> to vector<4x16x32xbf16>
    "tpu.trace_start"() <{level = 10 : i32, message = "bnf,bfg->bng"}> : () -> ()
    %cst_45 = arith.constant dense<0.000000e+00> : vector<4x16x32xf32>
    %47 = tpu.matmul %46, %40, %cst_45 {dimension_numbers = #tpu.dot_dimension_numbers<[2], [1], [1], [2], [0, 0, 0, 1, 1, 2], [0], [0]>} : vector<4x16x32xbf16>, vector<4x32x32xbf16>, vector<4x16x32xf32> -> vector<4x16x32xf32>
    "tpu.trace_stop"() : () -> ()
    %48 = arith.truncf %47 : vector<4x16x32xf32> to vector<4x16x32xbf16>
    "tpu.trace_start"() <{level = 10 : i32, message = "bnm,bmg->bng"}> : () -> ()
    %cst_46 = arith.constant dense<0.000000e+00> : vector<4x16x32xf32>
    %49 = tpu.matmul %3, %48, %cst_46 {dimension_numbers = #tpu.dot_dimension_numbers<[2], [1], [1], [2], [0, 0, 0, 1, 1, 2], [0], [0]>} : vector<4x16x16xbf16>, vector<4x16x32xbf16>, vector<4x16x32xf32> -> vector<4x16x32xf32>
    "tpu.trace_stop"() : () -> ()
    %cst_47 = arith.constant 0.000000e+00 : f32
    %50 = vector.broadcast %cst_47 : f32 to vector<4x16x32xf32>
    %51 = arith.maximumf %49, %50 : vector<4x16x32xf32>
    %52 = arith.addf %51, %45 : vector<4x16x32xf32>
    %cst_48 = arith.constant 0.699999988 : f32
    %53 = vector.broadcast %cst_48 : f32 to vector<4x16x32xf32>
    %54 = arith.mulf %53, %52 : vector<4x16x32xf32>
    %55 = arith.addf %37, %54 : vector<4x16x32xf32>
    %56 = arith.truncf %55 : vector<4x16x32xf32> to vector<4x16x32xbf16>
    %c0_49 = arith.constant 0 : index
    %c0_50 = arith.constant 0 : index
    %57 = vector.load %arg11[%c0_49, %c0_50] : memref<32x32xbf16, #tpu.memory_space<vmem>>, vector<32x32xbf16>
    "tpu.trace_start"() <{level = 10 : i32, message = "bnf,fd->bnd"}> : () -> ()
    %cst_51 = arith.constant dense<0.000000e+00> : vector<4x16x32xf32>
    %58 = tpu.matmul %56, %57, %cst_51 {dimension_numbers = #tpu.dot_dimension_numbers<[2], [0], [0, 1], [1], [0, 0, 0, 1, 1, 1], [], []>} : vector<4x16x32xbf16>, vector<32x32xbf16>, vector<4x16x32xf32> -> vector<4x16x32xf32>
    "tpu.trace_stop"() : () -> ()
    %c0_52 = arith.constant 0 : index
    %c0_53 = arith.constant 0 : index
    %59 = vector.load %arg12[%c0_52, %c0_53] : memref<1x32xf32, #tpu.memory_space<vmem>>, vector<1x32xf32>
    %60 = vector.shape_cast %59 : vector<1x32xf32> to vector<1x1x32xf32>
    %61 = vector.broadcast %60 : vector<1x1x32xf32> to vector<4x16x32xf32>
    %62 = arith.addf %58, %61 : vector<4x16x32xf32>
    %c0_54 = arith.constant 0 : index
    %c0_55 = arith.constant 0 : index
    %c0_56 = arith.constant 0 : index
    %63 = vector.load %arg13[%c0_54, %c0_55, %c0_56] : memref<4x16x32xf32, #tpu.memory_space<vmem>>, vector<4x16x32xf32>
    tpu.vector_store %arg13[%c0_54, %c0_55, %c0_56], %62 {strides = array<i32>} : memref<4x16x32xf32, #tpu.memory_space<vmem>>, vector<4x16x32xf32>,
    return
  }
  func.func @transform_0(%arg0: i32) -> (i32, i32, i32) {
    %c0_i32 = arith.constant 0 : i32
    %c0_i32_0 = arith.constant 0 : i32
    %c0_i32_1 = arith.constant 0 : i32
    return %arg0, %c0_i32, %c0_i32_0 : i32, i32, i32
  }
  func.func @transform_1(%arg0: i32) -> (i32, i32, i32) {
    %c0_i32 = arith.constant 0 : i32
    %c0_i32_0 = arith.constant 0 : i32
    %c0_i32_1 = arith.constant 0 : i32
    return %arg0, %c0_i32, %c0_i32_0 : i32, i32, i32
  }
  func.func @transform_2(%arg0: i32) -> (i32, i32, i32) {
    %c0_i32 = arith.constant 0 : i32
    %c0_i32_0 = arith.constant 0 : i32
    %c0_i32_1 = arith.constant 0 : i32
    return %arg0, %c0_i32, %c0_i32_0 : i32, i32, i32
  }
  func.func @transform_3(%arg0: i32) -> (i32, i32, i32) {
    %c0_i32 = arith.constant 0 : i32
    %c0_i32_0 = arith.constant 0 : i32
    %c0_i32_1 = arith.constant 0 : i32
    return %arg0, %c0_i32, %c0_i32_0 : i32, i32, i32
  }
  func.func @transform_4(%arg0: i32) -> (i32, i32, i32) {
    %c0_i32 = arith.constant 0 : i32
    %c0_i32_0 = arith.constant 0 : i32
    %c0_i32_1 = arith.constant 0 : i32
    return %arg0, %c0_i32, %c0_i32_0 : i32, i32, i32
  }
  func.func @transform_5(%arg0: i32) -> (i32, i32, i32) {
    %c0_i32 = arith.constant 0 : i32
    %c0_i32_0 = arith.constant 0 : i32
    %c0_i32_1 = arith.constant 0 : i32
    return %arg0, %c0_i32, %c0_i32_0 : i32, i32, i32
  }
  func.func @transform_6(%arg0: i32) -> (i32, i32, i32) {
    %c0_i32 = arith.constant 0 : i32
    %c0_i32_0 = arith.constant 0 : i32
    %c0_i32_1 = arith.constant 0 : i32
    return %arg0, %c0_i32, %c0_i32_0 : i32, i32, i32
  }
  func.func @transform_7(%arg0: i32) -> (i32, i32, i32) {
    %c0_i32 = arith.constant 0 : i32
    %c0_i32_0 = arith.constant 0 : i32
    %c0_i32_1 = arith.constant 0 : i32
    return %arg0, %c0_i32, %c0_i32_0 : i32, i32, i32
  }
  func.func @transform_8(%arg0: i32) -> (i32, i32, i32) {
    %c0_i32 = arith.constant 0 : i32
    %c0_i32_0 = arith.constant 0 : i32
    %c0_i32_1 = arith.constant 0 : i32
    return %arg0, %c0_i32, %c0_i32_0 : i32, i32, i32
  }
  func.func @transform_9(%arg0: i32) -> (i32, i32, i32) {
    %c0_i32 = arith.constant 0 : i32
    %c0_i32_0 = arith.constant 0 : i32
    %c0_i32_1 = arith.constant 0 : i32
    return %arg0, %c0_i32, %c0_i32_0 : i32, i32, i32
  }
  func.func @transform_10(%arg0: i32) -> (i32, i32) {
    %c0_i32 = arith.constant 0 : i32
    %c0_i32_0 = arith.constant 0 : i32
    %c0_i32_1 = arith.constant 0 : i32
    return %c0_i32, %c0_i32_0 : i32, i32
  }
  func.func @transform_11(%arg0: i32) -> (i32, i32) {
    %c0_i32 = arith.constant 0 : i32
    %c0_i32_0 = arith.constant 0 : i32
    %c0_i32_1 = arith.constant 0 : i32
    return %c0_i32, %c0_i32_0 : i32, i32
  }
  func.func @transform_12(%arg0: i32) -> (i32, i32, i32) {
    %c0_i32 = arith.constant 0 : i32
    %c0_i32_0 = arith.constant 0 : i32
    %c0_i32_1 = arith.constant 0 : i32
    return %arg0, %c0_i32, %c0_i32_0 : i32, i32, i32
  }
}

</mosaic_0001>

<llo_original>
// kernel: tpu_custom_call.1
$region0: #{tpu_custom_call.1}
  #allocation0 [shape = 'u32[]', space=smem, size = 0x4, offset = 0x4, fixed_abs, tag = 'smem constant byte address 0x4 - core index']
  #allocation1 [shape = 'u32[144,128]{1,0:T(1,128)}', space=vmem, size = 0x12000, scoped, tag = 'internal scratch']
  %s0 = inlined_call_operand.hbm [shape: bf16[8,16,32], index: 0, kind: input, shape index: {}]
  %s1 = inlined_call_operand.hbm [shape: bf16[8,16,16], index: 1, kind: input, shape index: {}]
  %s2 = inlined_call_operand.hbm [shape: bf16[8,16,16], index: 2, kind: input, shape index: {}]
  %s3 = inlined_call_operand.hbm [shape: bf16[8,16,16], index: 3, kind: input, shape index: {}]
  %s4 = inlined_call_operand.hbm [shape: bf16[8,32,32], index: 4, kind: input, shape index: {}]
  %s5 = inlined_call_operand.hbm [shape: bf16[8,32,32], index: 5, kind: input, shape index: {}]
  %s6 = inlined_call_operand.hbm [shape: bf16[8,32,32], index: 6, kind: input, shape index: {}]
  %s7 = inlined_call_operand.hbm [shape: bf16[8,32,32], index: 7, kind: input, shape index: {}]
  %s8 = inlined_call_operand.hbm [shape: bf16[8,32,32], index: 8, kind: input, shape index: {}]
  %s9 = inlined_call_operand.hbm [shape: bf16[8,32,32], index: 9, kind: input, shape index: {}]
  %s10 = inlined_call_operand.vmem [shape: bf16[32,32], index: 10, kind: input, shape index: {}]
  %s11 = inlined_call_operand.vmem [shape: f32[1,32], index: 11, kind: input, shape index: {}]
  %s12 = inlined_call_operand.hbm [shape: f32[8,16,32], index: 12, kind: output, shape index: {}]
  %s13 = sld [smem:[#allocation0]]
  $region121: #{tpu_custom_call.1} parent=0
    _
  %s15 = ssub.s32 1, %s13
  %s16 = scalar_select 0, %s15, %s13
  $region1: #{tpu_custom_call.1} parent=0
    #allocation2 [shape = 'u8[32768]{0}', space=vmem, size = 0x8000, scoped, tag = 'input window, operand 0']
    #allocation3 [shape = 's32[2]{0}', space=sflag, size = 0x8, scoped, tag = 'scoped memory for tpu_custom_call.1']
    #allocation4 [shape = 's32[2]{0}', space=sflag, size = 0x8, scoped, tag = 'scoped memory for tpu_custom_call.1']
    #allocation5 [shape = 'u8[32768]{0}', space=vmem, size = 0x8000, scoped, tag = 'input window, operand 1']
    #allocation6 [shape = 's32[2]{0}', space=sflag, size = 0x8, scoped, tag = 'scoped memory for tpu_custom_call.1']
    #allocation7 [shape = 'u8[32768]{0}', space=vmem, size = 0x8000, scoped, tag = 'input window, operand 2']
    #allocation8 [shape = 'u8[32768]{0}', space=vmem, size = 0x8000, scoped, tag = 'input window, operand 3']
    #allocation9 [shape = 's32[2]{0}', space=sflag, size = 0x8, scoped, tag = 'scoped memory for tpu_custom_call.1']
    #allocation10 [shape = 'u8[65536]{0}', space=vmem, size = 0x10000, scoped, tag = 'input window, operand 4']
    #allocation11 [shape = 'u8[65536]{0}', space=vmem, size = 0x10000, scoped, tag = 'input window, operand 5']
    #allocation12 [shape = 's32[2]{0}', space=sflag, size = 0x8, scoped, tag = 'scoped memory for tpu_custom_call.1']
    #allocation13 [shape = 'u8[65536]{0}', space=vmem, size = 0x10000, scoped, tag = 'input window, operand 6']
    #allocation14 [shape = 'u8[65536]{0}', space=vmem, size = 0x10000, scoped, tag = 'input window, operand 7']
    #allocation15 [shape = 's32[2]{0}', space=sflag, size = 0x8, scoped, tag = 'scoped memory for tpu_custom_call.1']
    #allocation16 [shape = 'u8[65536]{0}', space=vmem, size = 0x10000, scoped, tag = 'input window, operand 8']
    #allocation17 [shape = 'u8[65536]{0}', space=vmem, size = 0x10000, scoped, tag = 'input window, operand 9']
    #allocation18 [shape = 's32[2]{0}', space=sflag, size = 0x8, scoped, tag = 'scoped memory for tpu_custom_call.1']
    #allocation19 [shape = 'u8[65536]{0}', space=vmem, size = 0x10000, scoped, tag = 'output window, operand 0']
    %17 = vsyncpa [#allocation3], 0
    %s18 = scalar_lea.sflag [#allocation3], 1
    %19 = vsyncpa %s18, 0
    %20 = vsyncpa [#allocation6], 0
    %s21 = scalar_lea.sflag [#allocation6], 1
    %22 = vsyncpa %s21, 0
    %23 = vsyncpa [#allocation9], 0
    %s24 = scalar_lea.sflag [#allocation9], 1
    %25 = vsyncpa %s24, 0
    %26 = vsyncpa [#allocation12], 0
    %s27 = scalar_lea.sflag [#allocation12], 1
    %28 = vsyncpa %s27, 0
    %29 = vsyncpa [#allocation15], 0
    %s30 = scalar_lea.sflag [#allocation15], 1
    %31 = vsyncpa %s30, 0
    %32 = vsyncpa [#allocation18], 0
    %s33 = scalar_lea.sflag [#allocation18], 1
    %34 = vsyncpa %s33, 0
    %35 = vsyncpa [#allocation4], 0
    %s36 = scalar_lea.sflag [#allocation4], 1
    %37 = vsyncpa %s36, 0
    loop: start=0, step=1, limit=4
    $region2: #{tpu_custom_call.1} parent=1 // loop_pre_header
      _
    $region3: #{tpu_custom_call.1} parent=1 // loop_header
      %s39 = sphi 0, %s43
      %p40 = scmp.ge.s32.totalorder %s39, 4
      %s49 = sphi 0, %s51
      %s52 = sphi 0, %s49
      %s53 = sphi 0, %s52
      %s69 = sphi 0, %s53
      %s75 = sphi 0, %s77
      %s78 = sphi 0, %s75
      %s79 = sphi 0, %s78
      %s95 = sphi 0, %s79
      %s101 = sphi 0, %s103
      %s104 = sphi 0, %s101
      %s105 = sphi 0, %s104
      %s121 = sphi 0, %s105
      %s127 = sphi 0, %s129
      %s130 = sphi 0, %s127
      %s131 = sphi 0, %s130
      %s147 = sphi 0, %s131
      %s153 = sphi 0, %s155
      %s156 = sphi 0, %s153
      %s157 = sphi 0, %s156
      %s173 = sphi 0, %s157
      %s179 = sphi 0, %s181
      %s182 = sphi 0, %s179
      %s183 = sphi 0, %s182
      %s199 = sphi 0, %s183
      %s205 = sphi 0, %s207
      %s208 = sphi 0, %s205
      %s209 = sphi 0, %s208
      %s225 = sphi 0, %s209
      %s231 = sphi 0, %s233
      %s234 = sphi 0, %s231
      %s235 = sphi 0, %s234
      %s251 = sphi 0, %s235
      %s257 = sphi 0, %s259
      %s260 = sphi 0, %s257
      %s261 = sphi 0, %s260
      %s277 = sphi 0, %s261
      %s283 = sphi 0, %s285
      %s286 = sphi 0, %s283
      %s287 = sphi 0, %s286
      %s303 = sphi 0, %s287
      %s307 = sphi 0, %s307
      %s309 = sphi 0, %s307
      %s310 = sphi 0, %s309
      %s324 = sphi 0, %s310
      %s328 = sphi 0, %s328
      %s330 = sphi 0, %s328
      %s331 = sphi 0, %s330
      %s345 = sphi 0, %s331
      %s351 = sphi 0, %s353
      %s354 = sphi 0, %s351
      %s355 = sphi 0, %s354
      %s371 = sphi 0, %s355
    $region4: #{tpu_custom_call.1} parent=1 // loop_header_branch
      %42 = sbr.rel (%p40) target = $region8
    $region5: #{tpu_custom_call.1} parent=1 // loop_body
      %s44 = ssub.s32 %s39, 1
      %s45 = ssub.s32 %s39, 2
      %s46 = sadd.s32 %s39, 1
      %s47 = ssub.s32 %s39, %s46
      %p48 = scmp.eq.s32.totalorder %s47, 0
      %s50 = sadd.s32 %s49, 1
      %s51 = scalar_select %p48, %s49, %s50
      %p54 = pneg %p48
      %p55 = scmp.eq.s32.totalorder %s39, 1
      %p56 = por %p54, %p55
      %p57 = scmp.ne.s32.totalorder %s49, %s52
      %p58 = scmp.eq.s32.totalorder %s39, 0
      %p59 = por %p57, %p58
      %p60 = scmp.ne.s32.totalorder %s49, %s52
      %p61 = scmp.eq.s32.totalorder %s44, 1
      %p62 = por %p60, %p61
      %p63 = scmp.ne.s32.totalorder %s52, %s53
      %p64 = scmp.eq.s32.totalorder %s44, 0
      %p65 = por %p63, %p64
      %p66 = scmp.ne.s32.totalorder %s52, %s53
      %p67 = scmp.eq.s32.totalorder %s45, 1
      %p68 = por %p66, %p67
      %p70 = scmp.ne.s32.totalorder %s53, %s69
      %p71 = scmp.eq.s32.totalorder %s45, 0
      %p72 = por %p70, %p71
      %s73 = ssub.s32 %s39, %s46
      %p74 = scmp.eq.s32.totalorder %s73, 0
      %s76 = sadd.s32 %s75, 1
      %s77 = scalar_select %p74, %s75, %s76
      %p80 = pneg %p74
      %p81 = scmp.eq.s32.totalorder %s39, 1
      %p82 = por %p80, %p81
      %p83 = scmp.ne.s32.totalorder %s75, %s78
      %p84 = scmp.eq.s32.totalorder %s39, 0
      %p85 = por %p83, %p84
      %p86 = scmp.ne.s32.totalorder %s75, %s78
      %p87 = scmp.eq.s32.totalorder %s44, 1
      %p88 = por %p86, %p87
      %p89 = scmp.ne.s32.totalorder %s78, %s79
      %p90 = scmp.eq.s32.totalorder %s44, 0
      %p91 = por %p89, %p90
      %p92 = scmp.ne.s32.totalorder %s78, %s79
      %p93 = scmp.eq.s32.totalorder %s45, 1
      %p94 = por %p92, %p93
      %p96 = scmp.ne.s32.totalorder %s79, %s95
      %p97 = scmp.eq.s32.totalorder %s45, 0
      %p98 = por %p96, %p97
      %s99 = ssub.s32 %s39, %s46
      %p100 = scmp.eq.s32.totalorder %s99, 0
      %s102 = sadd.s32 %s101, 1
      %s103 = scalar_select %p100, %s101, %s102
      %p106 = pneg %p100
      %p107 = scmp.eq.s32.totalorder %s39, 1
      %p108 = por %p106, %p107
      %p109 = scmp.ne.s32.totalorder %s101, %s104
      %p110 = scmp.eq.s32.totalorder %s39, 0
      %p111 = por %p109, %p110
      %p112 = scmp.ne.s32.totalorder %s101, %s104
      %p113 = scmp.eq.s32.totalorder %s44, 1
      %p114 = por %p112, %p113
      %p115 = scmp.ne.s32.totalorder %s104, %s105
      %p116 = scmp.eq.s32.totalorder %s44, 0
      %p117 = por %p115, %p116
      %p118 = scmp.ne.s32.totalorder %s104, %s105
      %p119 = scmp.eq.s32.totalorder %s45, 1
      %p120 = por %p118, %p119
      %p122 = scmp.ne.s32.totalorder %s105, %s121
      %p123 = scmp.eq.s32.totalorder %s45, 0
      %p124 = por %p122, %p123
      %s125 = ssub.s32 %s39, %s46
      %p126 = scmp.eq.s32.totalorder %s125, 0
      %s128 = sadd.s32 %s127, 1
      %s129 = scalar_select %p126, %s127, %s128
      %p132 = pneg %p126
      %p133 = scmp.eq.s32.totalorder %s39, 1
      %p134 = por %p132, %p133
      %p135 = scmp.ne.s32.totalorder %s127, %s130
      %p136 = scmp.eq.s32.totalorder %s39, 0
      %p137 = por %p135, %p136
      %p138 = scmp.ne.s32.totalorder %s127, %s130
      %p139 = scmp.eq.s32.totalorder %s44, 1
      %p140 = por %p138, %p139
      %p141 = scmp.ne.s32.totalorder %s130, %s131
      %p142 = scmp.eq.s32.totalorder %s44, 0
      %p143 = por %p141, %p142
      %p144 = scmp.ne.s32.totalorder %s130, %s131
      %p145 = scmp.eq.s32.totalorder %s45, 1
      %p146 = por %p144, %p145
      %p148 = scmp.ne.s32.totalorder %s131, %s147
      %p149 = scmp.eq.s32.totalorder %s45, 0
      %p150 = por %p148, %p149
      %s151 = ssub.s32 %s39, %s46
      %p152 = scmp.eq.s32.totalorder %s151, 0
      %s154 = sadd.s32 %s153, 1
      %s155 = scalar_select %p152, %s153, %s154
      %p158 = pneg %p152
      %p159 = scmp.eq.s32.totalorder %s39, 1
      %p160 = por %p158, %p159
      %p161 = scmp.ne.s32.totalorder %s153, %s156
      %p162 = scmp.eq.s32.totalorder %s39, 0
      %p163 = por %p161, %p162
      %p164 = scmp.ne.s32.totalorder %s153, %s156
      %p165 = scmp.eq.s32.totalorder %s44, 1
      %p166 = por %p164, %p165
      %p167 = scmp.ne.s32.totalorder %s156, %s157
      %p168 = scmp.eq.s32.totalorder %s44, 0
      %p169 = por %p167, %p168
      %p170 = scmp.ne.s32.totalorder %s156, %s157
      %p171 = scmp.eq.s32.totalorder %s45, 1
      %p172 = por %p170, %p171
      %p174 = scmp.ne.s32.totalorder %s157, %s173
      %p175 = scmp.eq.s32.totalorder %s45, 0
      %p176 = por %p174, %p175
      %s177 = ssub.s32 %s39, %s46
      %p178 = scmp.eq.s32.totalorder %s177, 0
      %s180 = sadd.s32 %s179, 1
      %s181 = scalar_select %p178, %s179, %s180
      %p184 = pneg %p178
      %p185 = scmp.eq.s32.totalorder %s39, 1
      %p186 = por %p184, %p185
      %p187 = scmp.ne.s32.totalorder %s179, %s182
      %p188 = scmp.eq.s32.totalorder %s39, 0
      %p189 = por %p187, %p188
      %p190 = scmp.ne.s32.totalorder %s179, %s182
      %p191 = scmp.eq.s32.totalorder %s44, 1
      %p192 = por %p190, %p191
      %p193 = scmp.ne.s32.totalorder %s182, %s183
      %p194 = scmp.eq.s32.totalorder %s44, 0
      %p195 = por %p193, %p194
      %p196 = scmp.ne.s32.totalorder %s182, %s183
      %p197 = scmp.eq.s32.totalorder %s45, 1
      %p198 = por %p196, %p197
      %p200 = scmp.ne.s32.totalorder %s183, %s199
      %p201 = scmp.eq.s32.totalorder %s45, 0
      %p202 = por %p200, %p201
      %s203 = ssub.s32 %s39, %s46
      %p204 = scmp.eq.s32.totalorder %s203, 0
      %s206 = sadd.s32 %s205, 1
      %s207 = scalar_select %p204, %s205, %s206
      %p210 = pneg %p204
      %p211 = scmp.eq.s32.totalorder %s39, 1
      %p212 = por %p210, %p211
      %p213 = scmp.ne.s32.totalorder %s205, %s208
      %p214 = scmp.eq.s32.totalorder %s39, 0
      %p215 = por %p213, %p214
      %p216 = scmp.ne.s32.totalorder %s205, %s208
      %p217 = scmp.eq.s32.totalorder %s44, 1
      %p218 = por %p216, %p217
      %p219 = scmp.ne.s32.totalorder %s208, %s209
      %p220 = scmp.eq.s32.totalorder %s44, 0
      %p221 = por %p219, %p220
      %p222 = scmp.ne.s32.totalorder %s208, %s209
      %p223 = scmp.eq.s32.totalorder %s45, 1
      %p224 = por %p222, %p223
      %p226 = scmp.ne.s32.totalorder %s209, %s225
      %p227 = scmp.eq.s32.totalorder %s45, 0
      %p228 = por %p226, %p227
      %s229 = ssub.s32 %s39, %s46
      %p230 = scmp.eq.s32.totalorder %s229, 0
      %s232 = sadd.s32 %s231, 1
      %s233 = scalar_select %p230, %s231, %s232
      %p236 = pneg %p230
      %p237 = scmp.eq.s32.totalorder %s39, 1
      %p238 = por %p236, %p237
      %p239 = scmp.ne.s32.totalorder %s231, %s234
      %p240 = scmp.eq.s32.totalorder %s39, 0
      %p241 = por %p239, %p240
      %p242 = scmp.ne.s32.totalorder %s231, %s234
      %p243 = scmp.eq.s32.totalorder %s44, 1
      %p244 = por %p242, %p243
      %p245 = scmp.ne.s32.totalorder %s234, %s235
      %p246 = scmp.eq.s32.totalorder %s44, 0
      %p247 = por %p245, %p246
      %p248 = scmp.ne.s32.totalorder %s234, %s235
      %p249 = scmp.eq.s32.totalorder %s45, 1
      %p250 = por %p248, %p249
      %p252 = scmp.ne.s32.totalorder %s235, %s251
      %p253 = scmp.eq.s32.totalorder %s45, 0
      %p254 = por %p252, %p253
      %s255 = ssub.s32 %s39, %s46
      %p256 = scmp.eq.s32.totalorder %s255, 0
      %s258 = sadd.s32 %s257, 1
      %s259 = scalar_select %p256, %s257, %s258
      %p262 = pneg %p256
      %p263 = scmp.eq.s32.totalorder %s39, 1
      %p264 = por %p262, %p263
      %p265 = scmp.ne.s32.totalorder %s257, %s260
      %p266 = scmp.eq.s32.totalorder %s39, 0
      %p267 = por %p265, %p266
      %p268 = scmp.ne.s32.totalorder %s257, %s260
      %p269 = scmp.eq.s32.totalorder %s44, 1
      %p270 = por %p268, %p269
      %p271 = scmp.ne.s32.totalorder %s260, %s261
      %p272 = scmp.eq.s32.totalorder %s44, 0
      %p273 = por %p271, %p272
      %p274 = scmp.ne.s32.totalorder %s260, %s261
      %p275 = scmp.eq.s32.totalorder %s45, 1
      %p276 = por %p274, %p275
      %p278 = scmp.ne.s32.totalorder %s261, %s277
      %p279 = scmp.eq.s32.totalorder %s45, 0
      %p280 = por %p278, %p279
      %s281 = ssub.s32 %s39, %s46
      %p282 = scmp.eq.s32.totalorder %s281, 0
      %s284 = sadd.s32 %s283, 1
      %s285 = scalar_select %p282, %s283, %s284
      %p288 = pneg %p282
      %p289 = scmp.eq.s32.totalorder %s39, 1
      %p290 = por %p288, %p289
      %p291 = scmp.ne.s32.totalorder %s283, %s286
      %p292 = scmp.eq.s32.totalorder %s39, 0
      %p293 = por %p291, %p292
      %p294 = scmp.ne.s32.totalorder %s283, %s286
      %p295 = scmp.eq.s32.totalorder %s44, 1
      %p296 = por %p294, %p295
      %p297 = scmp.ne.s32.totalorder %s286, %s287
      %p298 = scmp.eq.s32.totalorder %s44, 0
      %p299 = por %p297, %p298
      %p300 = scmp.ne.s32.totalorder %s286, %s287
      %p301 = scmp.eq.s32.totalorder %s45, 1
      %p302 = por %p300, %p301
      %p304 = scmp.ne.s32.totalorder %s287, %s303
      %p305 = scmp.eq.s32.totalorder %s45, 0
      %p306 = por %p304, %p305
      %s308 = sadd.s32 %s307, 1
      %p311 = scmp.eq.s32.totalorder %s39, 1
      %p312 = scmp.ne.s32.totalorder %s307, %s309
      %p313 = scmp.eq.s32.totalorder %s39, 0
      %p314 = por %p312, %p313
      %p315 = scmp.ne.s32.totalorder %s307, %s309
      %p316 = scmp.eq.s32.totalorder %s44, 1
      %p317 = por %p315, %p316
      %p318 = scmp.ne.s32.totalorder %s309, %s310
      %p319 = scmp.eq.s32.totalorder %s44, 0
      %p320 = por %p318, %p319
      %p321 = scmp.ne.s32.totalorder %s309, %s310
      %p322 = scmp.eq.s32.totalorder %s45, 1
      %p323 = por %p321, %p322
      %p325 = scmp.ne.s32.totalorder %s310, %s324
      %p326 = scmp.eq.s32.totalorder %s45, 0
      %p327 = por %p325, %p326
      %s329 = sadd.s32 %s328, 1
      %p332 = scmp.eq.s32.totalorder %s39, 1
      %p333 = scmp.ne.s32.totalorder %s328, %s330
      %p334 = scmp.eq.s32.totalorder %s39, 0
      %p335 = por %p333, %p334
      %p336 = scmp.ne.s32.totalorder %s328, %s330
      %p337 = scmp.eq.s32.totalorder %s44, 1
      %p338 = por %p336, %p337
      %p339 = scmp.ne.s32.totalorder %s330, %s331
      %p340 = scmp.eq.s32.totalorder %s44, 0
      %p341 = por %p339, %p340
      %p342 = scmp.ne.s32.totalorder %s330, %s331
      %p343 = scmp.eq.s32.totalorder %s45, 1
      %p344 = por %p342, %p343
      %p346 = scmp.ne.s32.totalorder %s331, %s345
      %p347 = scmp.eq.s32.totalorder %s45, 0
      %p348 = por %p346, %p347
      %s349 = ssub.s32 %s39, %s46
      %p350 = scmp.eq.s32.totalorder %s349, 0
      %s352 = sadd.s32 %s351, 1
      %s353 = scalar_select %p350, %s351, %s352
      %p356 = pneg %p350
      %p357 = scmp.eq.s32.totalorder %s39, 1
      %p358 = por %p356, %p357
      %p359 = scmp.ne.s32.totalorder %s351, %s354
      %p360 = scmp.eq.s32.totalorder %s39, 0
      %p361 = por %p359, %p360
      %p362 = scmp.ne.s32.totalorder %s351, %s354
      %p363 = scmp.eq.s32.totalorder %s44, 1
      %p364 = por %p362, %p363
      %p365 = scmp.ne.s32.totalorder %s354, %s355
      %p366 = scmp.eq.s32.totalorder %s44, 0
      %p367 = por %p365, %p366
      %p368 = scmp.ne.s32.totalorder %s354, %s355
      %p369 = scmp.eq.s32.totalorder %s45, 1
      %p370 = por %p368, %p369
      %p372 = scmp.ne.s32.totalorder %s355, %s371
      %p373 = scmp.eq.s32.totalorder %s45, 0
      %p374 = por %p372, %p373
      %p375 = scmp.le.s32.totalorder 1, %s39
      %p376 = scmp.lt.s32.totalorder %s39, 3
      %p377 = pnand %p375, %p376
      %p378 = pneg %p377
      // Predicated region
      $region9: #{tpu_custom_call.1} parent=5 // pred_check
        _
      $region10: #{tpu_custom_call.1} parent=5 // pred_check_branch
        %380 = sbr.rel (%p377) target = $region12
      $region11: #{tpu_custom_call.1} parent=5 // pred_region
        %s381 = ssub.s32 %s39, 1
        // Predicated region
        $region13: #{tpu_custom_call.1} parent=11 // pred_check
          %p382 = pneg %p320
        $region14: #{tpu_custom_call.1} parent=11 // pred_check_branch
          %384 = sbr.rel (%p382) target = $region16
        $region15: #{tpu_custom_call.1} parent=11 // pred_region
          _
        $region16: #{tpu_custom_call.1} parent=11 // pred_fallthru
          _
        // Predicated region
        $region17: #{tpu_custom_call.1} parent=11 // pred_check
          %p385 = pneg %p341
        $region18: #{tpu_custom_call.1} parent=11 // pred_check_branch
          %387 = sbr.rel (%p385) target = $region20
        $region19: #{tpu_custom_call.1} parent=11 // pred_region
          _
        $region20: #{tpu_custom_call.1} parent=11 // pred_fallthru
          _
      $region12: #{tpu_custom_call.1} parent=5 // pred_fallthru
        _
      %p388 = scmp.lt.s32.totalorder %s39, 2
      // Predicated region
      $region21: #{tpu_custom_call.1} parent=5 // pred_check
        %p389 = pneg %p388
      $region22: #{tpu_custom_call.1} parent=5 // pred_check_branch
        %391 = sbr.rel (%p389) target = $region24
      $region23: #{tpu_custom_call.1} parent=5 // pred_region
        // Predicated region
        $region25: #{tpu_custom_call.1} parent=23 // pred_check
          %p392 = pneg %p59
        $region26: #{tpu_custom_call.1} parent=23 // pred_check_branch
          %394 = sbr.rel (%p392) target = $region28
        $region27: #{tpu_custom_call.1} parent=23 // pred_region
          %s395 = sand.u32 %s49, 1
          %s396 = scalar_lea.sflag [#allocation3], %s395
          %s397 = sand.u32 %s49, 1
          %s398 = smul.addr %s397, 32
          %s399 = scalar_lea.vmem [#allocation2], %s398
          %s400 = smul.u32 4, %s39
          %s402 = ssub.s32 512, 512
          %403 = vsyncadd %s396, %s402
          %s404 = smul.addr %s400, 2
          %s405 = smul.addr %s404, 64
          %s406 = scalar_lea.hbm %s0, %s405
          %s407 = sshll.u32 %s399, 4
          %s408 = int_to_ptr.vmem [resolvable:$true] %s407
          %413 = dma.hbm_to_vmem [thread:$0]  %s406, 512, %s408, %s396, 64, 64, 4
        $region28: #{tpu_custom_call.1} parent=23 // pred_fallthru
          _
        // Predicated region
        $region29: #{tpu_custom_call.1} parent=23 // pred_check
          %p414 = pneg %p85
        $region30: #{tpu_custom_call.1} parent=23 // pred_check_branch
          %416 = sbr.rel (%p414) target = $region32
        $region31: #{tpu_custom_call.1} parent=23 // pred_region
          %s417 = sand.u32 %s39, 1
          %s418 = scalar_lea.sflag [#allocation6], %s417
          %s419 = sand.u32 %s75, 1
          %s420 = smul.addr %s419, 32
          %s421 = scalar_lea.vmem [#allocation5], %s420
          %s422 = smul.u32 4, %s39
          %s424 = ssub.s32 512, 512
          %425 = vsyncadd %s418, %s424
          %s426 = smul.addr %s422, 2
          %s427 = smul.addr %s426, 64
          %s428 = scalar_lea.hbm %s1, %s427
          %s429 = sshll.u32 %s421, 4
          %s430 = int_to_ptr.vmem [resolvable:$true] %s429
          %435 = dma.hbm_to_vmem [thread:$0]  %s428, 512, %s430, %s418, 64, 64, 4
        $region32: #{tpu_custom_call.1} parent=23 // pred_fallthru
          _
        // Predicated region
        $region33: #{tpu_custom_call.1} parent=23 // pred_check
          %p436 = pneg %p111
        $region34: #{tpu_custom_call.1} parent=23 // pred_check_branch
          %438 = sbr.rel (%p436) target = $region36
        $region35: #{tpu_custom_call.1} parent=23 // pred_region
          %s439 = sand.u32 %s39, 1
          %s440 = scalar_lea.sflag [#allocation6], %s439
          %s441 = sand.u32 %s101, 1
          %s442 = smul.addr %s441, 32
          %s443 = scalar_lea.vmem [#allocation7], %s442
          %s444 = smul.u32 4, %s39
          %s446 = ssub.s32 512, 512
          %447 = vsyncadd %s440, %s446
          %s448 = smul.addr %s444, 2
          %s449 = smul.addr %s448, 64
          %s450 = scalar_lea.hbm %s2, %s449
          %s451 = sshll.u32 %s443, 4
          %s452 = int_to_ptr.vmem [resolvable:$true] %s451
          %457 = dma.hbm_to_vmem [thread:$0]  %s450, 512, %s452, %s440, 64, 64, 4
        $region36: #{tpu_custom_call.1} parent=23 // pred_fallthru
          _
        // Predicated region
        $region37: #{tpu_custom_call.1} parent=23 // pred_check
          %p458 = pneg %p137
        $region38: #{tpu_custom_call.1} parent=23 // pred_check_branch
          %460 = sbr.rel (%p458) target = $region40
        $region39: #{tpu_custom_call.1} parent=23 // pred_region
          %s461 = sand.u32 %s39, 1
          %s462 = scalar_lea.sflag [#allocation9], %s461
          %s463 = sand.u32 %s127, 1
          %s464 = smul.addr %s463, 32
          %s465 = scalar_lea.vmem [#allocation8], %s464
          %s466 = smul.u32 4, %s39
          %s468 = ssub.s32 512, 512
          %469 = vsyncadd %s462, %s468
          %s470 = smul.addr %s466, 2
          %s471 = smul.addr %s470, 64
          %s472 = scalar_lea.hbm %s3, %s471
          %s473 = sshll.u32 %s465, 4
          %s474 = int_to_ptr.vmem [resolvable:$true] %s473
          %479 = dma.hbm_to_vmem [thread:$0]  %s472, 512, %s474, %s462, 64, 64, 4
        $region40: #{tpu_custom_call.1} parent=23 // pred_fallthru
          _
        // Predicated region
        $region41: #{tpu_custom_call.1} parent=23 // pred_check
          %p480 = pneg %p163
        $region42: #{tpu_custom_call.1} parent=23 // pred_check_branch
          %482 = sbr.rel (%p480) target = $region44
        $region43: #{tpu_custom_call.1} parent=23 // pred_region
          %s483 = sand.u32 %s39, 1
          %s484 = scalar_lea.sflag [#allocation9], %s483
          %s485 = sand.u32 %s153, 1
          %s486 = smul.addr %s485, 64
          %s487 = scalar_lea.vmem [#allocation10], %s486
          %s488 = smul.u32 4, %s39
          %s490 = ssub.s32 1024, 1024
          %491 = vsyncadd %s484, %s490
          %s492 = smul.addr %s488, 4
          %s493 = smul.addr %s492, 64
          %s494 = scalar_lea.hbm %s4, %s493
          %s495 = sshll.u32 %s487, 4
          %s496 = int_to_ptr.vmem [resolvable:$true] %s495
          %501 = dma.hbm_to_vmem [thread:$0]  %s494, 1024, %s496, %s484, 64, 64, 4
        $region44: #{tpu_custom_call.1} parent=23 // pred_fallthru
          _
        // Predicated region
        $region45: #{tpu_custom_call.1} parent=23 // pred_check
          %p502 = pneg %p189
        $region46: #{tpu_custom_call.1} parent=23 // pred_check_branch
          %504 = sbr.rel (%p502) target = $region48
        $region47: #{tpu_custom_call.1} parent=23 // pred_region
          %s505 = sand.u32 %s39, 1
          %s506 = scalar_lea.sflag [#allocation12], %s505
          %s507 = sand.u32 %s179, 1
          %s508 = smul.addr %s507, 64
          %s509 = scalar_lea.vmem [#allocation11], %s508
          %s510 = smul.u32 4, %s39
          %s512 = ssub.s32 1024, 1024
          %513 = vsyncadd %s506, %s512
          %s514 = smul.addr %s510, 4
          %s515 = smul.addr %s514, 64
          %s516 = scalar_lea.hbm %s5, %s515
          %s517 = sshll.u32 %s509, 4
          %s518 = int_to_ptr.vmem [resolvable:$true] %s517
          %523 = dma.hbm_to_vmem [thread:$0]  %s516, 1024, %s518, %s506, 64, 64, 4
        $region48: #{tpu_custom_call.1} parent=23 // pred_fallthru
          _
        // Predicated region
        $region49: #{tpu_custom_call.1} parent=23 // pred_check
          %p524 = pneg %p215
        $region50: #{tpu_custom_call.1} parent=23 // pred_check_branch
          %526 = sbr.rel (%p524) target = $region52
        $region51: #{tpu_custom_call.1} parent=23 // pred_region
          %s527 = sand.u32 %s39, 1
          %s528 = scalar_lea.sflag [#allocation12], %s527
          %s529 = sand.u32 %s205, 1
          %s530 = smul.addr %s529, 64
          %s531 = scalar_lea.vmem [#allocation13], %s530
          %s532 = smul.u32 4, %s39
          %s534 = ssub.s32 1024, 1024
          %535 = vsyncadd %s528, %s534
          %s536 = smul.addr %s532, 4
          %s537 = smul.addr %s536, 64
          %s538 = scalar_lea.hbm %s6, %s537
          %s539 = sshll.u32 %s531, 4
          %s540 = int_to_ptr.vmem [resolvable:$true] %s539
          %545 = dma.hbm_to_vmem [thread:$0]  %s538, 1024, %s540, %s528, 64, 64, 4
        $region52: #{tpu_custom_call.1} parent=23 // pred_fallthru
          _
        // Predicated region
        $region53: #{tpu_custom_call.1} parent=23 // pred_check
          %p546 = pneg %p241
        $region54: #{tpu_custom_call.1} parent=23 // pred_check_branch
          %548 = sbr.rel (%p546) target = $region56
        $region55: #{tpu_custom_call.1} parent=23 // pred_region
          %s549 = sand.u32 %s39, 1
          %s550 = scalar_lea.sflag [#allocation15], %s549
          %s551 = sand.u32 %s231, 1
          %s552 = smul.addr %s551, 64
          %s553 = scalar_lea.vmem [#allocation14], %s552
          %s554 = smul.u32 4, %s39
          %s556 = ssub.s32 1024, 1024
          %557 = vsyncadd %s550, %s556
          %s558 = smul.addr %s554, 4
          %s559 = smul.addr %s558, 64
          %s560 = scalar_lea.hbm %s7, %s559
          %s561 = sshll.u32 %s553, 4
          %s562 = int_to_ptr.vmem [resolvable:$true] %s561
          %567 = dma.hbm_to_vmem [thread:$0]  %s560, 1024, %s562, %s550, 64, 64, 4
        $region56: #{tpu_custom_call.1} parent=23 // pred_fallthru
          _
        // Predicated region
        $region57: #{tpu_custom_call.1} parent=23 // pred_check
          %p568 = pneg %p267
        $region58: #{tpu_custom_call.1} parent=23 // pred_check_branch
          %570 = sbr.rel (%p568) target = $region60
        $region59: #{tpu_custom_call.1} parent=23 // pred_region
          %s571 = sand.u32 %s39, 1
          %s572 = scalar_lea.sflag [#allocation15], %s571
          %s573 = sand.u32 %s257, 1
          %s574 = smul.addr %s573, 64
          %s575 = scalar_lea.vmem [#allocation16], %s574
          %s576 = smul.u32 4, %s39
          %s578 = ssub.s32 1024, 1024
          %579 = vsyncadd %s572, %s578
          %s580 = smul.addr %s576, 4
          %s581 = smul.addr %s580, 64
          %s582 = scalar_lea.hbm %s8, %s581
          %s583 = sshll.u32 %s575, 4
          %s584 = int_to_ptr.vmem [resolvable:$true] %s583
          %589 = dma.hbm_to_vmem [thread:$0]  %s582, 1024, %s584, %s572, 64, 64, 4
        $region60: #{tpu_custom_call.1} parent=23 // pred_fallthru
          _
        // Predicated region
        $region61: #{tpu_custom_call.1} parent=23 // pred_check
          %p590 = pneg %p293
        $region62: #{tpu_custom_call.1} parent=23 // pred_check_branch
          %592 = sbr.rel (%p590) target = $region64
        $region63: #{tpu_custom_call.1} parent=23 // pred_region
          %s593 = sand.u32 %s283, 1
          %s594 = scalar_lea.sflag [#allocation18], %s593
          %s595 = sand.u32 %s283, 1
          %s596 = smul.addr %s595, 64
          %s597 = scalar_lea.vmem [#allocation17], %s596
          %s598 = smul.u32 4, %s39
          %s600 = ssub.s32 1024, 1024
          %601 = vsyncadd %s594, %s600
          %s602 = smul.addr %s598, 4
          %s603 = smul.addr %s602, 64
          %s604 = scalar_lea.hbm %s9, %s603
          %s605 = sshll.u32 %s597, 4
          %s606 = int_to_ptr.vmem [resolvable:$true] %s605
          %611 = dma.hbm_to_vmem [thread:$0]  %s604, 1024, %s606, %s594, 64, 64, 4
        $region64: #{tpu_custom_call.1} parent=23 // pred_fallthru
          _
      $region24: #{tpu_custom_call.1} parent=5 // pred_fallthru
        _
      %p612 = scmp.le.s32.totalorder 1, %s39
      %p613 = scmp.lt.s32.totalorder %s39, 3
      %p614 = pnand %p612, %p613
      %p615 = pneg %p614
      // Predicated region
      $region65: #{tpu_custom_call.1} parent=5 // pred_check
        _
      $region66: #{tpu_custom_call.1} parent=5 // pred_check_branch
        %617 = sbr.rel (%p614) target = $region68
      $region67: #{tpu_custom_call.1} parent=5 // pred_region
        %s618 = ssub.s32 %s39, 1
        %s619 = sand.u32 %s52, 1
        %s620 = scalar_lea.sflag [#allocation3], %s619
        %s621 = sand.u32 %s52, 1
        %s622 = smul.addr %s621, 32
        %s623 = scalar_lea.vmem [#allocation2], %s622
        // Predicated region
        $region69: #{tpu_custom_call.1} parent=67 // pred_check
          %p624 = pneg %p65
        $region70: #{tpu_custom_call.1} parent=67 // pred_check_branch
          %626 = sbr.rel (%p624) target = $region72
        $region71: #{tpu_custom_call.1} parent=67 // pred_region
          %627 = dma.done %s620, 512
        $region72: #{tpu_custom_call.1} parent=67 // pred_fallthru
          _
        %s628 = sand.u32 %s44, 1
        %s629 = scalar_lea.sflag [#allocation6], %s628
        %s630 = sand.u32 %s78, 1
        %s631 = smul.addr %s630, 32
        %s632 = scalar_lea.vmem [#allocation5], %s631
        // Predicated region
        $region73: #{tpu_custom_call.1} parent=67 // pred_check
          %p633 = pneg %p91
        $region74: #{tpu_custom_call.1} parent=67 // pred_check_branch
          %635 = sbr.rel (%p633) target = $region76
        $region75: #{tpu_custom_call.1} parent=67 // pred_region
          %636 = dma.done %s629, 512
        $region76: #{tpu_custom_call.1} parent=67 // pred_fallthru
          _
        %s637 = sand.u32 %s44, 1
        %s638 = scalar_lea.sflag [#allocation6], %s637
        %s639 = sand.u32 %s104, 1
        %s640 = smul.addr %s639, 32
        %s641 = scalar_lea.vmem [#allocation7], %s640
        // Predicated region
        $region77: #{tpu_custom_call.1} parent=67 // pred_check
          %p642 = pneg %p117
        $region78: #{tpu_custom_call.1} parent=67 // pred_check_branch
          %644 = sbr.rel (%p642) target = $region80
        $region79: #{tpu_custom_call.1} parent=67 // pred_region
          %645 = dma.done %s638, 512
        $region80: #{tpu_custom_call.1} parent=67 // pred_fallthru
          _
        %s646 = sand.u32 %s44, 1
        %s647 = scalar_lea.sflag [#allocation9], %s646
        %s648 = sand.u32 %s130, 1
        %s649 = smul.addr %s648, 32
        %s650 = scalar_lea.vmem [#allocation8], %s649
        // Predicated region
        $region81: #{tpu_custom_call.1} parent=67 // pred_check
          %p651 = pneg %p143
        $region82: #{tpu_custom_call.1} parent=67 // pred_check_branch
          %653 = sbr.rel (%p651) target = $region84
        $region83: #{tpu_custom_call.1} parent=67 // pred_region
          %654 = dma.done %s647, 512
        $region84: #{tpu_custom_call.1} parent=67 // pred_fallthru
          _
        %s655 = sand.u32 %s44, 1
        %s656 = scalar_lea.sflag [#allocation9], %s655
        %s657 = sand.u32 %s156, 1
        %s658 = smul.addr %s657, 64
        %s659 = scalar_lea.vmem [#allocation10], %s658
        // Predicated region
        $region85: #{tpu_custom_call.1} parent=67 // pred_check
          %p660 = pneg %p169
        $region86: #{tpu_custom_call.1} parent=67 // pred_check_branch
          %662 = sbr.rel (%p660) target = $region88
        $region87: #{tpu_custom_call.1} parent=67 // pred_region
          %663 = dma.done %s656, 1024
        $region88: #{tpu_custom_call.1} parent=67 // pred_fallthru
          _
        %s664 = sand.u32 %s44, 1
        %s665 = scalar_lea.sflag [#allocation12], %s664
        %s666 = sand.u32 %s182, 1
        %s667 = smul.addr %s666, 64
        %s668 = scalar_lea.vmem [#allocation11], %s667
        // Predicated region
        $region89: #{tpu_custom_call.1} parent=67 // pred_check
          %p669 = pneg %p195
        $region90: #{tpu_custom_call.1} parent=67 // pred_check_branch
          %671 = sbr.rel (%p669) target = $region92
        $region91: #{tpu_custom_call.1} parent=67 // pred_region
          %672 = dma.done %s665, 1024
        $region92: #{tpu_custom_call.1} parent=67 // pred_fallthru
          _
        %s673 = sand.u32 %s44, 1
        %s674 = scalar_lea.sflag [#allocation12], %s673
        %s675 = sand.u32 %s208, 1
        %s676 = smul.addr %s675, 64
        %s677 = scalar_lea.vmem [#allocation13], %s676
        // Predicated region
        $region93: #{tpu_custom_call.1} parent=67 // pred_check
          %p678 = pneg %p221
        $region94: #{tpu_custom_call.1} parent=67 // pred_check_branch
          %680 = sbr.rel (%p678) target = $region96
        $region95: #{tpu_custom_call.1} parent=67 // pred_region
          %681 = dma.done %s674, 1024
        $region96: #{tpu_custom_call.1} parent=67 // pred_fallthru
          _
        %s682 = sand.u32 %s44, 1
        %s683 = scalar_lea.sflag [#allocation15], %s682
        %s684 = sand.u32 %s234, 1
        %s685 = smul.addr %s684, 64
        %s686 = scalar_lea.vmem [#allocation14], %s685
        // Predicated region
        $region97: #{tpu_custom_call.1} parent=67 // pred_check
          %p687 = pneg %p247
        $region98: #{tpu_custom_call.1} parent=67 // pred_check_branch
          %689 = sbr.rel (%p687) target = $region100
        $region99: #{tpu_custom_call.1} parent=67 // pred_region
          %690 = dma.done %s683, 1024
        $region100: #{tpu_custom_call.1} parent=67 // pred_fallthru
          _
        %s691 = sand.u32 %s44, 1
        %s692 = scalar_lea.sflag [#allocation15], %s691
        %s693 = sand.u32 %s260, 1
        %s694 = smul.addr %s693, 64
        %s695 = scalar_lea.vmem [#allocation16], %s694
        // Predicated region
        $region101: #{tpu_custom_call.1} parent=67 // pred_check
          %p696 = pneg %p273
        $region102: #{tpu_custom_call.1} parent=67 // pred_check_branch
          %698 = sbr.rel (%p696) target = $region104
        $region103: #{tpu_custom_call.1} parent=67 // pred_region
          %699 = dma.done %s692, 1024
        $region104: #{tpu_custom_call.1} parent=67 // pred_fallthru
          _
        %s700 = sand.u32 %s286, 1
        %s701 = scalar_lea.sflag [#allocation18], %s700
        %s702 = sand.u32 %s286, 1
        %s703 = smul.addr %s702, 64
        %s704 = scalar_lea.vmem [#allocation17], %s703
        // Predicated region
        $region105: #{tpu_custom_call.1} parent=67 // pred_check
          %p705 = pneg %p299
        $region106: #{tpu_custom_call.1} parent=67 // pred_check_branch
          %707 = sbr.rel (%p705) target = $region108
        $region107: #{tpu_custom_call.1} parent=67 // pred_region
          %708 = dma.done %s701, 1024
        $region108: #{tpu_custom_call.1} parent=67 // pred_fallthru
          _
        %s709 = sand.u32 %s52, 1
        %s710 = scalar_lea.sflag [#allocation3], %s709
        %s711 = sand.u32 %s52, 1
        %s712 = smul.addr %s711, 32
        %s713 = scalar_lea.vmem [#allocation2], %s712
        %p714 = pneg %p65
        %p715 = pneg %p62
        %s716 = sand.u32 %s44, 1
        %s717 = scalar_lea.sflag [#allocation6], %s716
        %s718 = sand.u32 %s78, 1
        %s719 = smul.addr %s718, 32
        %s720 = scalar_lea.vmem [#allocation5], %s719
        %p721 = pneg %p91
        %p722 = pneg %p88
        %s723 = sand.u32 %s44, 1
        %s724 = scalar_lea.sflag [#allocation6], %s723
        %s725 = sand.u32 %s104, 1
        %s726 = smul.addr %s725, 32
        %s727 = scalar_lea.vmem [#allocation7], %s726
        %p728 = pneg %p117
        %p729 = pneg %p114
        %s730 = sand.u32 %s44, 1
        %s731 = scalar_lea.sflag [#allocation9], %s730
        %s732 = sand.u32 %s130, 1
        %s733 = smul.addr %s732, 32
        %s734 = scalar_lea.vmem [#allocation8], %s733
        %p735 = pneg %p143
        %p736 = pneg %p140
        %s737 = sand.u32 %s44, 1
        %s738 = scalar_lea.sflag [#allocation9], %s737
        %s739 = sand.u32 %s156, 1
        %s740 = smul.addr %s739, 64
        %s741 = scalar_lea.vmem [#allocation10], %s740
        %p742 = pneg %p169
        %p743 = pneg %p166
        %s744 = sand.u32 %s44, 1
        %s745 = scalar_lea.sflag [#allocation12], %s744
        %s746 = sand.u32 %s182, 1
        %s747 = smul.addr %s746, 64
        %s748 = scalar_lea.vmem [#allocation11], %s747
        %p749 = pneg %p195
        %p750 = pneg %p192
        %s751 = sand.u32 %s44, 1
        %s752 = scalar_lea.sflag [#allocation12], %s751
        %s753 = sand.u32 %s208, 1
        %s754 = smul.addr %s753, 64
        %s755 = scalar_lea.vmem [#allocation13], %s754
        %p756 = pneg %p221
        %p757 = pneg %p218
        %s758 = sand.u32 %s44, 1
        %s759 = scalar_lea.sflag [#allocation15], %s758
        %s760 = sand.u32 %s234, 1
        %s761 = smul.addr %s760, 64
        %s762 = scalar_lea.vmem [#allocation14], %s761
        %p763 = pneg %p247
        %p764 = pneg %p244
        %s765 = sand.u32 %s44, 1
        %s766 = scalar_lea.sflag [#allocation15], %s765
        %s767 = sand.u32 %s260, 1
        %s768 = smul.addr %s767, 64
        %s769 = scalar_lea.vmem [#allocation16], %s768
        %p770 = pneg %p273
        %p771 = pneg %p270
        %s772 = sand.u32 %s286, 1
        %s773 = scalar_lea.sflag [#allocation18], %s772
        %s774 = sand.u32 %s286, 1
        %s775 = smul.addr %s774, 64
        %s776 = scalar_lea.vmem [#allocation17], %s775
        %p777 = pneg %p299
        %p778 = pneg %p296
        %p779 = pneg %p320
        %p780 = pneg %p317
        %p781 = pneg %p341
        %p782 = pneg %p338
        %p783 = pneg %p367
        %p784 = pneg %p364
        %s785 = sand.u32 %s354, 1
        %s786 = scalar_lea.sflag [#allocation4], %s785
        %s787 = sand.u32 %s354, 1
        %s788 = smul.addr %s787, 64
        %s789 = scalar_lea.vmem [#allocation19], %s788
        %s790 = smul.u32 4, %s44
        %s791 = smul.u32 4, %s44
        %s792 = smul.u32 4, %s44
        %s793 = smul.u32 4, %s44
        %s794 = smul.u32 4, %s44
        %s795 = smul.u32 4, %s44
        %s796 = smul.u32 4, %s44
        %s797 = smul.u32 4, %s44
        %s798 = smul.u32 4, %s44
        %s799 = smul.u32 4, %s44
        %s800 = smul.u32 4, %s44
        %v802 = vld [vmem:[%s623] sm:$0xf]
        %v803 = vld [vmem:[%s623 + $0x4] sm:$0xf]
        %v804 = vld [vmem:[%s623 + $0x8] sm:$0xf]
        %v805 = vld [vmem:[%s623 + $0xc] sm:$0xf]
        %v806 = vld [vmem:[%s623 + $0x10] sm:$0xf]
        %v807 = vld [vmem:[%s623 + $0x14] sm:$0xf]
        %v808 = vld [vmem:[%s623 + $0x18] sm:$0xf]
        %v809 = vld [vmem:[%s623 + $0x1c] sm:$0xf]
        %v810 = vld [vmem:[%s632] sm:$0xf]
        %v811 = vld [vmem:[%s632 + $0x4] sm:$0xf]
        %v812 = vld [vmem:[%s632 + $0x8] sm:$0xf]
        %v813 = vld [vmem:[%s632 + $0xc] sm:$0xf]
        %v814 = vld [vmem:[%s632 + $0x10] sm:$0xf]
        %v815 = vld [vmem:[%s632 + $0x14] sm:$0xf]
        %v816 = vld [vmem:[%s632 + $0x18] sm:$0xf]
        %v817 = vld [vmem:[%s632 + $0x1c] sm:$0xf]
        %v818 = vld [vmem:[%s641] sm:$0xf]
        %v819 = vld [vmem:[%s641 + $0x4] sm:$0xf]
        %v820 = vld [vmem:[%s641 + $0x8] sm:$0xf]
        %v821 = vld [vmem:[%s641 + $0xc] sm:$0xf]
        %v822 = vld [vmem:[%s641 + $0x10] sm:$0xf]
        %v823 = vld [vmem:[%s641 + $0x14] sm:$0xf]
        %v824 = vld [vmem:[%s641 + $0x18] sm:$0xf]
        %v825 = vld [vmem:[%s641 + $0x1c] sm:$0xf]
        %v826 = vld [vmem:[%s650] sm:$0xf]
        %v827 = vld [vmem:[%s650 + $0x4] sm:$0xf]
        %v828 = vld [vmem:[%s650 + $0x8] sm:$0xf]
        %v829 = vld [vmem:[%s650 + $0xc] sm:$0xf]
        %v830 = vld [vmem:[%s650 + $0x10] sm:$0xf]
        %v831 = vld [vmem:[%s650 + $0x14] sm:$0xf]
        %v832 = vld [vmem:[%s650 + $0x18] sm:$0xf]
        %v833 = vld [vmem:[%s650 + $0x1c] sm:$0xf]
        %v834 = vld [vmem:[%s659] sm:$0xf]
        %v835 = vld [vmem:[%s659 + $0x4] sm:$0xf]
        %v836 = vld [vmem:[%s659 + $0x8] sm:$0xf]
        %v837 = vld [vmem:[%s659 + $0xc] sm:$0xf]
        %v838 = vld [vmem:[%s659 + $0x10] sm:$0xf]
        %v839 = vld [vmem:[%s659 + $0x14] sm:$0xf]
        %v840 = vld [vmem:[%s659 + $0x18] sm:$0xf]
        %v841 = vld [vmem:[%s659 + $0x1c] sm:$0xf]
        %v842 = vld [vmem:[%s659 + $0x20] sm:$0xf]
        %v843 = vld [vmem:[%s659 + $0x24] sm:$0xf]
        %v844 = vld [vmem:[%s659 + $0x28] sm:$0xf]
        %v845 = vld [vmem:[%s659 + $0x2c] sm:$0xf]
        %v846 = vld [vmem:[%s659 + $0x30] sm:$0xf]
        %v847 = vld [vmem:[%s659 + $0x34] sm:$0xf]
        %v848 = vld [vmem:[%s659 + $0x38] sm:$0xf]
        %v849 = vld [vmem:[%s659 + $0x3c] sm:$0xf]
        %v850 = vld [vmem:[%s668] sm:$0xf]
        %v851 = vld [vmem:[%s668 + $0x4] sm:$0xf]
        %v852 = vld [vmem:[%s668 + $0x8] sm:$0xf]
        %v853 = vld [vmem:[%s668 + $0xc] sm:$0xf]
        %v854 = vld [vmem:[%s668 + $0x10] sm:$0xf]
        %v855 = vld [vmem:[%s668 + $0x14] sm:$0xf]
        %v856 = vld [vmem:[%s668 + $0x18] sm:$0xf]
        %v857 = vld [vmem:[%s668 + $0x1c] sm:$0xf]
        %v858 = vld [vmem:[%s668 + $0x20] sm:$0xf]
        %v859 = vld [vmem:[%s668 + $0x24] sm:$0xf]
        %v860 = vld [vmem:[%s668 + $0x28] sm:$0xf]
        %v861 = vld [vmem:[%s668 + $0x2c] sm:$0xf]
        %v862 = vld [vmem:[%s668 + $0x30] sm:$0xf]
        %v863 = vld [vmem:[%s668 + $0x34] sm:$0xf]
        %v864 = vld [vmem:[%s668 + $0x38] sm:$0xf]
        %v865 = vld [vmem:[%s668 + $0x3c] sm:$0xf]
        %v868 = vunpack.c.l.b16 %v802
        %v869 = vunpack.c.l.b16 %v803
        %v870 = vpack.c.b16 %v869, %v868
        %v875 = vunpack.c.l.b16 %v834
        %v876 = vunpack.c.l.b16 %v835
        %v877 = vunpack.c.l.b16 %v836
        %v878 = vunpack.c.l.b16 %v837
        %v879 = vpack.c.b16 %v876, %v875
        %v880 = vpack.c.b16 %v878, %v877
        %vm883 = vcmask 261120
        %v885 = vsel %vm883, %v870, 0
        %887 = vmatprep.subr.bf16.mxu0 0
        %888 = vmatpush1.bf16.msra.mxu0 %v879
        %889 = vmatprep.subr.bf16.mxu0 0
        %890 = vmatpush1.bf16.msra.mxu0 %v880
        %891 = vmatprep.subr.bf16.mxu0 0
        %892 = vmatpush1.bf16.msra.mxu0 0
        %893 = vmatprep.subr.bf16.mxu0 0
        %894 = vmatpush1.bf16.msra.mxu0 0
        %895 = vmatprep.subr.bf16.mxu0 0
        %896 = vmatpush1.bf16.msra.mxu0 0
        %897 = vmatprep.subr.bf16.mxu0 0
        %898 = vmatpush1.bf16.msra.mxu0 0
        %899 = vmatprep.subr.bf16.mxu0 0
        %900 = vmatpush1.bf16.msra.mxu0 0
        %901 = vmatprep.subr.bf16.mxu0 0
        %902 = vmatpush1.bf16.msra.mxu0 0
        %903 = vmatprep.subr.bf16.mxu0 0
        %904 = vmatpush1.bf16.msra.mxu0 0
        %905 = vmatprep.subr.bf16.mxu0 0
        %906 = vmatpush1.bf16.msra.mxu0 0
        %907 = vmatprep.subr.bf16.mxu0 0
        %908 = vmatpush1.bf16.msra.mxu0 0
        %909 = vmatprep.subr.bf16.mxu0 0
        %910 = vmatpush1.bf16.msra.mxu0 0
        %911 = vmatprep.subr.bf16.mxu0 0
        %912 = vmatpush1.bf16.msra.mxu0 0
        %913 = vmatprep.subr.bf16.mxu0 0
        %914 = vmatpush1.bf16.msra.mxu0 0
        %915 = vmatprep.subr.bf16.mxu0 0
        %916 = vmatpush1.bf16.msra.mxu0 0
        %917 = vmatprep.subr.bf16.mxu0 0
        %918 = vmatpush1.bf16.msra.mxu0 0
        %919 = vmatprep.mubr.bf16.mxu0 0
        %920 = vmatmul.mubr.bf16.gmra.mrb[0].mxu0 %v885
        %v921 = vpop.f32.mrb[0].mxu0
        %v922 = vadd.f32 0.0, %v921
        %v923 = vpop.f32.mrb[0].mxu0
        %v924 = vpop.f32.mrb[0].mxu0
        %v925 = vadd.f32 0.0, %v924
        %v926 = vpop.f32.mrb[0].mxu0
        %927 = vdwg.mxu0
        %v930 = vunpack.c.l.b16 %v804
        %v931 = vunpack.c.l.b16 %v805
        %v932 = vpack.c.b16 %v931, %v930
        %v937 = vunpack.c.l.b16 %v838
        %v938 = vunpack.c.l.b16 %v839
        %v939 = vunpack.c.l.b16 %v840
        %v940 = vunpack.c.l.b16 %v841
        %v941 = vpack.c.b16 %v938, %v937
        %v942 = vpack.c.b16 %v940, %v939
        %v946 = vsel %vm883, %v932, 0
        %948 = vmatprep.subr.bf16.mxu0 0
        %949 = vmatpush1.bf16.msra.mxu0 %v941
        %950 = vmatprep.subr.bf16.mxu0 0
        %951 = vmatpush1.bf16.msra.mxu0 %v942
        %952 = vmatprep.subr.bf16.mxu0 0
        %953 = vmatpush1.bf16.msra.mxu0 0
        %954 = vmatprep.subr.bf16.mxu0 0
        %955 = vmatpush1.bf16.msra.mxu0 0
        %956 = vmatprep.subr.bf16.mxu0 0
        %957 = vmatpush1.bf16.msra.mxu0 0
        %958 = vmatprep.subr.bf16.mxu0 0
        %959 = vmatpush1.bf16.msra.mxu0 0
        %960 = vmatprep.subr.bf16.mxu0 0
        %961 = vmatpush1.bf16.msra.mxu0 0
        %962 = vmatprep.subr.bf16.mxu0 0
        %963 = vmatpush1.bf16.msra.mxu0 0
        %964 = vmatprep.subr.bf16.mxu0 0
        %965 = vmatpush1.bf16.msra.mxu0 0
        %966 = vmatprep.subr.bf16.mxu0 0
        %967 = vmatpush1.bf16.msra.mxu0 0
        %968 = vmatprep.subr.bf16.mxu0 0
        %969 = vmatpush1.bf16.msra.mxu0 0
        %970 = vmatprep.subr.bf16.mxu0 0
        %971 = vmatpush1.bf16.msra.mxu0 0
        %972 = vmatprep.subr.bf16.mxu0 0
        %973 = vmatpush1.bf16.msra.mxu0 0
        %974 = vmatprep.subr.bf16.mxu0 0
        %975 = vmatpush1.bf16.msra.mxu0 0
        %976 = vmatprep.subr.bf16.mxu0 0
        %977 = vmatpush1.bf16.msra.mxu0 0
        %978 = vmatprep.subr.bf16.mxu0 0
        %979 = vmatpush1.bf16.msra.mxu0 0
        %980 = vmatprep.mubr.bf16.mxu0 0
        %981 = vmatmul.mubr.bf16.gmra.mrb[0].mxu0 %v946
        %v982 = vpop.f32.mrb[0].mxu0
        %v983 = vadd.f32 0.0, %v982
        %v984 = vpop.f32.mrb[0].mxu0
        %v985 = vpop.f32.mrb[0].mxu0
        %v986 = vadd.f32 0.0, %v985
        %v987 = vpop.f32.mrb[0].mxu0
        %988 = vdwg.mxu0
        %v991 = vunpack.c.l.b16 %v806
        %v992 = vunpack.c.l.b16 %v807
        %v993 = vpack.c.b16 %v992, %v991
        %v998 = vunpack.c.l.b16 %v842
        %v999 = vunpack.c.l.b16 %v843
        %v1000 = vunpack.c.l.b16 %v844
        %v1001 = vunpack.c.l.b16 %v845
        %v1002 = vpack.c.b16 %v999, %v998
        %v1003 = vpack.c.b16 %v1001, %v1000
        %v1007 = vsel %vm883, %v993, 0
        %1009 = vmatprep.subr.bf16.mxu0 0
        %1010 = vmatpush1.bf16.msra.mxu0 %v1002
        %1011 = vmatprep.subr.bf16.mxu0 0
        %1012 = vmatpush1.bf16.msra.mxu0 %v1003
        %1013 = vmatprep.subr.bf16.mxu0 0
        %1014 = vmatpush1.bf16.msra.mxu0 0
        %1015 = vmatprep.subr.bf16.mxu0 0
        %1016 = vmatpush1.bf16.msra.mxu0 0
        %1017 = vmatprep.subr.bf16.mxu0 0
        %1018 = vmatpush1.bf16.msra.mxu0 0
        %1019 = vmatprep.subr.bf16.mxu0 0
        %1020 = vmatpush1.bf16.msra.mxu0 0
        %1021 = vmatprep.subr.bf16.mxu0 0
        %1022 = vmatpush1.bf16.msra.mxu0 0
        %1023 = vmatprep.subr.bf16.mxu0 0
        %1024 = vmatpush1.bf16.msra.mxu0 0
        %1025 = vmatprep.subr.bf16.mxu0 0
        %1026 = vmatpush1.bf16.msra.mxu0 0
        %1027 = vmatprep.subr.bf16.mxu0 0
        %1028 = vmatpush1.bf16.msra.mxu0 0
        %1029 = vmatprep.subr.bf16.mxu0 0
        %1030 = vmatpush1.bf16.msra.mxu0 0
        %1031 = vmatprep.subr.bf16.mxu0 0
        %1032 = vmatpush1.bf16.msra.mxu0 0
        %1033 = vmatprep.subr.bf16.mxu0 0
        %1034 = vmatpush1.bf16.msra.mxu0 0
        %1035 = vmatprep.subr.bf16.mxu0 0
        %1036 = vmatpush1.bf16.msra.mxu0 0
        %1037 = vmatprep.subr.bf16.mxu0 0
        %1038 = vmatpush1.bf16.msra.mxu0 0
        %1039 = vmatprep.subr.bf16.mxu0 0
        %1040 = vmatpush1.bf16.msra.mxu0 0
        %1041 = vmatprep.mubr.bf16.mxu0 0
        %1042 = vmatmul.mubr.bf16.gmra.mrb[0].mxu0 %v1007
        %v1043 = vpop.f32.mrb[0].mxu0
        %v1044 = vadd.f32 0.0, %v1043
        %v1045 = vpop.f32.mrb[0].mxu0
        %v1046 = vpop.f32.mrb[0].mxu0
        %v1047 = vadd.f32 0.0, %v1046
        %v1048 = vpop.f32.mrb[0].mxu0
        %1049 = vdwg.mxu0
        %v1052 = vunpack.c.l.b16 %v808
        %v1053 = vunpack.c.l.b16 %v809
        %v1054 = vpack.c.b16 %v1053, %v1052
        %v1059 = vunpack.c.l.b16 %v846
        %v1060 = vunpack.c.l.b16 %v847
        %v1061 = vunpack.c.l.b16 %v848
        %v1062 = vunpack.c.l.b16 %v849
        %v1063 = vpack.c.b16 %v1060, %v1059
        %v1064 = vpack.c.b16 %v1062, %v1061
        %v1068 = vsel %vm883, %v1054, 0
        %1070 = vmatprep.subr.bf16.mxu0 0
        %1071 = vmatpush1.bf16.msra.mxu0 %v1063
        %1072 = vmatprep.subr.bf16.mxu0 0
        %1073 = vmatpush1.bf16.msra.mxu0 %v1064
        %1074 = vmatprep.subr.bf16.mxu0 0
        %1075 = vmatpush1.bf16.msra.mxu0 0
        %1076 = vmatprep.subr.bf16.mxu0 0
        %1077 = vmatpush1.bf16.msra.mxu0 0
        %1078 = vmatprep.subr.bf16.mxu0 0
        %1079 = vmatpush1.bf16.msra.mxu0 0
        %1080 = vmatprep.subr.bf16.mxu0 0
        %1081 = vmatpush1.bf16.msra.mxu0 0
        %1082 = vmatprep.subr.bf16.mxu0 0
        %1083 = vmatpush1.bf16.msra.mxu0 0
        %1084 = vmatprep.subr.bf16.mxu0 0
        %1085 = vmatpush1.bf16.msra.mxu0 0
        %1086 = vmatprep.subr.bf16.mxu0 0
        %1087 = vmatpush1.bf16.msra.mxu0 0
        %1088 = vmatprep.subr.bf16.mxu0 0
        %1089 = vmatpush1.bf16.msra.mxu0 0
        %1090 = vmatprep.subr.bf16.mxu0 0
        %1091 = vmatpush1.bf16.msra.mxu0 0
        %1092 = vmatprep.subr.bf16.mxu0 0
        %1093 = vmatpush1.bf16.msra.mxu0 0
        %1094 = vmatprep.subr.bf16.mxu0 0
        %1095 = vmatpush1.bf16.msra.mxu0 0
        %1096 = vmatprep.subr.bf16.mxu0 0
        %1097 = vmatpush1.bf16.msra.mxu0 0
        %1098 = vmatprep.subr.bf16.mxu0 0
        %1099 = vmatpush1.bf16.msra.mxu0 0
        %1100 = vmatprep.subr.bf16.mxu0 0
        %1101 = vmatpush1.bf16.msra.mxu0 0
        %1102 = vmatprep.mubr.bf16.mxu0 0
        %1103 = vmatmul.mubr.bf16.gmra.mrb[0].mxu0 %v1068
        %v1104 = vpop.f32.mrb[0].mxu0
        %v1105 = vadd.f32 0.0, %v1104
        %v1106 = vpop.f32.mrb[0].mxu0
        %v1107 = vpop.f32.mrb[0].mxu0
        %v1108 = vadd.f32 0.0, %v1107
        %v1109 = vpop.f32.mrb[0].mxu0
        %1110 = vdwg.mxu0
        %v1111 = vpack.c.bf16 %v925, %v922
        %v1112 = vpack.c.bf16 %v986, %v983
        %v1113 = vpack.c.bf16 %v1047, %v1044
        %v1114 = vpack.c.bf16 %v1108, %v1105
        %v1117 = vunpack.c.l.b16 %v810
        %v1118 = vunpack.c.l.b16 %v811
        %v1119 = vpack.c.b16 %v1118, %v1117
        %vm1120 = vcmask 130048
        %v1122 = vsel %vm1120, %v1119, 0
        %1124 = vmatprep.subr.bf16.mxu0 0
        %1125 = vmatpush1.bf16.msra.mxu0 %v1111
        %1126 = vmatprep.subr.bf16.mxu0 0
        %1127 = vmatpush1.bf16.msra.mxu0 0
        %1128 = vmatprep.subr.bf16.mxu0 0
        %1129 = vmatpush1.bf16.msra.mxu0 0
        %1130 = vmatprep.subr.bf16.mxu0 0
        %1131 = vmatpush1.bf16.msra.mxu0 0
        %1132 = vmatprep.subr.bf16.mxu0 0
        %1133 = vmatpush1.bf16.msra.mxu0 0
        %1134 = vmatprep.subr.bf16.mxu0 0
        %1135 = vmatpush1.bf16.msra.mxu0 0
        %1136 = vmatprep.subr.bf16.mxu0 0
        %1137 = vmatpush1.bf16.msra.mxu0 0
        %1138 = vmatprep.subr.bf16.mxu0 0
        %1139 = vmatpush1.bf16.msra.mxu0 0
        %1140 = vmatprep.subr.bf16.mxu0 0
        %1141 = vmatpush1.bf16.msra.mxu0 0
        %1142 = vmatprep.subr.bf16.mxu0 0
        %1143 = vmatpush1.bf16.msra.mxu0 0
        %1144 = vmatprep.subr.bf16.mxu0 0
        %1145 = vmatpush1.bf16.msra.mxu0 0
        %1146 = vmatprep.subr.bf16.mxu0 0
        %1147 = vmatpush1.bf16.msra.mxu0 0
        %1148 = vmatprep.subr.bf16.mxu0 0
        %1149 = vmatpush1.bf16.msra.mxu0 0
        %1150 = vmatprep.subr.bf16.mxu0 0
        %1151 = vmatpush1.bf16.msra.mxu0 0
        %1152 = vmatprep.subr.bf16.mxu0 0
        %1153 = vmatpush1.bf16.msra.mxu0 0
        %1154 = vmatprep.subr.bf16.mxu0 0
        %1155 = vmatpush1.bf16.msra.mxu0 0
        %1156 = vmatprep.mubr.bf16.mxu0 0
        %1157 = vmatmul.mubr.bf16.gmra.mrb[0].mxu0 %v1122
        %v1158 = vpop.f32.mrb[0].mxu0
        %v1159 = vadd.f32 0.0, %v1158
        %v1160 = vpop.f32.mrb[0].mxu0
        %v1161 = vpop.f32.mrb[0].mxu0
        %v1162 = vadd.f32 0.0, %v1161
        %v1163 = vpop.f32.mrb[0].mxu0
        %1164 = vdwg.mxu0
        %v1167 = vunpack.c.l.b16 %v812
        %v1168 = vunpack.c.l.b16 %v813
        %v1169 = vpack.c.b16 %v1168, %v1167
        %v1171 = vsel %vm1120, %v1169, 0
        %1173 = vmatprep.subr.bf16.mxu0 0
        %1174 = vmatpush1.bf16.msra.mxu0 %v1112
        %1175 = vmatprep.subr.bf16.mxu0 0
        %1176 = vmatpush1.bf16.msra.mxu0 0
        %1177 = vmatprep.subr.bf16.mxu0 0
        %1178 = vmatpush1.bf16.msra.mxu0 0
        %1179 = vmatprep.subr.bf16.mxu0 0
        %1180 = vmatpush1.bf16.msra.mxu0 0
        %1181 = vmatprep.subr.bf16.mxu0 0
        %1182 = vmatpush1.bf16.msra.mxu0 0
        %1183 = vmatprep.subr.bf16.mxu0 0
        %1184 = vmatpush1.bf16.msra.mxu0 0
        %1185 = vmatprep.subr.bf16.mxu0 0
        %1186 = vmatpush1.bf16.msra.mxu0 0
        %1187 = vmatprep.subr.bf16.mxu0 0
        %1188 = vmatpush1.bf16.msra.mxu0 0
        %1189 = vmatprep.subr.bf16.mxu0 0
        %1190 = vmatpush1.bf16.msra.mxu0 0
        %1191 = vmatprep.subr.bf16.mxu0 0
        %1192 = vmatpush1.bf16.msra.mxu0 0
        %1193 = vmatprep.subr.bf16.mxu0 0
        %1194 = vmatpush1.bf16.msra.mxu0 0
        %1195 = vmatprep.subr.bf16.mxu0 0
        %1196 = vmatpush1.bf16.msra.mxu0 0
        %1197 = vmatprep.subr.bf16.mxu0 0
        %1198 = vmatpush1.bf16.msra.mxu0 0
        %1199 = vmatprep.subr.bf16.mxu0 0
        %1200 = vmatpush1.bf16.msra.mxu0 0
        %1201 = vmatprep.subr.bf16.mxu0 0
        %1202 = vmatpush1.bf16.msra.mxu0 0
        %1203 = vmatprep.subr.bf16.mxu0 0
        %1204 = vmatpush1.bf16.msra.mxu0 0
        %1205 = vmatprep.mubr.bf16.mxu0 0
        %1206 = vmatmul.mubr.bf16.gmra.mrb[0].mxu0 %v1171
        %v1207 = vpop.f32.mrb[0].mxu0
        %v1208 = vadd.f32 0.0, %v1207
        %v1209 = vpop.f32.mrb[0].mxu0
        %v1210 = vpop.f32.mrb[0].mxu0
        %v1211 = vadd.f32 0.0, %v1210
        %v1212 = vpop.f32.mrb[0].mxu0
        %1213 = vdwg.mxu0
        %v1216 = vunpack.c.l.b16 %v814
        %v1217 = vunpack.c.l.b16 %v815
        %v1218 = vpack.c.b16 %v1217, %v1216
        %v1220 = vsel %vm1120, %v1218, 0
        %1222 = vmatprep.subr.bf16.mxu0 0
        %1223 = vmatpush1.bf16.msra.mxu0 %v1113
        %1224 = vmatprep.subr.bf16.mxu0 0
        %1225 = vmatpush1.bf16.msra.mxu0 0
        %1226 = vmatprep.subr.bf16.mxu0 0
        %1227 = vmatpush1.bf16.msra.mxu0 0
        %1228 = vmatprep.subr.bf16.mxu0 0
        %1229 = vmatpush1.bf16.msra.mxu0 0
        %1230 = vmatprep.subr.bf16.mxu0 0
        %1231 = vmatpush1.bf16.msra.mxu0 0
        %1232 = vmatprep.subr.bf16.mxu0 0
        %1233 = vmatpush1.bf16.msra.mxu0 0
        %1234 = vmatprep.subr.bf16.mxu0 0
        %1235 = vmatpush1.bf16.msra.mxu0 0
        %1236 = vmatprep.subr.bf16.mxu0 0
        %1237 = vmatpush1.bf16.msra.mxu0 0
        %1238 = vmatprep.subr.bf16.mxu0 0
        %1239 = vmatpush1.bf16.msra.mxu0 0
        %1240 = vmatprep.subr.bf16.mxu0 0
        %1241 = vmatpush1.bf16.msra.mxu0 0
        %1242 = vmatprep.subr.bf16.mxu0 0
        %1243 = vmatpush1.bf16.msra.mxu0 0
        %1244 = vmatprep.subr.bf16.mxu0 0
        %1245 = vmatpush1.bf16.msra.mxu0 0
        %1246 = vmatprep.subr.bf16.mxu0 0
        %1247 = vmatpush1.bf16.msra.mxu0 0
        %1248 = vmatprep.subr.bf16.mxu0 0
        %1249 = vmatpush1.bf16.msra.mxu0 0
        %1250 = vmatprep.subr.bf16.mxu0 0
        %1251 = vmatpush1.bf16.msra.mxu0 0
        %1252 = vmatprep.subr.bf16.mxu0 0
        %1253 = vmatpush1.bf16.msra.mxu0 0
        %1254 = vmatprep.mubr.bf16.mxu0 0
        %1255 = vmatmul.mubr.bf16.gmra.mrb[0].mxu0 %v1220
        %v1256 = vpop.f32.mrb[0].mxu0
        %v1257 = vadd.f32 0.0, %v1256
        %v1258 = vpop.f32.mrb[0].mxu0
        %v1259 = vpop.f32.mrb[0].mxu0
        %v1260 = vadd.f32 0.0, %v1259
        %v1261 = vpop.f32.mrb[0].mxu0
        %1262 = vdwg.mxu0
        %v1265 = vunpack.c.l.b16 %v816
        %v1266 = vunpack.c.l.b16 %v817
        %v1267 = vpack.c.b16 %v1266, %v1265
        %v1269 = vsel %vm1120, %v1267, 0
        %1271 = vmatprep.subr.bf16.mxu0 0
        %1272 = vmatpush1.bf16.msra.mxu0 %v1114
        %1273 = vmatprep.subr.bf16.mxu0 0
        %1274 = vmatpush1.bf16.msra.mxu0 0
        %1275 = vmatprep.subr.bf16.mxu0 0
        %1276 = vmatpush1.bf16.msra.mxu0 0
        %1277 = vmatprep.subr.bf16.mxu0 0
        %1278 = vmatpush1.bf16.msra.mxu0 0
        %1279 = vmatprep.subr.bf16.mxu0 0
        %1280 = vmatpush1.bf16.msra.mxu0 0
        %1281 = vmatprep.subr.bf16.mxu0 0
        %1282 = vmatpush1.bf16.msra.mxu0 0
        %1283 = vmatprep.subr.bf16.mxu0 0
        %1284 = vmatpush1.bf16.msra.mxu0 0
        %1285 = vmatprep.subr.bf16.mxu0 0
        %1286 = vmatpush1.bf16.msra.mxu0 0
        %1287 = vmatprep.subr.bf16.mxu0 0
        %1288 = vmatpush1.bf16.msra.mxu0 0
        %1289 = vmatprep.subr.bf16.mxu0 0
        %1290 = vmatpush1.bf16.msra.mxu0 0
        %1291 = vmatprep.subr.bf16.mxu0 0
        %1292 = vmatpush1.bf16.msra.mxu0 0
        %1293 = vmatprep.subr.bf16.mxu0 0
        %1294 = vmatpush1.bf16.msra.mxu0 0
        %1295 = vmatprep.subr.bf16.mxu0 0
        %1296 = vmatpush1.bf16.msra.mxu0 0
        %1297 = vmatprep.subr.bf16.mxu0 0
        %1298 = vmatpush1.bf16.msra.mxu0 0
        %1299 = vmatprep.subr.bf16.mxu0 0
        %1300 = vmatpush1.bf16.msra.mxu0 0
        %1301 = vmatprep.subr.bf16.mxu0 0
        %1302 = vmatpush1.bf16.msra.mxu0 0
        %1303 = vmatprep.mubr.bf16.mxu0 0
        %1304 = vmatmul.mubr.bf16.gmra.mrb[0].mxu0 %v1269
        %v1305 = vpop.f32.mrb[0].mxu0
        %v1306 = vadd.f32 0.0, %v1305
        %v1307 = vpop.f32.mrb[0].mxu0
        %v1308 = vpop.f32.mrb[0].mxu0
        %v1309 = vadd.f32 0.0, %v1308
        %v1310 = vpop.f32.mrb[0].mxu0
        %1311 = vdwg.mxu0
        %v1312 = vmax.f32 %v1159, 0.0
        %v1313 = vmax.f32 %v1162, 0.0
        %v1314 = vmax.f32 %v1208, 0.0
        %v1315 = vmax.f32 %v1211, 0.0
        %v1316 = vmax.f32 %v1257, 0.0
        %v1317 = vmax.f32 %v1260, 0.0
        %v1318 = vmax.f32 %v1306, 0.0
        %v1319 = vmax.f32 %v1309, 0.0
        %v1320 = vpack.c.bf16 %v1313, %v1312
        %v1321 = vpack.c.bf16 %v1315, %v1314
        %v1322 = vpack.c.bf16 %v1317, %v1316
        %v1323 = vpack.c.bf16 %v1319, %v1318
        %v1328 = vunpack.c.l.b16 %v850
        %v1329 = vunpack.c.l.b16 %v851
        %v1330 = vunpack.c.l.b16 %v852
        %v1331 = vunpack.c.l.b16 %v853
        %v1332 = vpack.c.b16 %v1329, %v1328
        %v1333 = vpack.c.b16 %v1331, %v1330
        %v1337 = vsel %vm883, %v1320, 0
        %1339 = vmatprep.subr.bf16.mxu0 0
        %1340 = vmatpush1.bf16.msra.mxu0 %v1332
        %1341 = vmatprep.subr.bf16.mxu0 0
        %1342 = vmatpush1.bf16.msra.mxu0 %v1333
        %1343 = vmatprep.subr.bf16.mxu0 0
        %1344 = vmatpush1.bf16.msra.mxu0 0
        %1345 = vmatprep.subr.bf16.mxu0 0
        %1346 = vmatpush1.bf16.msra.mxu0 0
        %1347 = vmatprep.subr.bf16.mxu0 0
        %1348 = vmatpush1.bf16.msra.mxu0 0
        %1349 = vmatprep.subr.bf16.mxu0 0
        %1350 = vmatpush1.bf16.msra.mxu0 0
        %1351 = vmatprep.subr.bf16.mxu0 0
        %1352 = vmatpush1.bf16.msra.mxu0 0
        %1353 = vmatprep.subr.bf16.mxu0 0
        %1354 = vmatpush1.bf16.msra.mxu0 0
        %1355 = vmatprep.subr.bf16.mxu0 0
        %1356 = vmatpush1.bf16.msra.mxu0 0
        %1357 = vmatprep.subr.bf16.mxu0 0
        %1358 = vmatpush1.bf16.msra.mxu0 0
        %1359 = vmatprep.subr.bf16.mxu0 0
        %1360 = vmatpush1.bf16.msra.mxu0 0
        %1361 = vmatprep.subr.bf16.mxu0 0
        %1362 = vmatpush1.bf16.msra.mxu0 0
        %1363 = vmatprep.subr.bf16.mxu0 0
        %1364 = vmatpush1.bf16.msra.mxu0 0
        %1365 = vmatprep.subr.bf16.mxu0 0
        %1366 = vmatpush1.bf16.msra.mxu0 0
        %1367 = vmatprep.subr.bf16.mxu0 0
        %1368 = vmatpush1.bf16.msra.mxu0 0
        %1369 = vmatprep.subr.bf16.mxu0 0
        %1370 = vmatpush1.bf16.msra.mxu0 0
        %1371 = vmatprep.mubr.bf16.mxu0 0
        %1372 = vmatmul.mubr.bf16.gmra.mrb[0].mxu0 %v1337
        %v1373 = vpop.f32.mrb[0].mxu0
        %v1374 = vadd.f32 0.0, %v1373
        %v1375 = vpop.f32.mrb[0].mxu0
        %v1376 = vpop.f32.mrb[0].mxu0
        %v1377 = vadd.f32 0.0, %v1376
        %v1378 = vpop.f32.mrb[0].mxu0
        %1379 = vdwg.mxu0
        %v1384 = vunpack.c.l.b16 %v854
        %v1385 = vunpack.c.l.b16 %v855
        %v1386 = vunpack.c.l.b16 %v856
        %v1387 = vunpack.c.l.b16 %v857
        %v1388 = vpack.c.b16 %v1385, %v1384
        %v1389 = vpack.c.b16 %v1387, %v1386
        %v1393 = vsel %vm883, %v1321, 0
        %1395 = vmatprep.subr.bf16.mxu0 0
        %1396 = vmatpush1.bf16.msra.mxu0 %v1388
        %1397 = vmatprep.subr.bf16.mxu0 0
        %1398 = vmatpush1.bf16.msra.mxu0 %v1389
        %1399 = vmatprep.subr.bf16.mxu0 0
        %1400 = vmatpush1.bf16.msra.mxu0 0
        %1401 = vmatprep.subr.bf16.mxu0 0
        %1402 = vmatpush1.bf16.msra.mxu0 0
        %1403 = vmatprep.subr.bf16.mxu0 0
        %1404 = vmatpush1.bf16.msra.mxu0 0
        %1405 = vmatprep.subr.bf16.mxu0 0
        %1406 = vmatpush1.bf16.msra.mxu0 0
        %1407 = vmatprep.subr.bf16.mxu0 0
        %1408 = vmatpush1.bf16.msra.mxu0 0
        %1409 = vmatprep.subr.bf16.mxu0 0
        %1410 = vmatpush1.bf16.msra.mxu0 0
        %1411 = vmatprep.subr.bf16.mxu0 0
        %1412 = vmatpush1.bf16.msra.mxu0 0
        %1413 = vmatprep.subr.bf16.mxu0 0
        %1414 = vmatpush1.bf16.msra.mxu0 0
        %1415 = vmatprep.subr.bf16.mxu0 0
        %1416 = vmatpush1.bf16.msra.mxu0 0
        %1417 = vmatprep.subr.bf16.mxu0 0
        %1418 = vmatpush1.bf16.msra.mxu0 0
        %1419 = vmatprep.subr.bf16.mxu0 0
        %1420 = vmatpush1.bf16.msra.mxu0 0
        %1421 = vmatprep.subr.bf16.mxu0 0
        %1422 = vmatpush1.bf16.msra.mxu0 0
        %1423 = vmatprep.subr.bf16.mxu0 0
        %1424 = vmatpush1.bf16.msra.mxu0 0
        %1425 = vmatprep.subr.bf16.mxu0 0
        %1426 = vmatpush1.bf16.msra.mxu0 0
        %1427 = vmatprep.mubr.bf16.mxu0 0
        %1428 = vmatmul.mubr.bf16.gmra.mrb[0].mxu0 %v1393
        %v1429 = vpop.f32.mrb[0].mxu0
        %v1430 = vadd.f32 0.0, %v1429
        %v1431 = vpop.f32.mrb[0].mxu0
        %v1432 = vpop.f32.mrb[0].mxu0
        %v1433 = vadd.f32 0.0, %v1432
        %v1434 = vpop.f32.mrb[0].mxu0
        %1435 = vdwg.mxu0
        %v1440 = vunpack.c.l.b16 %v858
        %v1441 = vunpack.c.l.b16 %v859
        %v1442 = vunpack.c.l.b16 %v860
        %v1443 = vunpack.c.l.b16 %v861
        %v1444 = vpack.c.b16 %v1441, %v1440
        %v1445 = vpack.c.b16 %v1443, %v1442
        %v1449 = vsel %vm883, %v1322, 0
        %1451 = vmatprep.subr.bf16.mxu0 0
        %1452 = vmatpush1.bf16.msra.mxu0 %v1444
        %1453 = vmatprep.subr.bf16.mxu0 0
        %1454 = vmatpush1.bf16.msra.mxu0 %v1445
        %1455 = vmatprep.subr.bf16.mxu0 0
        %1456 = vmatpush1.bf16.msra.mxu0 0
        %1457 = vmatprep.subr.bf16.mxu0 0
        %1458 = vmatpush1.bf16.msra.mxu0 0
        %1459 = vmatprep.subr.bf16.mxu0 0
        %1460 = vmatpush1.bf16.msra.mxu0 0
        %1461 = vmatprep.subr.bf16.mxu0 0
        %1462 = vmatpush1.bf16.msra.mxu0 0
        %1463 = vmatprep.subr.bf16.mxu0 0
        %1464 = vmatpush1.bf16.msra.mxu0 0
        %1465 = vmatprep.subr.bf16.mxu0 0
        %1466 = vmatpush1.bf16.msra.mxu0 0
        %1467 = vmatprep.subr.bf16.mxu0 0
        %1468 = vmatpush1.bf16.msra.mxu0 0
        %1469 = vmatprep.subr.bf16.mxu0 0
        %1470 = vmatpush1.bf16.msra.mxu0 0
        %1471 = vmatprep.subr.bf16.mxu0 0
        %1472 = vmatpush1.bf16.msra.mxu0 0
        %1473 = vmatprep.subr.bf16.mxu0 0
        %1474 = vmatpush1.bf16.msra.mxu0 0
        %1475 = vmatprep.subr.bf16.mxu0 0
        %1476 = vmatpush1.bf16.msra.mxu0 0
        %1477 = vmatprep.subr.bf16.mxu0 0
        %1478 = vmatpush1.bf16.msra.mxu0 0
        %1479 = vmatprep.subr.bf16.mxu0 0
        %1480 = vmatpush1.bf16.msra.mxu0 0
        %1481 = vmatprep.subr.bf16.mxu0 0
        %1482 = vmatpush1.bf16.msra.mxu0 0
        %1483 = vmatprep.mubr.bf16.mxu0 0
        %1484 = vmatmul.mubr.bf16.gmra.mrb[0].mxu0 %v1449
        %v1485 = vpop.f32.mrb[0].mxu0
        %v1486 = vadd.f32 0.0, %v1485
        %v1487 = vpop.f32.mrb[0].mxu0
        %v1488 = vpop.f32.mrb[0].mxu0
        %v1489 = vadd.f32 0.0, %v1488
        %v1490 = vpop.f32.mrb[0].mxu0
        %1491 = vdwg.mxu0
        %v1496 = vunpack.c.l.b16 %v862
        %v1497 = vunpack.c.l.b16 %v863
        %v1498 = vunpack.c.l.b16 %v864
        %v1499 = vunpack.c.l.b16 %v865
        %v1500 = vpack.c.b16 %v1497, %v1496
        %v1501 = vpack.c.b16 %v1499, %v1498
        %v1505 = vsel %vm883, %v1323, 0
        %1507 = vmatprep.subr.bf16.mxu0 0
        %1508 = vmatpush1.bf16.msra.mxu0 %v1500
        %1509 = vmatprep.subr.bf16.mxu0 0
        %1510 = vmatpush1.bf16.msra.mxu0 %v1501
        %1511 = vmatprep.subr.bf16.mxu0 0
        %1512 = vmatpush1.bf16.msra.mxu0 0
        %1513 = vmatprep.subr.bf16.mxu0 0
        %1514 = vmatpush1.bf16.msra.mxu0 0
        %1515 = vmatprep.subr.bf16.mxu0 0
        %1516 = vmatpush1.bf16.msra.mxu0 0
        %1517 = vmatprep.subr.bf16.mxu0 0
        %1518 = vmatpush1.bf16.msra.mxu0 0
        %1519 = vmatprep.subr.bf16.mxu0 0
        %1520 = vmatpush1.bf16.msra.mxu0 0
        %1521 = vmatprep.subr.bf16.mxu0 0
        %1522 = vmatpush1.bf16.msra.mxu0 0
        %1523 = vmatprep.subr.bf16.mxu0 0
        %1524 = vmatpush1.bf16.msra.mxu0 0
        %1525 = vmatprep.subr.bf16.mxu0 0
        %1526 = vmatpush1.bf16.msra.mxu0 0
        %1527 = vmatprep.subr.bf16.mxu0 0
        %1528 = vmatpush1.bf16.msra.mxu0 0
        %1529 = vmatprep.subr.bf16.mxu0 0
        %1530 = vmatpush1.bf16.msra.mxu0 0
        %1531 = vmatprep.subr.bf16.mxu0 0
        %1532 = vmatpush1.bf16.msra.mxu0 0
        %1533 = vmatprep.subr.bf16.mxu0 0
        %1534 = vmatpush1.bf16.msra.mxu0 0
        %1535 = vmatprep.subr.bf16.mxu0 0
        %1536 = vmatpush1.bf16.msra.mxu0 0
        %1537 = vmatprep.subr.bf16.mxu0 0
        %1538 = vmatpush1.bf16.msra.mxu0 0
        %1539 = vmatprep.mubr.bf16.mxu0 0
        %1540 = vmatmul.mubr.bf16.gmra.mrb[0].mxu0 %v1505
        %v1541 = vpop.f32.mrb[0].mxu0
        %v1542 = vadd.f32 0.0, %v1541
        %v1543 = vpop.f32.mrb[0].mxu0
        %v1544 = vpop.f32.mrb[0].mxu0
        %v1545 = vadd.f32 0.0, %v1544
        %v1546 = vpop.f32.mrb[0].mxu0
        %1547 = vdwg.mxu0
        %v1548 = vpack.c.bf16 %v1377, %v1374
        %v1549 = vpack.c.bf16 %v1433, %v1430
        %v1550 = vpack.c.bf16 %v1489, %v1486
        %v1551 = vpack.c.bf16 %v1545, %v1542
        %1552 = vmatprep.subr.bf16.mxu0 0
        %1553 = vmatpush1.bf16.msra.mxu0 %v1548
        %1554 = vmatprep.subr.bf16.mxu0 0
        %1555 = vmatpush1.bf16.msra.mxu0 0
        %1556 = vmatprep.subr.bf16.mxu0 0
        %1557 = vmatpush1.bf16.msra.mxu0 0
        %1558 = vmatprep.subr.bf16.mxu0 0
        %1559 = vmatpush1.bf16.msra.mxu0 0
        %1560 = vmatprep.subr.bf16.mxu0 0
        %1561 = vmatpush1.bf16.msra.mxu0 0
        %1562 = vmatprep.subr.bf16.mxu0 0
        %1563 = vmatpush1.bf16.msra.mxu0 0
        %1564 = vmatprep.subr.bf16.mxu0 0
        %1565 = vmatpush1.bf16.msra.mxu0 0
        %1566 = vmatprep.subr.bf16.mxu0 0
        %1567 = vmatpush1.bf16.msra.mxu0 0
        %1568 = vmatprep.subr.bf16.mxu0 0
        %1569 = vmatpush1.bf16.msra.mxu0 0
        %1570 = vmatprep.subr.bf16.mxu0 0
        %1571 = vmatpush1.bf16.msra.mxu0 0
        %1572 = vmatprep.subr.bf16.mxu0 0
        %1573 = vmatpush1.bf16.msra.mxu0 0
        %1574 = vmatprep.subr.bf16.mxu0 0
        %1575 = vmatpush1.bf16.msra.mxu0 0
        %1576 = vmatprep.subr.bf16.mxu0 0
        %1577 = vmatpush1.bf16.msra.mxu0 0
        %1578 = vmatprep.subr.bf16.mxu0 0
        %1579 = vmatpush1.bf16.msra.mxu0 0
        %1580 = vmatprep.subr.bf16.mxu0 0
        %1581 = vmatpush1.bf16.msra.mxu0 0
        %1582 = vmatprep.subr.bf16.mxu0 0
        %1583 = vmatpush1.bf16.msra.mxu0 0
        %1584 = vmatprep.mubr.bf16.mxu0 0
        %1585 = vmatmul.mubr.bf16.gmra.mrb[0].mxu0 %v1122
        %v1586 = vpop.f32.mrb[0].mxu0
        %v1587 = vadd.f32 0.0, %v1586
        %v1588 = vpop.f32.mrb[0].mxu0
        %v1589 = vpop.f32.mrb[0].mxu0
        %v1590 = vadd.f32 0.0, %v1589
        %v1591 = vpop.f32.mrb[0].mxu0
        %1592 = vdwg.mxu0
        %1593 = vmatprep.subr.bf16.mxu0 0
        %1594 = vmatpush1.bf16.msra.mxu0 %v1549
        %1595 = vmatprep.subr.bf16.mxu0 0
        %1596 = vmatpush1.bf16.msra.mxu0 0
        %1597 = vmatprep.subr.bf16.mxu0 0
        %1598 = vmatpush1.bf16.msra.mxu0 0
        %1599 = vmatprep.subr.bf16.mxu0 0
        %1600 = vmatpush1.bf16.msra.mxu0 0
        %1601 = vmatprep.subr.bf16.mxu0 0
        %1602 = vmatpush1.bf16.msra.mxu0 0
        %1603 = vmatprep.subr.bf16.mxu0 0
        %1604 = vmatpush1.bf16.msra.mxu0 0
        %1605 = vmatprep.subr.bf16.mxu0 0
        %1606 = vmatpush1.bf16.msra.mxu0 0
        %1607 = vmatprep.subr.bf16.mxu0 0
        %1608 = vmatpush1.bf16.msra.mxu0 0
        %1609 = vmatprep.subr.bf16.mxu0 0
        %1610 = vmatpush1.bf16.msra.mxu0 0
        %1611 = vmatprep.subr.bf16.mxu0 0
        %1612 = vmatpush1.bf16.msra.mxu0 0
        %1613 = vmatprep.subr.bf16.mxu0 0
        %1614 = vmatpush1.bf16.msra.mxu0 0
        %1615 = vmatprep.subr.bf16.mxu0 0
        %1616 = vmatpush1.bf16.msra.mxu0 0
        %1617 = vmatprep.subr.bf16.mxu0 0
        %1618 = vmatpush1.bf16.msra.mxu0 0
        %1619 = vmatprep.subr.bf16.mxu0 0
        %1620 = vmatpush1.bf16.msra.mxu0 0
        %1621 = vmatprep.subr.bf16.mxu0 0
        %1622 = vmatpush1.bf16.msra.mxu0 0
        %1623 = vmatprep.subr.bf16.mxu0 0
        %1624 = vmatpush1.bf16.msra.mxu0 0
        %1625 = vmatprep.mubr.bf16.mxu0 0
        %1626 = vmatmul.mubr.bf16.gmra.mrb[0].mxu0 %v1171
        %v1627 = vpop.f32.mrb[0].mxu0
        %v1628 = vadd.f32 0.0, %v1627
        %v1629 = vpop.f32.mrb[0].mxu0
        %v1630 = vpop.f32.mrb[0].mxu0
        %v1631 = vadd.f32 0.0, %v1630
        %v1632 = vpop.f32.mrb[0].mxu0
        %1633 = vdwg.mxu0
        %1634 = vmatprep.subr.bf16.mxu0 0
        %1635 = vmatpush1.bf16.msra.mxu0 %v1550
        %1636 = vmatprep.subr.bf16.mxu0 0
        %1637 = vmatpush1.bf16.msra.mxu0 0
        %1638 = vmatprep.subr.bf16.mxu0 0
        %1639 = vmatpush1.bf16.msra.mxu0 0
        %1640 = vmatprep.subr.bf16.mxu0 0
        %1641 = vmatpush1.bf16.msra.mxu0 0
        %1642 = vmatprep.subr.bf16.mxu0 0
        %1643 = vmatpush1.bf16.msra.mxu0 0
        %1644 = vmatprep.subr.bf16.mxu0 0
        %1645 = vmatpush1.bf16.msra.mxu0 0
        %1646 = vmatprep.subr.bf16.mxu0 0
        %1647 = vmatpush1.bf16.msra.mxu0 0
        %1648 = vmatprep.subr.bf16.mxu0 0
        %1649 = vmatpush1.bf16.msra.mxu0 0
        %1650 = vmatprep.subr.bf16.mxu0 0
        %1651 = vmatpush1.bf16.msra.mxu0 0
        %1652 = vmatprep.subr.bf16.mxu0 0
        %1653 = vmatpush1.bf16.msra.mxu0 0
        %1654 = vmatprep.subr.bf16.mxu0 0
        %1655 = vmatpush1.bf16.msra.mxu0 0
        %1656 = vmatprep.subr.bf16.mxu0 0
        %1657 = vmatpush1.bf16.msra.mxu0 0
        %1658 = vmatprep.subr.bf16.mxu0 0
        %1659 = vmatpush1.bf16.msra.mxu0 0
        %1660 = vmatprep.subr.bf16.mxu0 0
        %1661 = vmatpush1.bf16.msra.mxu0 0
        %1662 = vmatprep.subr.bf16.mxu0 0
        %1663 = vmatpush1.bf16.msra.mxu0 0
        %1664 = vmatprep.subr.bf16.mxu0 0
        %1665 = vmatpush1.bf16.msra.mxu0 0
        %1666 = vmatprep.mubr.bf16.mxu0 0
        %1667 = vmatmul.mubr.bf16.gmra.mrb[0].mxu0 %v1220
        %v1668 = vpop.f32.mrb[0].mxu0
        %v1669 = vadd.f32 0.0, %v1668
        %v1670 = vpop.f32.mrb[0].mxu0
        %v1671 = vpop.f32.mrb[0].mxu0
        %v1672 = vadd.f32 0.0, %v1671
        %v1673 = vpop.f32.mrb[0].mxu0
        %1674 = vdwg.mxu0
        %1675 = vmatprep.subr.bf16.mxu0 0
        %1676 = vmatpush1.bf16.msra.mxu0 %v1551
        %1677 = vmatprep.subr.bf16.mxu0 0
        %1678 = vmatpush1.bf16.msra.mxu0 0
        %1679 = vmatprep.subr.bf16.mxu0 0
        %1680 = vmatpush1.bf16.msra.mxu0 0
        %1681 = vmatprep.subr.bf16.mxu0 0
        %1682 = vmatpush1.bf16.msra.mxu0 0
        %1683 = vmatprep.subr.bf16.mxu0 0
        %1684 = vmatpush1.bf16.msra.mxu0 0
        %1685 = vmatprep.subr.bf16.mxu0 0
        %1686 = vmatpush1.bf16.msra.mxu0 0
        %1687 = vmatprep.subr.bf16.mxu0 0
        %1688 = vmatpush1.bf16.msra.mxu0 0
        %1689 = vmatprep.subr.bf16.mxu0 0
        %1690 = vmatpush1.bf16.msra.mxu0 0
        %1691 = vmatprep.subr.bf16.mxu0 0
        %1692 = vmatpush1.bf16.msra.mxu0 0
        %1693 = vmatprep.subr.bf16.mxu0 0
        %1694 = vmatpush1.bf16.msra.mxu0 0
        %1695 = vmatprep.subr.bf16.mxu0 0
        %1696 = vmatpush1.bf16.msra.mxu0 0
        %1697 = vmatprep.subr.bf16.mxu0 0
        %1698 = vmatpush1.bf16.msra.mxu0 0
        %1699 = vmatprep.subr.bf16.mxu0 0
        %1700 = vmatpush1.bf16.msra.mxu0 0
        %1701 = vmatprep.subr.bf16.mxu0 0
        %1702 = vmatpush1.bf16.msra.mxu0 0
        %1703 = vmatprep.subr.bf16.mxu0 0
        %1704 = vmatpush1.bf16.msra.mxu0 0
        %1705 = vmatprep.subr.bf16.mxu0 0
        %1706 = vmatpush1.bf16.msra.mxu0 0
        %1707 = vmatprep.mubr.bf16.mxu0 0
        %1708 = vmatmul.mubr.bf16.gmra.mrb[0].mxu0 %v1269
        %v1709 = vpop.f32.mrb[0].mxu0
        %v1710 = vadd.f32 0.0, %v1709
        %v1711 = vpop.f32.mrb[0].mxu0
        %v1712 = vpop.f32.mrb[0].mxu0
        %v1713 = vadd.f32 0.0, %v1712
        %v1714 = vpop.f32.mrb[0].mxu0
        %1715 = vdwg.mxu0
        %v1716 = vmax.f32 %v1587, 0.0
        %v1717 = vmax.f32 %v1590, 0.0
        %v1718 = vmax.f32 %v1628, 0.0
        %v1719 = vmax.f32 %v1631, 0.0
        %v1720 = vmax.f32 %v1669, 0.0
        %v1721 = vmax.f32 %v1672, 0.0
        %v1722 = vmax.f32 %v1710, 0.0
        %v1723 = vmax.f32 %v1713, 0.0
        %v1724 = vadd.f32 %v1716, %v1312
        %v1725 = vadd.f32 %v1717, %v1313
        %v1726 = vadd.f32 %v1718, %v1314
        %v1727 = vadd.f32 %v1719, %v1315
        %v1728 = vadd.f32 %v1720, %v1316
        %v1729 = vadd.f32 %v1721, %v1317
        %v1730 = vadd.f32 %v1722, %v1318
        %v1731 = vadd.f32 %v1723, %v1319
        %v1732 = vmul.f32 %v1724, 0.1
        %v1733 = vmul.f32 %v1725, 0.1
        %v1734 = vmul.f32 %v1726, 0.1
        %v1735 = vmul.f32 %v1727, 0.1
        %v1736 = vmul.f32 %v1728, 0.1
        %v1737 = vmul.f32 %v1729, 0.1
        %v1738 = vmul.f32 %v1730, 0.1
        %v1739 = vmul.f32 %v1731, 0.1
        %v1740 = vpack.c.bf16 %v1725, %v1724
        %v1741 = vpack.c.bf16 %v1727, %v1726
        %v1742 = vpack.c.bf16 %v1729, %v1728
        %v1743 = vpack.c.bf16 %v1731, %v1730
        %v1744 = vld [vmem:[%s677] sm:$0xf]
        %v1745 = vld [vmem:[%s677 + $0x4] sm:$0xf]
        %v1746 = vld [vmem:[%s677 + $0x8] sm:$0xf]
        %v1747 = vld [vmem:[%s677 + $0xc] sm:$0xf]
        %v1748 = vld [vmem:[%s677 + $0x10] sm:$0xf]
        %v1749 = vld [vmem:[%s677 + $0x14] sm:$0xf]
        %v1750 = vld [vmem:[%s677 + $0x18] sm:$0xf]
        %v1751 = vld [vmem:[%s677 + $0x1c] sm:$0xf]
        %v1752 = vld [vmem:[%s677 + $0x20] sm:$0xf]
        %v1753 = vld [vmem:[%s677 + $0x24] sm:$0xf]
        %v1754 = vld [vmem:[%s677 + $0x28] sm:$0xf]
        %v1755 = vld [vmem:[%s677 + $0x2c] sm:$0xf]
        %v1756 = vld [vmem:[%s677 + $0x30] sm:$0xf]
        %v1757 = vld [vmem:[%s677 + $0x34] sm:$0xf]
        %v1758 = vld [vmem:[%s677 + $0x38] sm:$0xf]
        %v1759 = vld [vmem:[%s677 + $0x3c] sm:$0xf]
        %v1760 = vld [vmem:[%s686] sm:$0xf]
        %v1761 = vld [vmem:[%s686 + $0x4] sm:$0xf]
        %v1762 = vld [vmem:[%s686 + $0x8] sm:$0xf]
        %v1763 = vld [vmem:[%s686 + $0xc] sm:$0xf]
        %v1764 = vld [vmem:[%s686 + $0x10] sm:$0xf]
        %v1765 = vld [vmem:[%s686 + $0x14] sm:$0xf]
        %v1766 = vld [vmem:[%s686 + $0x18] sm:$0xf]
        %v1767 = vld [vmem:[%s686 + $0x1c] sm:$0xf]
        %v1768 = vld [vmem:[%s686 + $0x20] sm:$0xf]
        %v1769 = vld [vmem:[%s686 + $0x24] sm:$0xf]
        %v1770 = vld [vmem:[%s686 + $0x28] sm:$0xf]
        %v1771 = vld [vmem:[%s686 + $0x2c] sm:$0xf]
        %v1772 = vld [vmem:[%s686 + $0x30] sm:$0xf]
        %v1773 = vld [vmem:[%s686 + $0x34] sm:$0xf]
        %v1774 = vld [vmem:[%s686 + $0x38] sm:$0xf]
        %v1775 = vld [vmem:[%s686 + $0x3c] sm:$0xf]
        %v1780 = vunpack.c.l.b16 %v1744
        %v1781 = vunpack.c.l.b16 %v1745
        %v1782 = vunpack.c.l.b16 %v1746
        %v1783 = vunpack.c.l.b16 %v1747
        %v1784 = vpack.c.b16 %v1781, %v1780
        %v1785 = vpack.c.b16 %v1783, %v1782
        %v1789 = vsel %vm883, %v1740, 0
        %1791 = vmatprep.subr.bf16.mxu0 0
        %1792 = vmatpush1.bf16.msra.mxu0 %v1784
        %1793 = vmatprep.subr.bf16.mxu0 0
        %1794 = vmatpush1.bf16.msra.mxu0 %v1785
        %1795 = vmatprep.subr.bf16.mxu0 0
        %1796 = vmatpush1.bf16.msra.mxu0 0
        %1797 = vmatprep.subr.bf16.mxu0 0
        %1798 = vmatpush1.bf16.msra.mxu0 0
        %1799 = vmatprep.subr.bf16.mxu0 0
        %1800 = vmatpush1.bf16.msra.mxu0 0
        %1801 = vmatprep.subr.bf16.mxu0 0
        %1802 = vmatpush1.bf16.msra.mxu0 0
        %1803 = vmatprep.subr.bf16.mxu0 0
        %1804 = vmatpush1.bf16.msra.mxu0 0
        %1805 = vmatprep.subr.bf16.mxu0 0
        %1806 = vmatpush1.bf16.msra.mxu0 0
        %1807 = vmatprep.subr.bf16.mxu0 0
        %1808 = vmatpush1.bf16.msra.mxu0 0
        %1809 = vmatprep.subr.bf16.mxu0 0
        %1810 = vmatpush1.bf16.msra.mxu0 0
        %1811 = vmatprep.subr.bf16.mxu0 0
        %1812 = vmatpush1.bf16.msra.mxu0 0
        %1813 = vmatprep.subr.bf16.mxu0 0
        %1814 = vmatpush1.bf16.msra.mxu0 0
        %1815 = vmatprep.subr.bf16.mxu0 0
        %1816 = vmatpush1.bf16.msra.mxu0 0
        %1817 = vmatprep.subr.bf16.mxu0 0
        %1818 = vmatpush1.bf16.msra.mxu0 0
        %1819 = vmatprep.subr.bf16.mxu0 0
        %1820 = vmatpush1.bf16.msra.mxu0 0
        %1821 = vmatprep.subr.bf16.mxu0 0
        %1822 = vmatpush1.bf16.msra.mxu0 0
        %1823 = vmatprep.mubr.bf16.mxu0 0
        %1824 = vmatmul.mubr.bf16.gmra.mrb[0].mxu0 %v1789
        %v1825 = vpop.f32.mrb[0].mxu0
        %v1826 = vadd.f32 0.0, %v1825
        %v1827 = vpop.f32.mrb[0].mxu0
        %v1828 = vpop.f32.mrb[0].mxu0
        %v1829 = vadd.f32 0.0, %v1828
        %v1830 = vpop.f32.mrb[0].mxu0
        %1831 = vdwg.mxu0
        %v1836 = vunpack.c.l.b16 %v1748
        %v1837 = vunpack.c.l.b16 %v1749
        %v1838 = vunpack.c.l.b16 %v1750
        %v1839 = vunpack.c.l.b16 %v1751
        %v1840 = vpack.c.b16 %v1837, %v1836
        %v1841 = vpack.c.b16 %v1839, %v1838
        %v1845 = vsel %vm883, %v1741, 0
        %1847 = vmatprep.subr.bf16.mxu0 0
        %1848 = vmatpush1.bf16.msra.mxu0 %v1840
        %1849 = vmatprep.subr.bf16.mxu0 0
        %1850 = vmatpush1.bf16.msra.mxu0 %v1841
        %1851 = vmatprep.subr.bf16.mxu0 0
        %1852 = vmatpush1.bf16.msra.mxu0 0
        %1853 = vmatprep.subr.bf16.mxu0 0
        %1854 = vmatpush1.bf16.msra.mxu0 0
        %1855 = vmatprep.subr.bf16.mxu0 0
        %1856 = vmatpush1.bf16.msra.mxu0 0
        %1857 = vmatprep.subr.bf16.mxu0 0
        %1858 = vmatpush1.bf16.msra.mxu0 0
        %1859 = vmatprep.subr.bf16.mxu0 0
        %1860 = vmatpush1.bf16.msra.mxu0 0
        %1861 = vmatprep.subr.bf16.mxu0 0
        %1862 = vmatpush1.bf16.msra.mxu0 0
        %1863 = vmatprep.subr.bf16.mxu0 0
        %1864 = vmatpush1.bf16.msra.mxu0 0
        %1865 = vmatprep.subr.bf16.mxu0 0
        %1866 = vmatpush1.bf16.msra.mxu0 0
        %1867 = vmatprep.subr.bf16.mxu0 0
        %1868 = vmatpush1.bf16.msra.mxu0 0
        %1869 = vmatprep.subr.bf16.mxu0 0
        %1870 = vmatpush1.bf16.msra.mxu0 0
        %1871 = vmatprep.subr.bf16.mxu0 0
        %1872 = vmatpush1.bf16.msra.mxu0 0
        %1873 = vmatprep.subr.bf16.mxu0 0
        %1874 = vmatpush1.bf16.msra.mxu0 0
        %1875 = vmatprep.subr.bf16.mxu0 0
        %1876 = vmatpush1.bf16.msra.mxu0 0
        %1877 = vmatprep.subr.bf16.mxu0 0
        %1878 = vmatpush1.bf16.msra.mxu0 0
        %1879 = vmatprep.mubr.bf16.mxu0 0
        %1880 = vmatmul.mubr.bf16.gmra.mrb[0].mxu0 %v1845
        %v1881 = vpop.f32.mrb[0].mxu0
        %v1882 = vadd.f32 0.0, %v1881
        %v1883 = vpop.f32.mrb[0].mxu0
        %v1884 = vpop.f32.mrb[0].mxu0
        %v1885 = vadd.f32 0.0, %v1884
        %v1886 = vpop.f32.mrb[0].mxu0
        %1887 = vdwg.mxu0
        %v1892 = vunpack.c.l.b16 %v1752
        %v1893 = vunpack.c.l.b16 %v1753
        %v1894 = vunpack.c.l.b16 %v1754
        %v1895 = vunpack.c.l.b16 %v1755
        %v1896 = vpack.c.b16 %v1893, %v1892
        %v1897 = vpack.c.b16 %v1895, %v1894
        %v1901 = vsel %vm883, %v1742, 0
        %1903 = vmatprep.subr.bf16.mxu0 0
        %1904 = vmatpush1.bf16.msra.mxu0 %v1896
        %1905 = vmatprep.subr.bf16.mxu0 0
        %1906 = vmatpush1.bf16.msra.mxu0 %v1897
        %1907 = vmatprep.subr.bf16.mxu0 0
        %1908 = vmatpush1.bf16.msra.mxu0 0
        %1909 = vmatprep.subr.bf16.mxu0 0
        %1910 = vmatpush1.bf16.msra.mxu0 0
        %1911 = vmatprep.subr.bf16.mxu0 0
        %1912 = vmatpush1.bf16.msra.mxu0 0
        %1913 = vmatprep.subr.bf16.mxu0 0
        %1914 = vmatpush1.bf16.msra.mxu0 0
        %1915 = vmatprep.subr.bf16.mxu0 0
        %1916 = vmatpush1.bf16.msra.mxu0 0
        %1917 = vmatprep.subr.bf16.mxu0 0
        %1918 = vmatpush1.bf16.msra.mxu0 0
        %1919 = vmatprep.subr.bf16.mxu0 0
        %1920 = vmatpush1.bf16.msra.mxu0 0
        %1921 = vmatprep.subr.bf16.mxu0 0
        %1922 = vmatpush1.bf16.msra.mxu0 0
        %1923 = vmatprep.subr.bf16.mxu0 0
        %1924 = vmatpush1.bf16.msra.mxu0 0
        %1925 = vmatprep.subr.bf16.mxu0 0
        %1926 = vmatpush1.bf16.msra.mxu0 0
        %1927 = vmatprep.subr.bf16.mxu0 0
        %1928 = vmatpush1.bf16.msra.mxu0 0
        %1929 = vmatprep.subr.bf16.mxu0 0
        %1930 = vmatpush1.bf16.msra.mxu0 0
        %1931 = vmatprep.subr.bf16.mxu0 0
        %1932 = vmatpush1.bf16.msra.mxu0 0
        %1933 = vmatprep.subr.bf16.mxu0 0
        %1934 = vmatpush1.bf16.msra.mxu0 0
        %1935 = vmatprep.mubr.bf16.mxu0 0
        %1936 = vmatmul.mubr.bf16.gmra.mrb[0].mxu0 %v1901
        %v1937 = vpop.f32.mrb[0].mxu0
        %v1938 = vadd.f32 0.0, %v1937
        %v1939 = vpop.f32.mrb[0].mxu0
        %v1940 = vpop.f32.mrb[0].mxu0
        %v1941 = vadd.f32 0.0, %v1940
        %v1942 = vpop.f32.mrb[0].mxu0
        %1943 = vdwg.mxu0
        %v1948 = vunpack.c.l.b16 %v1756
        %v1949 = vunpack.c.l.b16 %v1757
        %v1950 = vunpack.c.l.b16 %v1758
        %v1951 = vunpack.c.l.b16 %v1759
        %v1952 = vpack.c.b16 %v1949, %v1948
        %v1953 = vpack.c.b16 %v1951, %v1950
        %v1957 = vsel %vm883, %v1743, 0
        %1959 = vmatprep.subr.bf16.mxu0 0
        %1960 = vmatpush1.bf16.msra.mxu0 %v1952
        %1961 = vmatprep.subr.bf16.mxu0 0
        %1962 = vmatpush1.bf16.msra.mxu0 %v1953
        %1963 = vmatprep.subr.bf16.mxu0 0
        %1964 = vmatpush1.bf16.msra.mxu0 0
        %1965 = vmatprep.subr.bf16.mxu0 0
        %1966 = vmatpush1.bf16.msra.mxu0 0
        %1967 = vmatprep.subr.bf16.mxu0 0
        %1968 = vmatpush1.bf16.msra.mxu0 0
        %1969 = vmatprep.subr.bf16.mxu0 0
        %1970 = vmatpush1.bf16.msra.mxu0 0
        %1971 = vmatprep.subr.bf16.mxu0 0
        %1972 = vmatpush1.bf16.msra.mxu0 0
        %1973 = vmatprep.subr.bf16.mxu0 0
        %1974 = vmatpush1.bf16.msra.mxu0 0
        %1975 = vmatprep.subr.bf16.mxu0 0
        %1976 = vmatpush1.bf16.msra.mxu0 0
        %1977 = vmatprep.subr.bf16.mxu0 0
        %1978 = vmatpush1.bf16.msra.mxu0 0
        %1979 = vmatprep.subr.bf16.mxu0 0
        %1980 = vmatpush1.bf16.msra.mxu0 0
        %1981 = vmatprep.subr.bf16.mxu0 0
        %1982 = vmatpush1.bf16.msra.mxu0 0
        %1983 = vmatprep.subr.bf16.mxu0 0
        %1984 = vmatpush1.bf16.msra.mxu0 0
        %1985 = vmatprep.subr.bf16.mxu0 0
        %1986 = vmatpush1.bf16.msra.mxu0 0
        %1987 = vmatprep.subr.bf16.mxu0 0
        %1988 = vmatpush1.bf16.msra.mxu0 0
        %1989 = vmatprep.subr.bf16.mxu0 0
        %1990 = vmatpush1.bf16.msra.mxu0 0
        %1991 = vmatprep.mubr.bf16.mxu0 0
        %1992 = vmatmul.mubr.bf16.gmra.mrb[0].mxu0 %v1957
        %v1993 = vpop.f32.mrb[0].mxu0
        %v1994 = vadd.f32 0.0, %v1993
        %v1995 = vpop.f32.mrb[0].mxu0
        %v1996 = vpop.f32.mrb[0].mxu0
        %v1997 = vadd.f32 0.0, %v1996
        %v1998 = vpop.f32.mrb[0].mxu0
        %1999 = vdwg.mxu0
        %v2000 = vpack.c.bf16 %v1829, %v1826
        %v2001 = vpack.c.bf16 %v1885, %v1882
        %v2002 = vpack.c.bf16 %v1941, %v1938
        %v2003 = vpack.c.bf16 %v1997, %v1994
        %v2006 = vunpack.c.l.b16 %v818
        %v2007 = vunpack.c.l.b16 %v819
        %v2008 = vpack.c.b16 %v2007, %v2006
        %v2010 = vsel %vm1120, %v2008, 0
        %2012 = vmatprep.subr.bf16.mxu0 0
        %2013 = vmatpush1.bf16.msra.mxu0 %v2000
        %2014 = vmatprep.subr.bf16.mxu0 0
        %2015 = vmatpush1.bf16.msra.mxu0 0
        %2016 = vmatprep.subr.bf16.mxu0 0
        %2017 = vmatpush1.bf16.msra.mxu0 0
        %2018 = vmatprep.subr.bf16.mxu0 0
        %2019 = vmatpush1.bf16.msra.mxu0 0
        %2020 = vmatprep.subr.bf16.mxu0 0
        %2021 = vmatpush1.bf16.msra.mxu0 0
        %2022 = vmatprep.subr.bf16.mxu0 0
        %2023 = vmatpush1.bf16.msra.mxu0 0
        %2024 = vmatprep.subr.bf16.mxu0 0
        %2025 = vmatpush1.bf16.msra.mxu0 0
        %2026 = vmatprep.subr.bf16.mxu0 0
        %2027 = vmatpush1.bf16.msra.mxu0 0
        %2028 = vmatprep.subr.bf16.mxu0 0
        %2029 = vmatpush1.bf16.msra.mxu0 0
        %2030 = vmatprep.subr.bf16.mxu0 0
        %2031 = vmatpush1.bf16.msra.mxu0 0
        %2032 = vmatprep.subr.bf16.mxu0 0
        %2033 = vmatpush1.bf16.msra.mxu0 0
        %2034 = vmatprep.subr.bf16.mxu0 0
        %2035 = vmatpush1.bf16.msra.mxu0 0
        %2036 = vmatprep.subr.bf16.mxu0 0
        %2037 = vmatpush1.bf16.msra.mxu0 0
        %2038 = vmatprep.subr.bf16.mxu0 0
        %2039 = vmatpush1.bf16.msra.mxu0 0
        %2040 = vmatprep.subr.bf16.mxu0 0
        %2041 = vmatpush1.bf16.msra.mxu0 0
        %2042 = vmatprep.subr.bf16.mxu0 0
        %2043 = vmatpush1.bf16.msra.mxu0 0
        %2044 = vmatprep.mubr.bf16.mxu0 0
        %2045 = vmatmul.mubr.bf16.gmra.mrb[0].mxu0 %v2010
        %v2046 = vpop.f32.mrb[0].mxu0
        %v2047 = vadd.f32 0.0, %v2046
        %v2048 = vpop.f32.mrb[0].mxu0
        %v2049 = vpop.f32.mrb[0].mxu0
        %v2050 = vadd.f32 0.0, %v2049
        %v2051 = vpop.f32.mrb[0].mxu0
        %2052 = vdwg.mxu0
        %v2055 = vunpack.c.l.b16 %v820
        %v2056 = vunpack.c.l.b16 %v821
        %v2057 = vpack.c.b16 %v2056, %v2055
        %v2059 = vsel %vm1120, %v2057, 0
        %2061 = vmatprep.subr.bf16.mxu0 0
        %2062 = vmatpush1.bf16.msra.mxu0 %v2001
        %2063 = vmatprep.subr.bf16.mxu0 0
        %2064 = vmatpush1.bf16.msra.mxu0 0
        %2065 = vmatprep.subr.bf16.mxu0 0
        %2066 = vmatpush1.bf16.msra.mxu0 0
        %2067 = vmatprep.subr.bf16.mxu0 0
        %2068 = vmatpush1.bf16.msra.mxu0 0
        %2069 = vmatprep.subr.bf16.mxu0 0
        %2070 = vmatpush1.bf16.msra.mxu0 0
        %2071 = vmatprep.subr.bf16.mxu0 0
        %2072 = vmatpush1.bf16.msra.mxu0 0
        %2073 = vmatprep.subr.bf16.mxu0 0
        %2074 = vmatpush1.bf16.msra.mxu0 0
        %2075 = vmatprep.subr.bf16.mxu0 0
        %2076 = vmatpush1.bf16.msra.mxu0 0
        %2077 = vmatprep.subr.bf16.mxu0 0
        %2078 = vmatpush1.bf16.msra.mxu0 0
        %2079 = vmatprep.subr.bf16.mxu0 0
        %2080 = vmatpush1.bf16.msra.mxu0 0
        %2081 = vmatprep.subr.bf16.mxu0 0
        %2082 = vmatpush1.bf16.msra.mxu0 0
        %2083 = vmatprep.subr.bf16.mxu0 0
        %2084 = vmatpush1.bf16.msra.mxu0 0
        %2085 = vmatprep.subr.bf16.mxu0 0
        %2086 = vmatpush1.bf16.msra.mxu0 0
        %2087 = vmatprep.subr.bf16.mxu0 0
        %2088 = vmatpush1.bf16.msra.mxu0 0
        %2089 = vmatprep.subr.bf16.mxu0 0
        %2090 = vmatpush1.bf16.msra.mxu0 0
        %2091 = vmatprep.subr.bf16.mxu0 0
        %2092 = vmatpush1.bf16.msra.mxu0 0
        %2093 = vmatprep.mubr.bf16.mxu0 0
        %2094 = vmatmul.mubr.bf16.gmra.mrb[0].mxu0 %v2059
        %v2095 = vpop.f32.mrb[0].mxu0
        %v2096 = vadd.f32 0.0, %v2095
        %v2097 = vpop.f32.mrb[0].mxu0
        %v2098 = vpop.f32.mrb[0].mxu0
        %v2099 = vadd.f32 0.0, %v2098
        %v2100 = vpop.f32.mrb[0].mxu0
        %2101 = vdwg.mxu0
        %v2104 = vunpack.c.l.b16 %v822
        %v2105 = vunpack.c.l.b16 %v823
        %v2106 = vpack.c.b16 %v2105, %v2104
        %v2108 = vsel %vm1120, %v2106, 0
        %2110 = vmatprep.subr.bf16.mxu0 0
        %2111 = vmatpush1.bf16.msra.mxu0 %v2002
        %2112 = vmatprep.subr.bf16.mxu0 0
        %2113 = vmatpush1.bf16.msra.mxu0 0
        %2114 = vmatprep.subr.bf16.mxu0 0
        %2115 = vmatpush1.bf16.msra.mxu0 0
        %2116 = vmatprep.subr.bf16.mxu0 0
        %2117 = vmatpush1.bf16.msra.mxu0 0
        %2118 = vmatprep.subr.bf16.mxu0 0
        %2119 = vmatpush1.bf16.msra.mxu0 0
        %2120 = vmatprep.subr.bf16.mxu0 0
        %2121 = vmatpush1.bf16.msra.mxu0 0
        %2122 = vmatprep.subr.bf16.mxu0 0
        %2123 = vmatpush1.bf16.msra.mxu0 0
        %2124 = vmatprep.subr.bf16.mxu0 0
        %2125 = vmatpush1.bf16.msra.mxu0 0
        %2126 = vmatprep.subr.bf16.mxu0 0
        %2127 = vmatpush1.bf16.msra.mxu0 0
        %2128 = vmatprep.subr.bf16.mxu0 0
        %2129 = vmatpush1.bf16.msra.mxu0 0
        %2130 = vmatprep.subr.bf16.mxu0 0
        %2131 = vmatpush1.bf16.msra.mxu0 0
        %2132 = vmatprep.subr.bf16.mxu0 0
        %2133 = vmatpush1.bf16.msra.mxu0 0
        %2134 = vmatprep.subr.bf16.mxu0 0
        %2135 = vmatpush1.bf16.msra.mxu0 0
        %2136 = vmatprep.subr.bf16.mxu0 0
        %2137 = vmatpush1.bf16.msra.mxu0 0
        %2138 = vmatprep.subr.bf16.mxu0 0
        %2139 = vmatpush1.bf16.msra.mxu0 0
        %2140 = vmatprep.subr.bf16.mxu0 0
        %2141 = vmatpush1.bf16.msra.mxu0 0
        %2142 = vmatprep.mubr.bf16.mxu0 0
        %2143 = vmatmul.mubr.bf16.gmra.mrb[0].mxu0 %v2108
        %v2144 = vpop.f32.mrb[0].mxu0
        %v2145 = vadd.f32 0.0, %v2144
        %v2146 = vpop.f32.mrb[0].mxu0
        %v2147 = vpop.f32.mrb[0].mxu0
        %v2148 = vadd.f32 0.0, %v2147
        %v2149 = vpop.f32.mrb[0].mxu0
        %2150 = vdwg.mxu0
        %v2153 = vunpack.c.l.b16 %v824
        %v2154 = vunpack.c.l.b16 %v825
        %v2155 = vpack.c.b16 %v2154, %v2153
        %v2157 = vsel %vm1120, %v2155, 0
        %2159 = vmatprep.subr.bf16.mxu0 0
        %2160 = vmatpush1.bf16.msra.mxu0 %v2003
        %2161 = vmatprep.subr.bf16.mxu0 0
        %2162 = vmatpush1.bf16.msra.mxu0 0
        %2163 = vmatprep.subr.bf16.mxu0 0
        %2164 = vmatpush1.bf16.msra.mxu0 0
        %2165 = vmatprep.subr.bf16.mxu0 0
        %2166 = vmatpush1.bf16.msra.mxu0 0
        %2167 = vmatprep.subr.bf16.mxu0 0
        %2168 = vmatpush1.bf16.msra.mxu0 0
        %2169 = vmatprep.subr.bf16.mxu0 0
        %2170 = vmatpush1.bf16.msra.mxu0 0
        %2171 = vmatprep.subr.bf16.mxu0 0
        %2172 = vmatpush1.bf16.msra.mxu0 0
        %2173 = vmatprep.subr.bf16.mxu0 0
        %2174 = vmatpush1.bf16.msra.mxu0 0
        %2175 = vmatprep.subr.bf16.mxu0 0
        %2176 = vmatpush1.bf16.msra.mxu0 0
        %2177 = vmatprep.subr.bf16.mxu0 0
        %2178 = vmatpush1.bf16.msra.mxu0 0
        %2179 = vmatprep.subr.bf16.mxu0 0
        %2180 = vmatpush1.bf16.msra.mxu0 0
        %2181 = vmatprep.subr.bf16.mxu0 0
        %2182 = vmatpush1.bf16.msra.mxu0 0
        %2183 = vmatprep.subr.bf16.mxu0 0
        %2184 = vmatpush1.bf16.msra.mxu0 0
        %2185 = vmatprep.subr.bf16.mxu0 0
        %2186 = vmatpush1.bf16.msra.mxu0 0
        %2187 = vmatprep.subr.bf16.mxu0 0
        %2188 = vmatpush1.bf16.msra.mxu0 0
        %2189 = vmatprep.subr.bf16.mxu0 0
        %2190 = vmatpush1.bf16.msra.mxu0 0
        %2191 = vmatprep.mubr.bf16.mxu0 0
        %2192 = vmatmul.mubr.bf16.gmra.mrb[0].mxu0 %v2157
        %v2193 = vpop.f32.mrb[0].mxu0
        %v2194 = vadd.f32 0.0, %v2193
        %v2195 = vpop.f32.mrb[0].mxu0
        %v2196 = vpop.f32.mrb[0].mxu0
        %v2197 = vadd.f32 0.0, %v2196
        %v2198 = vpop.f32.mrb[0].mxu0
        %2199 = vdwg.mxu0
        %v2200 = vmax.f32 %v2047, 0.0
        %v2201 = vmax.f32 %v2050, 0.0
        %v2202 = vmax.f32 %v2096, 0.0
        %v2203 = vmax.f32 %v2099, 0.0
        %v2204 = vmax.f32 %v2145, 0.0
        %v2205 = vmax.f32 %v2148, 0.0
        %v2206 = vmax.f32 %v2194, 0.0
        %v2207 = vmax.f32 %v2197, 0.0
        %v2208 = vpack.c.bf16 %v2201, %v2200
        %v2209 = vpack.c.bf16 %v2203, %v2202
        %v2210 = vpack.c.bf16 %v2205, %v2204
        %v2211 = vpack.c.bf16 %v2207, %v2206
        %v2216 = vunpack.c.l.b16 %v1760
        %v2217 = vunpack.c.l.b16 %v1761
        %v2218 = vunpack.c.l.b16 %v1762
        %v2219 = vunpack.c.l.b16 %v1763
        %v2220 = vpack.c.b16 %v2217, %v2216
        %v2221 = vpack.c.b16 %v2219, %v2218
        %v2225 = vsel %vm883, %v2208, 0
        %2227 = vmatprep.subr.bf16.mxu0 0
        %2228 = vmatpush1.bf16.msra.mxu0 %v2220
        %2229 = vmatprep.subr.bf16.mxu0 0
        %2230 = vmatpush1.bf16.msra.mxu0 %v2221
        %2231 = vmatprep.subr.bf16.mxu0 0
        %2232 = vmatpush1.bf16.msra.mxu0 0
        %2233 = vmatprep.subr.bf16.mxu0 0
        %2234 = vmatpush1.bf16.msra.mxu0 0
        %2235 = vmatprep.subr.bf16.mxu0 0
        %2236 = vmatpush1.bf16.msra.mxu0 0
        %2237 = vmatprep.subr.bf16.mxu0 0
        %2238 = vmatpush1.bf16.msra.mxu0 0
        %2239 = vmatprep.subr.bf16.mxu0 0
        %2240 = vmatpush1.bf16.msra.mxu0 0
        %2241 = vmatprep.subr.bf16.mxu0 0
        %2242 = vmatpush1.bf16.msra.mxu0 0
        %2243 = vmatprep.subr.bf16.mxu0 0
        %2244 = vmatpush1.bf16.msra.mxu0 0
        %2245 = vmatprep.subr.bf16.mxu0 0
        %2246 = vmatpush1.bf16.msra.mxu0 0
        %2247 = vmatprep.subr.bf16.mxu0 0
        %2248 = vmatpush1.bf16.msra.mxu0 0
        %2249 = vmatprep.subr.bf16.mxu0 0
        %2250 = vmatpush1.bf16.msra.mxu0 0
        %2251 = vmatprep.subr.bf16.mxu0 0
        %2252 = vmatpush1.bf16.msra.mxu0 0
        %2253 = vmatprep.subr.bf16.mxu0 0
        %2254 = vmatpush1.bf16.msra.mxu0 0
        %2255 = vmatprep.subr.bf16.mxu0 0
        %2256 = vmatpush1.bf16.msra.mxu0 0
        %2257 = vmatprep.subr.bf16.mxu0 0
        %2258 = vmatpush1.bf16.msra.mxu0 0
        %2259 = vmatprep.mubr.bf16.mxu0 0
        %2260 = vmatmul.mubr.bf16.gmra.mrb[0].mxu0 %v2225
        %v2261 = vpop.f32.mrb[0].mxu0
        %v2262 = vadd.f32 0.0, %v2261
        %v2263 = vpop.f32.mrb[0].mxu0
        %v2264 = vpop.f32.mrb[0].mxu0
        %v2265 = vadd.f32 0.0, %v2264
        %v2266 = vpop.f32.mrb[0].mxu0
        %2267 = vdwg.mxu0
        %v2272 = vunpack.c.l.b16 %v1764
        %v2273 = vunpack.c.l.b16 %v1765
        %v2274 = vunpack.c.l.b16 %v1766
        %v2275 = vunpack.c.l.b16 %v1767
        %v2276 = vpack.c.b16 %v2273, %v2272
        %v2277 = vpack.c.b16 %v2275, %v2274
        %v2281 = vsel %vm883, %v2209, 0
        %2283 = vmatprep.subr.bf16.mxu0 0
        %2284 = vmatpush1.bf16.msra.mxu0 %v2276
        %2285 = vmatprep.subr.bf16.mxu0 0
        %2286 = vmatpush1.bf16.msra.mxu0 %v2277
        %2287 = vmatprep.subr.bf16.mxu0 0
        %2288 = vmatpush1.bf16.msra.mxu0 0
        %2289 = vmatprep.subr.bf16.mxu0 0
        %2290 = vmatpush1.bf16.msra.mxu0 0
        %2291 = vmatprep.subr.bf16.mxu0 0
        %2292 = vmatpush1.bf16.msra.mxu0 0
        %2293 = vmatprep.subr.bf16.mxu0 0
        %2294 = vmatpush1.bf16.msra.mxu0 0
        %2295 = vmatprep.subr.bf16.mxu0 0
        %2296 = vmatpush1.bf16.msra.mxu0 0
        %2297 = vmatprep.subr.bf16.mxu0 0
        %2298 = vmatpush1.bf16.msra.mxu0 0
        %2299 = vmatprep.subr.bf16.mxu0 0
        %2300 = vmatpush1.bf16.msra.mxu0 0
        %2301 = vmatprep.subr.bf16.mxu0 0
        %2302 = vmatpush1.bf16.msra.mxu0 0
        %2303 = vmatprep.subr.bf16.mxu0 0
        %2304 = vmatpush1.bf16.msra.mxu0 0
        %2305 = vmatprep.subr.bf16.mxu0 0
        %2306 = vmatpush1.bf16.msra.mxu0 0
        %2307 = vmatprep.subr.bf16.mxu0 0
        %2308 = vmatpush1.bf16.msra.mxu0 0
        %2309 = vmatprep.subr.bf16.mxu0 0
        %2310 = vmatpush1.bf16.msra.mxu0 0
        %2311 = vmatprep.subr.bf16.mxu0 0
        %2312 = vmatpush1.bf16.msra.mxu0 0
        %2313 = vmatprep.subr.bf16.mxu0 0
        %2314 = vmatpush1.bf16.msra.mxu0 0
        %2315 = vmatprep.mubr.bf16.mxu0 0
        %2316 = vmatmul.mubr.bf16.gmra.mrb[0].mxu0 %v2281
        %v2317 = vpop.f32.mrb[0].mxu0
        %v2318 = vadd.f32 0.0, %v2317
        %v2319 = vpop.f32.mrb[0].mxu0
        %v2320 = vpop.f32.mrb[0].mxu0
        %v2321 = vadd.f32 0.0, %v2320
        %v2322 = vpop.f32.mrb[0].mxu0
        %2323 = vdwg.mxu0
        %v2328 = vunpack.c.l.b16 %v1768
        %v2329 = vunpack.c.l.b16 %v1769
        %v2330 = vunpack.c.l.b16 %v1770
        %v2331 = vunpack.c.l.b16 %v1771
        %v2332 = vpack.c.b16 %v2329, %v2328
        %v2333 = vpack.c.b16 %v2331, %v2330
        %v2337 = vsel %vm883, %v2210, 0
        %2339 = vmatprep.subr.bf16.mxu0 0
        %2340 = vmatpush1.bf16.msra.mxu0 %v2332
        %2341 = vmatprep.subr.bf16.mxu0 0
        %2342 = vmatpush1.bf16.msra.mxu0 %v2333
        %2343 = vmatprep.subr.bf16.mxu0 0
        %2344 = vmatpush1.bf16.msra.mxu0 0
        %2345 = vmatprep.subr.bf16.mxu0 0
        %2346 = vmatpush1.bf16.msra.mxu0 0
        %2347 = vmatprep.subr.bf16.mxu0 0
        %2348 = vmatpush1.bf16.msra.mxu0 0
        %2349 = vmatprep.subr.bf16.mxu0 0
        %2350 = vmatpush1.bf16.msra.mxu0 0
        %2351 = vmatprep.subr.bf16.mxu0 0
        %2352 = vmatpush1.bf16.msra.mxu0 0
        %2353 = vmatprep.subr.bf16.mxu0 0
        %2354 = vmatpush1.bf16.msra.mxu0 0
        %2355 = vmatprep.subr.bf16.mxu0 0
        %2356 = vmatpush1.bf16.msra.mxu0 0
        %2357 = vmatprep.subr.bf16.mxu0 0
        %2358 = vmatpush1.bf16.msra.mxu0 0
        %2359 = vmatprep.subr.bf16.mxu0 0
        %2360 = vmatpush1.bf16.msra.mxu0 0
        %2361 = vmatprep.subr.bf16.mxu0 0
        %2362 = vmatpush1.bf16.msra.mxu0 0
        %2363 = vmatprep.subr.bf16.mxu0 0
        %2364 = vmatpush1.bf16.msra.mxu0 0
        %2365 = vmatprep.subr.bf16.mxu0 0
        %2366 = vmatpush1.bf16.msra.mxu0 0
        %2367 = vmatprep.subr.bf16.mxu0 0
        %2368 = vmatpush1.bf16.msra.mxu0 0
        %2369 = vmatprep.subr.bf16.mxu0 0
        %2370 = vmatpush1.bf16.msra.mxu0 0
        %2371 = vmatprep.mubr.bf16.mxu0 0
        %2372 = vmatmul.mubr.bf16.gmra.mrb[0].mxu0 %v2337
        %v2373 = vpop.f32.mrb[0].mxu0
        %v2374 = vadd.f32 0.0, %v2373
        %v2375 = vpop.f32.mrb[0].mxu0
        %v2376 = vpop.f32.mrb[0].mxu0
        %v2377 = vadd.f32 0.0, %v2376
        %v2378 = vpop.f32.mrb[0].mxu0
        %2379 = vdwg.mxu0
        %v2384 = vunpack.c.l.b16 %v1772
        %v2385 = vunpack.c.l.b16 %v1773
        %v2386 = vunpack.c.l.b16 %v1774
        %v2387 = vunpack.c.l.b16 %v1775
        %v2388 = vpack.c.b16 %v2385, %v2384
        %v2389 = vpack.c.b16 %v2387, %v2386
        %v2393 = vsel %vm883, %v2211, 0
        %2395 = vmatprep.subr.bf16.mxu0 0
        %2396 = vmatpush1.bf16.msra.mxu0 %v2388
        %2397 = vmatprep.subr.bf16.mxu0 0
        %2398 = vmatpush1.bf16.msra.mxu0 %v2389
        %2399 = vmatprep.subr.bf16.mxu0 0
        %2400 = vmatpush1.bf16.msra.mxu0 0
        %2401 = vmatprep.subr.bf16.mxu0 0
        %2402 = vmatpush1.bf16.msra.mxu0 0
        %2403 = vmatprep.subr.bf16.mxu0 0
        %2404 = vmatpush1.bf16.msra.mxu0 0
        %2405 = vmatprep.subr.bf16.mxu0 0
        %2406 = vmatpush1.bf16.msra.mxu0 0
        %2407 = vmatprep.subr.bf16.mxu0 0
        %2408 = vmatpush1.bf16.msra.mxu0 0
        %2409 = vmatprep.subr.bf16.mxu0 0
        %2410 = vmatpush1.bf16.msra.mxu0 0
        %2411 = vmatprep.subr.bf16.mxu0 0
        %2412 = vmatpush1.bf16.msra.mxu0 0
        %2413 = vmatprep.subr.bf16.mxu0 0
        %2414 = vmatpush1.bf16.msra.mxu0 0
        %2415 = vmatprep.subr.bf16.mxu0 0
        %2416 = vmatpush1.bf16.msra.mxu0 0
        %2417 = vmatprep.subr.bf16.mxu0 0
        %2418 = vmatpush1.bf16.msra.mxu0 0
        %2419 = vmatprep.subr.bf16.mxu0 0
        %2420 = vmatpush1.bf16.msra.mxu0 0
        %2421 = vmatprep.subr.bf16.mxu0 0
        %2422 = vmatpush1.bf16.msra.mxu0 0
        %2423 = vmatprep.subr.bf16.mxu0 0
        %2424 = vmatpush1.bf16.msra.mxu0 0
        %2425 = vmatprep.subr.bf16.mxu0 0
        %2426 = vmatpush1.bf16.msra.mxu0 0
        %2427 = vmatprep.mubr.bf16.mxu0 0
        %2428 = vmatmul.mubr.bf16.gmra.mrb[0].mxu0 %v2393
        %v2429 = vpop.f32.mrb[0].mxu0
        %v2430 = vadd.f32 0.0, %v2429
        %v2431 = vpop.f32.mrb[0].mxu0
        %v2432 = vpop.f32.mrb[0].mxu0
        %v2433 = vadd.f32 0.0, %v2432
        %v2434 = vpop.f32.mrb[0].mxu0
        %2435 = vdwg.mxu0
        %v2436 = vpack.c.bf16 %v2265, %v2262
        %v2437 = vpack.c.bf16 %v2321, %v2318
        %v2438 = vpack.c.bf16 %v2377, %v2374
        %v2439 = vpack.c.bf16 %v2433, %v2430
        %2440 = vmatprep.subr.bf16.mxu0 0
        %2441 = vmatpush1.bf16.msra.mxu0 %v2436
        %2442 = vmatprep.subr.bf16.mxu0 0
        %2443 = vmatpush1.bf16.msra.mxu0 0
        %2444 = vmatprep.subr.bf16.mxu0 0
        %2445 = vmatpush1.bf16.msra.mxu0 0
        %2446 = vmatprep.subr.bf16.mxu0 0
        %2447 = vmatpush1.bf16.msra.mxu0 0
        %2448 = vmatprep.subr.bf16.mxu0 0
        %2449 = vmatpush1.bf16.msra.mxu0 0
        %2450 = vmatprep.subr.bf16.mxu0 0
        %2451 = vmatpush1.bf16.msra.mxu0 0
        %2452 = vmatprep.subr.bf16.mxu0 0
        %2453 = vmatpush1.bf16.msra.mxu0 0
        %2454 = vmatprep.subr.bf16.mxu0 0
        %2455 = vmatpush1.bf16.msra.mxu0 0
        %2456 = vmatprep.subr.bf16.mxu0 0
        %2457 = vmatpush1.bf16.msra.mxu0 0
        %2458 = vmatprep.subr.bf16.mxu0 0
        %2459 = vmatpush1.bf16.msra.mxu0 0
        %2460 = vmatprep.subr.bf16.mxu0 0
        %2461 = vmatpush1.bf16.msra.mxu0 0
        %2462 = vmatprep.subr.bf16.mxu0 0
        %2463 = vmatpush1.bf16.msra.mxu0 0
        %2464 = vmatprep.subr.bf16.mxu0 0
        %2465 = vmatpush1.bf16.msra.mxu0 0
        %2466 = vmatprep.subr.bf16.mxu0 0
        %2467 = vmatpush1.bf16.msra.mxu0 0
        %2468 = vmatprep.subr.bf16.mxu0 0
        %2469 = vmatpush1.bf16.msra.mxu0 0
        %2470 = vmatprep.subr.bf16.mxu0 0
        %2471 = vmatpush1.bf16.msra.mxu0 0
        %2472 = vmatprep.mubr.bf16.mxu0 0
        %2473 = vmatmul.mubr.bf16.gmra.mrb[0].mxu0 %v2010
        %v2474 = vpop.f32.mrb[0].mxu0
        %v2475 = vadd.f32 0.0, %v2474
        %v2476 = vpop.f32.mrb[0].mxu0
        %v2477 = vpop.f32.mrb[0].mxu0
        %v2478 = vadd.f32 0.0, %v2477
        %v2479 = vpop.f32.mrb[0].mxu0
        %2480 = vdwg.mxu0
        %2481 = vmatprep.subr.bf16.mxu0 0
        %2482 = vmatpush1.bf16.msra.mxu0 %v2437
        %2483 = vmatprep.subr.bf16.mxu0 0
        %2484 = vmatpush1.bf16.msra.mxu0 0
        %2485 = vmatprep.subr.bf16.mxu0 0
        %2486 = vmatpush1.bf16.msra.mxu0 0
        %2487 = vmatprep.subr.bf16.mxu0 0
        %2488 = vmatpush1.bf16.msra.mxu0 0
        %2489 = vmatprep.subr.bf16.mxu0 0
        %2490 = vmatpush1.bf16.msra.mxu0 0
        %2491 = vmatprep.subr.bf16.mxu0 0
        %2492 = vmatpush1.bf16.msra.mxu0 0
        %2493 = vmatprep.subr.bf16.mxu0 0
        %2494 = vmatpush1.bf16.msra.mxu0 0
        %2495 = vmatprep.subr.bf16.mxu0 0
        %2496 = vmatpush1.bf16.msra.mxu0 0
        %2497 = vmatprep.subr.bf16.mxu0 0
        %2498 = vmatpush1.bf16.msra.mxu0 0
        %2499 = vmatprep.subr.bf16.mxu0 0
        %2500 = vmatpush1.bf16.msra.mxu0 0
        %2501 = vmatprep.subr.bf16.mxu0 0
        %2502 = vmatpush1.bf16.msra.mxu0 0
        %2503 = vmatprep.subr.bf16.mxu0 0
        %2504 = vmatpush1.bf16.msra.mxu0 0
        %2505 = vmatprep.subr.bf16.mxu0 0
        %2506 = vmatpush1.bf16.msra.mxu0 0
        %2507 = vmatprep.subr.bf16.mxu0 0
        %2508 = vmatpush1.bf16.msra.mxu0 0
        %2509 = vmatprep.subr.bf16.mxu0 0
        %2510 = vmatpush1.bf16.msra.mxu0 0
        %2511 = vmatprep.subr.bf16.mxu0 0
        %2512 = vmatpush1.bf16.msra.mxu0 0
        %2513 = vmatprep.mubr.bf16.mxu0 0
        %2514 = vmatmul.mubr.bf16.gmra.mrb[0].mxu0 %v2059
        %v2515 = vpop.f32.mrb[0].mxu0
        %v2516 = vadd.f32 0.0, %v2515
        %v2517 = vpop.f32.mrb[0].mxu0
        %v2518 = vpop.f32.mrb[0].mxu0
        %v2519 = vadd.f32 0.0, %v2518
        %v2520 = vpop.f32.mrb[0].mxu0
        %2521 = vdwg.mxu0
        %2522 = vmatprep.subr.bf16.mxu0 0
        %2523 = vmatpush1.bf16.msra.mxu0 %v2438
        %2524 = vmatprep.subr.bf16.mxu0 0
        %2525 = vmatpush1.bf16.msra.mxu0 0
        %2526 = vmatprep.subr.bf16.mxu0 0
        %2527 = vmatpush1.bf16.msra.mxu0 0
        %2528 = vmatprep.subr.bf16.mxu0 0
        %2529 = vmatpush1.bf16.msra.mxu0 0
        %2530 = vmatprep.subr.bf16.mxu0 0
        %2531 = vmatpush1.bf16.msra.mxu0 0
        %2532 = vmatprep.subr.bf16.mxu0 0
        %2533 = vmatpush1.bf16.msra.mxu0 0
        %2534 = vmatprep.subr.bf16.mxu0 0
        %2535 = vmatpush1.bf16.msra.mxu0 0
        %2536 = vmatprep.subr.bf16.mxu0 0
        %2537 = vmatpush1.bf16.msra.mxu0 0
        %2538 = vmatprep.subr.bf16.mxu0 0
        %2539 = vmatpush1.bf16.msra.mxu0 0
        %2540 = vmatprep.subr.bf16.mxu0 0
        %2541 = vmatpush1.bf16.msra.mxu0 0
        %2542 = vmatprep.subr.bf16.mxu0 0
        %2543 = vmatpush1.bf16.msra.mxu0 0
        %2544 = vmatprep.subr.bf16.mxu0 0
        %2545 = vmatpush1.bf16.msra.mxu0 0
        %2546 = vmatprep.subr.bf16.mxu0 0
        %2547 = vmatpush1.bf16.msra.mxu0 0
        %2548 = vmatprep.subr.bf16.mxu0 0
        %2549 = vmatpush1.bf16.msra.mxu0 0
        %2550 = vmatprep.subr.bf16.mxu0 0
        %2551 = vmatpush1.bf16.msra.mxu0 0
        %2552 = vmatprep.subr.bf16.mxu0 0
        %2553 = vmatpush1.bf16.msra.mxu0 0
        %2554 = vmatprep.mubr.bf16.mxu0 0
        %2555 = vmatmul.mubr.bf16.gmra.mrb[0].mxu0 %v2108
        %v2556 = vpop.f32.mrb[0].mxu0
        %v2557 = vadd.f32 0.0, %v2556
        %v2558 = vpop.f32.mrb[0].mxu0
        %v2559 = vpop.f32.mrb[0].mxu0
        %v2560 = vadd.f32 0.0, %v2559
        %v2561 = vpop.f32.mrb[0].mxu0
        %2562 = vdwg.mxu0
        %2563 = vmatprep.subr.bf16.mxu0 0
        %2564 = vmatpush1.bf16.msra.mxu0 %v2439
        %2565 = vmatprep.subr.bf16.mxu0 0
        %2566 = vmatpush1.bf16.msra.mxu0 0
        %2567 = vmatprep.subr.bf16.mxu0 0
        %2568 = vmatpush1.bf16.msra.mxu0 0
        %2569 = vmatprep.subr.bf16.mxu0 0
        %2570 = vmatpush1.bf16.msra.mxu0 0
        %2571 = vmatprep.subr.bf16.mxu0 0
        %2572 = vmatpush1.bf16.msra.mxu0 0
        %2573 = vmatprep.subr.bf16.mxu0 0
        %2574 = vmatpush1.bf16.msra.mxu0 0
        %2575 = vmatprep.subr.bf16.mxu0 0
        %2576 = vmatpush1.bf16.msra.mxu0 0
        %2577 = vmatprep.subr.bf16.mxu0 0
        %2578 = vmatpush1.bf16.msra.mxu0 0
        %2579 = vmatprep.subr.bf16.mxu0 0
        %2580 = vmatpush1.bf16.msra.mxu0 0
        %2581 = vmatprep.subr.bf16.mxu0 0
        %2582 = vmatpush1.bf16.msra.mxu0 0
        %2583 = vmatprep.subr.bf16.mxu0 0
        %2584 = vmatpush1.bf16.msra.mxu0 0
        %2585 = vmatprep.subr.bf16.mxu0 0
        %2586 = vmatpush1.bf16.msra.mxu0 0
        %2587 = vmatprep.subr.bf16.mxu0 0
        %2588 = vmatpush1.bf16.msra.mxu0 0
        %2589 = vmatprep.subr.bf16.mxu0 0
        %2590 = vmatpush1.bf16.msra.mxu0 0
        %2591 = vmatprep.subr.bf16.mxu0 0
        %2592 = vmatpush1.bf16.msra.mxu0 0
        %2593 = vmatprep.subr.bf16.mxu0 0
        %2594 = vmatpush1.bf16.msra.mxu0 0
        %2595 = vmatprep.mubr.bf16.mxu0 0
        %2596 = vmatmul.mubr.bf16.gmra.mrb[0].mxu0 %v2157
        %v2597 = vpop.f32.mrb[0].mxu0
        %v2598 = vadd.f32 0.0, %v2597
        %v2599 = vpop.f32.mrb[0].mxu0
        %v2600 = vpop.f32.mrb[0].mxu0
        %v2601 = vadd.f32 0.0, %v2600
        %v2602 = vpop.f32.mrb[0].mxu0
        %2603 = vdwg.mxu0
        %v2604 = vmax.f32 %v2475, 0.0
        %v2605 = vmax.f32 %v2478, 0.0
        %v2606 = vmax.f32 %v2516, 0.0
        %v2607 = vmax.f32 %v2519, 0.0
        %v2608 = vmax.f32 %v2557, 0.0
        %v2609 = vmax.f32 %v2560, 0.0
        %v2610 = vmax.f32 %v2598, 0.0
        %v2611 = vmax.f32 %v2601, 0.0
        %v2612 = vadd.f32 %v2604, %v2200
        %v2613 = vadd.f32 %v2605, %v2201
        %v2614 = vadd.f32 %v2606, %v2202
        %v2615 = vadd.f32 %v2607, %v2203
        %v2616 = vadd.f32 %v2608, %v2204
        %v2617 = vadd.f32 %v2609, %v2205
        %v2618 = vadd.f32 %v2610, %v2206
        %v2619 = vadd.f32 %v2611, %v2207
        %v2620 = vmul.f32 %v2612, 0.2
        %v2621 = vmul.f32 %v2613, 0.2
        %v2622 = vmul.f32 %v2614, 0.2
        %v2623 = vmul.f32 %v2615, 0.2
        %v2624 = vmul.f32 %v2616, 0.2
        %v2625 = vmul.f32 %v2617, 0.2
        %v2626 = vmul.f32 %v2618, 0.2
        %v2627 = vmul.f32 %v2619, 0.2
        %v2628 = vadd.f32 %v1732, %v2620
        %v2629 = vadd.f32 %v1733, %v2621
        %v2630 = vadd.f32 %v1734, %v2622
        %v2631 = vadd.f32 %v1735, %v2623
        %v2632 = vadd.f32 %v1736, %v2624
        %v2633 = vadd.f32 %v1737, %v2625
        %v2634 = vadd.f32 %v1738, %v2626
        %v2635 = vadd.f32 %v1739, %v2627
        %v2636 = vpack.c.bf16 %v2613, %v2612
        %v2637 = vpack.c.bf16 %v2615, %v2614
        %v2638 = vpack.c.bf16 %v2617, %v2616
        %v2639 = vpack.c.bf16 %v2619, %v2618
        %v2640 = vld [vmem:[%s695] sm:$0xf]
        %v2641 = vld [vmem:[%s695 + $0x4] sm:$0xf]
        %v2642 = vld [vmem:[%s695 + $0x8] sm:$0xf]
        %v2643 = vld [vmem:[%s695 + $0xc] sm:$0xf]
        %v2644 = vld [vmem:[%s695 + $0x10] sm:$0xf]
        %v2645 = vld [vmem:[%s695 + $0x14] sm:$0xf]
        %v2646 = vld [vmem:[%s695 + $0x18] sm:$0xf]
        %v2647 = vld [vmem:[%s695 + $0x1c] sm:$0xf]
        %v2648 = vld [vmem:[%s695 + $0x20] sm:$0xf]
        %v2649 = vld [vmem:[%s695 + $0x24] sm:$0xf]
        %v2650 = vld [vmem:[%s695 + $0x28] sm:$0xf]
        %v2651 = vld [vmem:[%s695 + $0x2c] sm:$0xf]
        %v2652 = vld [vmem:[%s695 + $0x30] sm:$0xf]
        %v2653 = vld [vmem:[%s695 + $0x34] sm:$0xf]
        %v2654 = vld [vmem:[%s695 + $0x38] sm:$0xf]
        %v2655 = vld [vmem:[%s695 + $0x3c] sm:$0xf]
        %v2656 = vld [vmem:[%s704] sm:$0xf]
        %v2657 = vld [vmem:[%s704 + $0x4] sm:$0xf]
        %v2658 = vld [vmem:[%s704 + $0x8] sm:$0xf]
        %v2659 = vld [vmem:[%s704 + $0xc] sm:$0xf]
        %v2660 = vld [vmem:[%s704 + $0x10] sm:$0xf]
        %v2661 = vld [vmem:[%s704 + $0x14] sm:$0xf]
        %v2662 = vld [vmem:[%s704 + $0x18] sm:$0xf]
        %v2663 = vld [vmem:[%s704 + $0x1c] sm:$0xf]
        %v2664 = vld [vmem:[%s704 + $0x20] sm:$0xf]
        %v2665 = vld [vmem:[%s704 + $0x24] sm:$0xf]
        %v2666 = vld [vmem:[%s704 + $0x28] sm:$0xf]
        %v2667 = vld [vmem:[%s704 + $0x2c] sm:$0xf]
        %v2668 = vld [vmem:[%s704 + $0x30] sm:$0xf]
        %v2669 = vld [vmem:[%s704 + $0x34] sm:$0xf]
        %v2670 = vld [vmem:[%s704 + $0x38] sm:$0xf]
        %v2671 = vld [vmem:[%s704 + $0x3c] sm:$0xf]
        %v2676 = vunpack.c.l.b16 %v2640
        %v2677 = vunpack.c.l.b16 %v2641
        %v2678 = vunpack.c.l.b16 %v2642
        %v2679 = vunpack.c.l.b16 %v2643
        %v2680 = vpack.c.b16 %v2677, %v2676
        %v2681 = vpack.c.b16 %v2679, %v2678
        %v2685 = vsel %vm883, %v2636, 0
        %2687 = vmatprep.subr.bf16.mxu0 0
        %2688 = vmatpush1.bf16.msra.mxu0 %v2680
        %2689 = vmatprep.subr.bf16.mxu0 0
        %2690 = vmatpush1.bf16.msra.mxu0 %v2681
        %2691 = vmatprep.subr.bf16.mxu0 0
        %2692 = vmatpush1.bf16.msra.mxu0 0
        %2693 = vmatprep.subr.bf16.mxu0 0
        %2694 = vmatpush1.bf16.msra.mxu0 0
        %2695 = vmatprep.subr.bf16.mxu0 0
        %2696 = vmatpush1.bf16.msra.mxu0 0
        %2697 = vmatprep.subr.bf16.mxu0 0
        %2698 = vmatpush1.bf16.msra.mxu0 0
        %2699 = vmatprep.subr.bf16.mxu0 0
        %2700 = vmatpush1.bf16.msra.mxu0 0
        %2701 = vmatprep.subr.bf16.mxu0 0
        %2702 = vmatpush1.bf16.msra.mxu0 0
        %2703 = vmatprep.subr.bf16.mxu0 0
        %2704 = vmatpush1.bf16.msra.mxu0 0
        %2705 = vmatprep.subr.bf16.mxu0 0
        %2706 = vmatpush1.bf16.msra.mxu0 0
        %2707 = vmatprep.subr.bf16.mxu0 0
        %2708 = vmatpush1.bf16.msra.mxu0 0
        %2709 = vmatprep.subr.bf16.mxu0 0
        %2710 = vmatpush1.bf16.msra.mxu0 0
        %2711 = vmatprep.subr.bf16.mxu0 0
        %2712 = vmatpush1.bf16.msra.mxu0 0
        %2713 = vmatprep.subr.bf16.mxu0 0
        %2714 = vmatpush1.bf16.msra.mxu0 0
        %2715 = vmatprep.subr.bf16.mxu0 0
        %2716 = vmatpush1.bf16.msra.mxu0 0
        %2717 = vmatprep.subr.bf16.mxu0 0
        %2718 = vmatpush1.bf16.msra.mxu0 0
        %2719 = vmatprep.mubr.bf16.mxu0 0
        %2720 = vmatmul.mubr.bf16.gmra.mrb[0].mxu0 %v2685
        %v2721 = vpop.f32.mrb[0].mxu0
        %v2722 = vadd.f32 0.0, %v2721
        %v2723 = vpop.f32.mrb[0].mxu0
        %v2724 = vpop.f32.mrb[0].mxu0
        %v2725 = vadd.f32 0.0, %v2724
        %v2726 = vpop.f32.mrb[0].mxu0
        %2727 = vdwg.mxu0
        %v2732 = vunpack.c.l.b16 %v2644
        %v2733 = vunpack.c.l.b16 %v2645
        %v2734 = vunpack.c.l.b16 %v2646
        %v2735 = vunpack.c.l.b16 %v2647
        %v2736 = vpack.c.b16 %v2733, %v2732
        %v2737 = vpack.c.b16 %v2735, %v2734
        %v2741 = vsel %vm883, %v2637, 0
        %2743 = vmatprep.subr.bf16.mxu0 0
        %2744 = vmatpush1.bf16.msra.mxu0 %v2736
        %2745 = vmatprep.subr.bf16.mxu0 0
        %2746 = vmatpush1.bf16.msra.mxu0 %v2737
        %2747 = vmatprep.subr.bf16.mxu0 0
        %2748 = vmatpush1.bf16.msra.mxu0 0
        %2749 = vmatprep.subr.bf16.mxu0 0
        %2750 = vmatpush1.bf16.msra.mxu0 0
        %2751 = vmatprep.subr.bf16.mxu0 0
        %2752 = vmatpush1.bf16.msra.mxu0 0
        %2753 = vmatprep.subr.bf16.mxu0 0
        %2754 = vmatpush1.bf16.msra.mxu0 0
        %2755 = vmatprep.subr.bf16.mxu0 0
        %2756 = vmatpush1.bf16.msra.mxu0 0
        %2757 = vmatprep.subr.bf16.mxu0 0
        %2758 = vmatpush1.bf16.msra.mxu0 0
        %2759 = vmatprep.subr.bf16.mxu0 0
        %2760 = vmatpush1.bf16.msra.mxu0 0
        %2761 = vmatprep.subr.bf16.mxu0 0
        %2762 = vmatpush1.bf16.msra.mxu0 0
        %2763 = vmatprep.subr.bf16.mxu0 0
        %2764 = vmatpush1.bf16.msra.mxu0 0
        %2765 = vmatprep.subr.bf16.mxu0 0
        %2766 = vmatpush1.bf16.msra.mxu0 0
        %2767 = vmatprep.subr.bf16.mxu0 0
        %2768 = vmatpush1.bf16.msra.mxu0 0
        %2769 = vmatprep.subr.bf16.mxu0 0
        %2770 = vmatpush1.bf16.msra.mxu0 0
        %2771 = vmatprep.subr.bf16.mxu0 0
        %2772 = vmatpush1.bf16.msra.mxu0 0
        %2773 = vmatprep.subr.bf16.mxu0 0
        %2774 = vmatpush1.bf16.msra.mxu0 0
        %2775 = vmatprep.mubr.bf16.mxu0 0
        %2776 = vmatmul.mubr.bf16.gmra.mrb[0].mxu0 %v2741
        %v2777 = vpop.f32.mrb[0].mxu0
        %v2778 = vadd.f32 0.0, %v2777
        %v2779 = vpop.f32.mrb[0].mxu0
        %v2780 = vpop.f32.mrb[0].mxu0
        %v2781 = vadd.f32 0.0, %v2780
        %v2782 = vpop.f32.mrb[0].mxu0
        %2783 = vdwg.mxu0
        %v2788 = vunpack.c.l.b16 %v2648
        %v2789 = vunpack.c.l.b16 %v2649
        %v2790 = vunpack.c.l.b16 %v2650
        %v2791 = vunpack.c.l.b16 %v2651
        %v2792 = vpack.c.b16 %v2789, %v2788
        %v2793 = vpack.c.b16 %v2791, %v2790
        %v2797 = vsel %vm883, %v2638, 0
        %2799 = vmatprep.subr.bf16.mxu0 0
        %2800 = vmatpush1.bf16.msra.mxu0 %v2792
        %2801 = vmatprep.subr.bf16.mxu0 0
        %2802 = vmatpush1.bf16.msra.mxu0 %v2793
        %2803 = vmatprep.subr.bf16.mxu0 0
        %2804 = vmatpush1.bf16.msra.mxu0 0
        %2805 = vmatprep.subr.bf16.mxu0 0
        %2806 = vmatpush1.bf16.msra.mxu0 0
        %2807 = vmatprep.subr.bf16.mxu0 0
        %2808 = vmatpush1.bf16.msra.mxu0 0
        %2809 = vmatprep.subr.bf16.mxu0 0
        %2810 = vmatpush1.bf16.msra.mxu0 0
        %2811 = vmatprep.subr.bf16.mxu0 0
        %2812 = vmatpush1.bf16.msra.mxu0 0
        %2813 = vmatprep.subr.bf16.mxu0 0
        %2814 = vmatpush1.bf16.msra.mxu0 0
        %2815 = vmatprep.subr.bf16.mxu0 0
        %2816 = vmatpush1.bf16.msra.mxu0 0
        %2817 = vmatprep.subr.bf16.mxu0 0
        %2818 = vmatpush1.bf16.msra.mxu0 0
        %2819 = vmatprep.subr.bf16.mxu0 0
        %2820 = vmatpush1.bf16.msra.mxu0 0
        %2821 = vmatprep.subr.bf16.mxu0 0
        %2822 = vmatpush1.bf16.msra.mxu0 0
        %2823 = vmatprep.subr.bf16.mxu0 0
        %2824 = vmatpush1.bf16.msra.mxu0 0
        %2825 = vmatprep.subr.bf16.mxu0 0
        %2826 = vmatpush1.bf16.msra.mxu0 0
        %2827 = vmatprep.subr.bf16.mxu0 0
        %2828 = vmatpush1.bf16.msra.mxu0 0
        %2829 = vmatprep.subr.bf16.mxu0 0
        %2830 = vmatpush1.bf16.msra.mxu0 0
        %2831 = vmatprep.mubr.bf16.mxu0 0
        %2832 = vmatmul.mubr.bf16.gmra.mrb[0].mxu0 %v2797
        %v2833 = vpop.f32.mrb[0].mxu0
        %v2834 = vadd.f32 0.0, %v2833
        %v2835 = vpop.f32.mrb[0].mxu0
        %v2836 = vpop.f32.mrb[0].mxu0
        %v2837 = vadd.f32 0.0, %v2836
        %v2838 = vpop.f32.mrb[0].mxu0
        %2839 = vdwg.mxu0
        %v2844 = vunpack.c.l.b16 %v2652
        %v2845 = vunpack.c.l.b16 %v2653
        %v2846 = vunpack.c.l.b16 %v2654
        %v2847 = vunpack.c.l.b16 %v2655
        %v2848 = vpack.c.b16 %v2845, %v2844
        %v2849 = vpack.c.b16 %v2847, %v2846
        %v2853 = vsel %vm883, %v2639, 0
        %2855 = vmatprep.subr.bf16.mxu0 0
        %2856 = vmatpush1.bf16.msra.mxu0 %v2848
        %2857 = vmatprep.subr.bf16.mxu0 0
        %2858 = vmatpush1.bf16.msra.mxu0 %v2849
        %2859 = vmatprep.subr.bf16.mxu0 0
        %2860 = vmatpush1.bf16.msra.mxu0 0
        %2861 = vmatprep.subr.bf16.mxu0 0
        %2862 = vmatpush1.bf16.msra.mxu0 0
        %2863 = vmatprep.subr.bf16.mxu0 0
        %2864 = vmatpush1.bf16.msra.mxu0 0
        %2865 = vmatprep.subr.bf16.mxu0 0
        %2866 = vmatpush1.bf16.msra.mxu0 0
        %2867 = vmatprep.subr.bf16.mxu0 0
        %2868 = vmatpush1.bf16.msra.mxu0 0
        %2869 = vmatprep.subr.bf16.mxu0 0
        %2870 = vmatpush1.bf16.msra.mxu0 0
        %2871 = vmatprep.subr.bf16.mxu0 0
        %2872 = vmatpush1.bf16.msra.mxu0 0
        %2873 = vmatprep.subr.bf16.mxu0 0
        %2874 = vmatpush1.bf16.msra.mxu0 0
        %2875 = vmatprep.subr.bf16.mxu0 0
        %2876 = vmatpush1.bf16.msra.mxu0 0
        %2877 = vmatprep.subr.bf16.mxu0 0
        %2878 = vmatpush1.bf16.msra.mxu0 0
        %2879 = vmatprep.subr.bf16.mxu0 0
        %2880 = vmatpush1.bf16.msra.mxu0 0
        %2881 = vmatprep.subr.bf16.mxu0 0
        %2882 = vmatpush1.bf16.msra.mxu0 0
        %2883 = vmatprep.subr.bf16.mxu0 0
        %2884 = vmatpush1.bf16.msra.mxu0 0
        %2885 = vmatprep.subr.bf16.mxu0 0
        %2886 = vmatpush1.bf16.msra.mxu0 0
        %2887 = vmatprep.mubr.bf16.mxu0 0
        %2888 = vmatmul.mubr.bf16.gmra.mrb[0].mxu0 %v2853
        %v2889 = vpop.f32.mrb[0].mxu0
        %v2890 = vadd.f32 0.0, %v2889
        %v2891 = vpop.f32.mrb[0].mxu0
        %v2892 = vpop.f32.mrb[0].mxu0
        %v2893 = vadd.f32 0.0, %v2892
        %v2894 = vpop.f32.mrb[0].mxu0
        %2895 = vdwg.mxu0
        %v2896 = vpack.c.bf16 %v2725, %v2722
        %v2897 = vpack.c.bf16 %v2781, %v2778
        %v2898 = vpack.c.bf16 %v2837, %v2834
        %v2899 = vpack.c.bf16 %v2893, %v2890
        %v2902 = vunpack.c.l.b16 %v826
        %v2903 = vunpack.c.l.b16 %v827
        %v2904 = vpack.c.b16 %v2903, %v2902
        %v2906 = vsel %vm1120, %v2904, 0
        %2908 = vmatprep.subr.bf16.mxu0 0
        %2909 = vmatpush1.bf16.msra.mxu0 %v2896
        %2910 = vmatprep.subr.bf16.mxu0 0
        %2911 = vmatpush1.bf16.msra.mxu0 0
        %2912 = vmatprep.subr.bf16.mxu0 0
        %2913 = vmatpush1.bf16.msra.mxu0 0
        %2914 = vmatprep.subr.bf16.mxu0 0
        %2915 = vmatpush1.bf16.msra.mxu0 0
        %2916 = vmatprep.subr.bf16.mxu0 0
        %2917 = vmatpush1.bf16.msra.mxu0 0
        %2918 = vmatprep.subr.bf16.mxu0 0
        %2919 = vmatpush1.bf16.msra.mxu0 0
        %2920 = vmatprep.subr.bf16.mxu0 0
        %2921 = vmatpush1.bf16.msra.mxu0 0
        %2922 = vmatprep.subr.bf16.mxu0 0
        %2923 = vmatpush1.bf16.msra.mxu0 0
        %2924 = vmatprep.subr.bf16.mxu0 0
        %2925 = vmatpush1.bf16.msra.mxu0 0
        %2926 = vmatprep.subr.bf16.mxu0 0
        %2927 = vmatpush1.bf16.msra.mxu0 0
        %2928 = vmatprep.subr.bf16.mxu0 0
        %2929 = vmatpush1.bf16.msra.mxu0 0
        %2930 = vmatprep.subr.bf16.mxu0 0
        %2931 = vmatpush1.bf16.msra.mxu0 0
        %2932 = vmatprep.subr.bf16.mxu0 0
        %2933 = vmatpush1.bf16.msra.mxu0 0
        %2934 = vmatprep.subr.bf16.mxu0 0
        %2935 = vmatpush1.bf16.msra.mxu0 0
        %2936 = vmatprep.subr.bf16.mxu0 0
        %2937 = vmatpush1.bf16.msra.mxu0 0
        %2938 = vmatprep.subr.bf16.mxu0 0
        %2939 = vmatpush1.bf16.msra.mxu0 0
        %2940 = vmatprep.mubr.bf16.mxu0 0
        %2941 = vmatmul.mubr.bf16.gmra.mrb[0].mxu0 %v2906
        %v2942 = vpop.f32.mrb[0].mxu0
        %v2943 = vadd.f32 0.0, %v2942
        %v2944 = vpop.f32.mrb[0].mxu0
        %v2945 = vpop.f32.mrb[0].mxu0
        %v2946 = vadd.f32 0.0, %v2945
        %v2947 = vpop.f32.mrb[0].mxu0
        %2948 = vdwg.mxu0
        %v2951 = vunpack.c.l.b16 %v828
        %v2952 = vunpack.c.l.b16 %v829
        %v2953 = vpack.c.b16 %v2952, %v2951
        %v2955 = vsel %vm1120, %v2953, 0
        %2957 = vmatprep.subr.bf16.mxu0 0
        %2958 = vmatpush1.bf16.msra.mxu0 %v2897
        %2959 = vmatprep.subr.bf16.mxu0 0
        %2960 = vmatpush1.bf16.msra.mxu0 0
        %2961 = vmatprep.subr.bf16.mxu0 0
        %2962 = vmatpush1.bf16.msra.mxu0 0
        %2963 = vmatprep.subr.bf16.mxu0 0
        %2964 = vmatpush1.bf16.msra.mxu0 0
        %2965 = vmatprep.subr.bf16.mxu0 0
        %2966 = vmatpush1.bf16.msra.mxu0 0
        %2967 = vmatprep.subr.bf16.mxu0 0
        %2968 = vmatpush1.bf16.msra.mxu0 0
        %2969 = vmatprep.subr.bf16.mxu0 0
        %2970 = vmatpush1.bf16.msra.mxu0 0
        %2971 = vmatprep.subr.bf16.mxu0 0
        %2972 = vmatpush1.bf16.msra.mxu0 0
        %2973 = vmatprep.subr.bf16.mxu0 0
        %2974 = vmatpush1.bf16.msra.mxu0 0
        %2975 = vmatprep.subr.bf16.mxu0 0
        %2976 = vmatpush1.bf16.msra.mxu0 0
        %2977 = vmatprep.subr.bf16.mxu0 0
        %2978 = vmatpush1.bf16.msra.mxu0 0
        %2979 = vmatprep.subr.bf16.mxu0 0
        %2980 = vmatpush1.bf16.msra.mxu0 0
        %2981 = vmatprep.subr.bf16.mxu0 0
        %2982 = vmatpush1.bf16.msra.mxu0 0
        %2983 = vmatprep.subr.bf16.mxu0 0
        %2984 = vmatpush1.bf16.msra.mxu0 0
        %2985 = vmatprep.subr.bf16.mxu0 0
        %2986 = vmatpush1.bf16.msra.mxu0 0
        %2987 = vmatprep.subr.bf16.mxu0 0
        %2988 = vmatpush1.bf16.msra.mxu0 0
        %2989 = vmatprep.mubr.bf16.mxu0 0
        %2990 = vmatmul.mubr.bf16.gmra.mrb[0].mxu0 %v2955
        %v2991 = vpop.f32.mrb[0].mxu0
        %v2992 = vadd.f32 0.0, %v2991
        %v2993 = vpop.f32.mrb[0].mxu0
        %v2994 = vpop.f32.mrb[0].mxu0
        %v2995 = vadd.f32 0.0, %v2994
        %v2996 = vpop.f32.mrb[0].mxu0
        %2997 = vdwg.mxu0
        %v3000 = vunpack.c.l.b16 %v830
        %v3001 = vunpack.c.l.b16 %v831
        %v3002 = vpack.c.b16 %v3001, %v3000
        %v3004 = vsel %vm1120, %v3002, 0
        %3006 = vmatprep.subr.bf16.mxu0 0
        %3007 = vmatpush1.bf16.msra.mxu0 %v2898
        %3008 = vmatprep.subr.bf16.mxu0 0
        %3009 = vmatpush1.bf16.msra.mxu0 0
        %3010 = vmatprep.subr.bf16.mxu0 0
        %3011 = vmatpush1.bf16.msra.mxu0 0
        %3012 = vmatprep.subr.bf16.mxu0 0
        %3013 = vmatpush1.bf16.msra.mxu0 0
        %3014 = vmatprep.subr.bf16.mxu0 0
        %3015 = vmatpush1.bf16.msra.mxu0 0
        %3016 = vmatprep.subr.bf16.mxu0 0
        %3017 = vmatpush1.bf16.msra.mxu0 0
        %3018 = vmatprep.subr.bf16.mxu0 0
        %3019 = vmatpush1.bf16.msra.mxu0 0
        %3020 = vmatprep.subr.bf16.mxu0 0
        %3021 = vmatpush1.bf16.msra.mxu0 0
        %3022 = vmatprep.subr.bf16.mxu0 0
        %3023 = vmatpush1.bf16.msra.mxu0 0
        %3024 = vmatprep.subr.bf16.mxu0 0
        %3025 = vmatpush1.bf16.msra.mxu0 0
        %3026 = vmatprep.subr.bf16.mxu0 0
        %3027 = vmatpush1.bf16.msra.mxu0 0
        %3028 = vmatprep.subr.bf16.mxu0 0
        %3029 = vmatpush1.bf16.msra.mxu0 0
        %3030 = vmatprep.subr.bf16.mxu0 0
        %3031 = vmatpush1.bf16.msra.mxu0 0
        %3032 = vmatprep.subr.bf16.mxu0 0
        %3033 = vmatpush1.bf16.msra.mxu0 0
        %3034 = vmatprep.subr.bf16.mxu0 0
        %3035 = vmatpush1.bf16.msra.mxu0 0
        %3036 = vmatprep.subr.bf16.mxu0 0
        %3037 = vmatpush1.bf16.msra.mxu0 0
        %3038 = vmatprep.mubr.bf16.mxu0 0
        %3039 = vmatmul.mubr.bf16.gmra.mrb[0].mxu0 %v3004
        %v3040 = vpop.f32.mrb[0].mxu0
        %v3041 = vadd.f32 0.0, %v3040
        %v3042 = vpop.f32.mrb[0].mxu0
        %v3043 = vpop.f32.mrb[0].mxu0
        %v3044 = vadd.f32 0.0, %v3043
        %v3045 = vpop.f32.mrb[0].mxu0
        %3046 = vdwg.mxu0
        %v3049 = vunpack.c.l.b16 %v832
        %v3050 = vunpack.c.l.b16 %v833
        %v3051 = vpack.c.b16 %v3050, %v3049
        %v3053 = vsel %vm1120, %v3051, 0
        %3055 = vmatprep.subr.bf16.mxu0 0
        %3056 = vmatpush1.bf16.msra.mxu0 %v2899
        %3057 = vmatprep.subr.bf16.mxu0 0
        %3058 = vmatpush1.bf16.msra.mxu0 0
        %3059 = vmatprep.subr.bf16.mxu0 0
        %3060 = vmatpush1.bf16.msra.mxu0 0
        %3061 = vmatprep.subr.bf16.mxu0 0
        %3062 = vmatpush1.bf16.msra.mxu0 0
        %3063 = vmatprep.subr.bf16.mxu0 0
        %3064 = vmatpush1.bf16.msra.mxu0 0
        %3065 = vmatprep.subr.bf16.mxu0 0
        %3066 = vmatpush1.bf16.msra.mxu0 0
        %3067 = vmatprep.subr.bf16.mxu0 0
        %3068 = vmatpush1.bf16.msra.mxu0 0
        %3069 = vmatprep.subr.bf16.mxu0 0
        %3070 = vmatpush1.bf16.msra.mxu0 0
        %3071 = vmatprep.subr.bf16.mxu0 0
        %3072 = vmatpush1.bf16.msra.mxu0 0
        %3073 = vmatprep.subr.bf16.mxu0 0
        %3074 = vmatpush1.bf16.msra.mxu0 0
        %3075 = vmatprep.subr.bf16.mxu0 0
        %3076 = vmatpush1.bf16.msra.mxu0 0
        %3077 = vmatprep.subr.bf16.mxu0 0
        %3078 = vmatpush1.bf16.msra.mxu0 0
        %3079 = vmatprep.subr.bf16.mxu0 0
        %3080 = vmatpush1.bf16.msra.mxu0 0
        %3081 = vmatprep.subr.bf16.mxu0 0
        %3082 = vmatpush1.bf16.msra.mxu0 0
        %3083 = vmatprep.subr.bf16.mxu0 0
        %3084 = vmatpush1.bf16.msra.mxu0 0
        %3085 = vmatprep.subr.bf16.mxu0 0
        %3086 = vmatpush1.bf16.msra.mxu0 0
        %3087 = vmatprep.mubr.bf16.mxu0 0
        %3088 = vmatmul.mubr.bf16.gmra.mrb[0].mxu0 %v3053
        %v3089 = vpop.f32.mrb[0].mxu0
        %v3090 = vadd.f32 0.0, %v3089
        %v3091 = vpop.f32.mrb[0].mxu0
        %v3092 = vpop.f32.mrb[0].mxu0
        %v3093 = vadd.f32 0.0, %v3092
        %v3094 = vpop.f32.mrb[0].mxu0
        %3095 = vdwg.mxu0
        %v3096 = vmax.f32 %v2943, 0.0
        %v3097 = vmax.f32 %v2946, 0.0
        %v3098 = vmax.f32 %v2992, 0.0
        %v3099 = vmax.f32 %v2995, 0.0
        %v3100 = vmax.f32 %v3041, 0.0
        %v3101 = vmax.f32 %v3044, 0.0
        %v3102 = vmax.f32 %v3090, 0.0
        %v3103 = vmax.f32 %v3093, 0.0
        %v3104 = vpack.c.bf16 %v3097, %v3096
        %v3105 = vpack.c.bf16 %v3099, %v3098
        %v3106 = vpack.c.bf16 %v3101, %v3100
        %v3107 = vpack.c.bf16 %v3103, %v3102
        %v3112 = vunpack.c.l.b16 %v2656
        %v3113 = vunpack.c.l.b16 %v2657
        %v3114 = vunpack.c.l.b16 %v2658
        %v3115 = vunpack.c.l.b16 %v2659
        %v3116 = vpack.c.b16 %v3113, %v3112
        %v3117 = vpack.c.b16 %v3115, %v3114
        %v3121 = vsel %vm883, %v3104, 0
        %3123 = vmatprep.subr.bf16.mxu0 0
        %3124 = vmatpush1.bf16.msra.mxu0 %v3116
        %3125 = vmatprep.subr.bf16.mxu0 0
        %3126 = vmatpush1.bf16.msra.mxu0 %v3117
        %3127 = vmatprep.subr.bf16.mxu0 0
        %3128 = vmatpush1.bf16.msra.mxu0 0
        %3129 = vmatprep.subr.bf16.mxu0 0
        %3130 = vmatpush1.bf16.msra.mxu0 0
        %3131 = vmatprep.subr.bf16.mxu0 0
        %3132 = vmatpush1.bf16.msra.mxu0 0
        %3133 = vmatprep.subr.bf16.mxu0 0
        %3134 = vmatpush1.bf16.msra.mxu0 0
        %3135 = vmatprep.subr.bf16.mxu0 0
        %3136 = vmatpush1.bf16.msra.mxu0 0
        %3137 = vmatprep.subr.bf16.mxu0 0
        %3138 = vmatpush1.bf16.msra.mxu0 0
        %3139 = vmatprep.subr.bf16.mxu0 0
        %3140 = vmatpush1.bf16.msra.mxu0 0
        %3141 = vmatprep.subr.bf16.mxu0 0
        %3142 = vmatpush1.bf16.msra.mxu0 0
        %3143 = vmatprep.subr.bf16.mxu0 0
        %3144 = vmatpush1.bf16.msra.mxu0 0
        %3145 = vmatprep.subr.bf16.mxu0 0
        %3146 = vmatpush1.bf16.msra.mxu0 0
        %3147 = vmatprep.subr.bf16.mxu0 0
        %3148 = vmatpush1.bf16.msra.mxu0 0
        %3149 = vmatprep.subr.bf16.mxu0 0
        %3150 = vmatpush1.bf16.msra.mxu0 0
        %3151 = vmatprep.subr.bf16.mxu0 0
        %3152 = vmatpush1.bf16.msra.mxu0 0
        %3153 = vmatprep.subr.bf16.mxu0 0
        %3154 = vmatpush1.bf16.msra.mxu0 0
        %3155 = vmatprep.mubr.bf16.mxu0 0
        %3156 = vmatmul.mubr.bf16.gmra.mrb[0].mxu0 %v3121
        %v3157 = vpop.f32.mrb[0].mxu0
        %v3158 = vadd.f32 0.0, %v3157
        %v3159 = vpop.f32.mrb[0].mxu0
        %v3160 = vpop.f32.mrb[0].mxu0
        %v3161 = vadd.f32 0.0, %v3160
        %v3162 = vpop.f32.mrb[0].mxu0
        %3163 = vdwg.mxu0
        %v3168 = vunpack.c.l.b16 %v2660
        %v3169 = vunpack.c.l.b16 %v2661
        %v3170 = vunpack.c.l.b16 %v2662
        %v3171 = vunpack.c.l.b16 %v2663
        %v3172 = vpack.c.b16 %v3169, %v3168
        %v3173 = vpack.c.b16 %v3171, %v3170
        %v3177 = vsel %vm883, %v3105, 0
        %3179 = vmatprep.subr.bf16.mxu0 0
        %3180 = vmatpush1.bf16.msra.mxu0 %v3172
        %3181 = vmatprep.subr.bf16.mxu0 0
        %3182 = vmatpush1.bf16.msra.mxu0 %v3173
        %3183 = vmatprep.subr.bf16.mxu0 0
        %3184 = vmatpush1.bf16.msra.mxu0 0
        %3185 = vmatprep.subr.bf16.mxu0 0
        %3186 = vmatpush1.bf16.msra.mxu0 0
        %3187 = vmatprep.subr.bf16.mxu0 0
        %3188 = vmatpush1.bf16.msra.mxu0 0
        %3189 = vmatprep.subr.bf16.mxu0 0
        %3190 = vmatpush1.bf16.msra.mxu0 0
        %3191 = vmatprep.subr.bf16.mxu0 0
        %3192 = vmatpush1.bf16.msra.mxu0 0
        %3193 = vmatprep.subr.bf16.mxu0 0
        %3194 = vmatpush1.bf16.msra.mxu0 0
        %3195 = vmatprep.subr.bf16.mxu0 0
        %3196 = vmatpush1.bf16.msra.mxu0 0
        %3197 = vmatprep.subr.bf16.mxu0 0
        %3198 = vmatpush1.bf16.msra.mxu0 0
        %3199 = vmatprep.subr.bf16.mxu0 0
        %3200 = vmatpush1.bf16.msra.mxu0 0
        %3201 = vmatprep.subr.bf16.mxu0 0
        %3202 = vmatpush1.bf16.msra.mxu0 0
        %3203 = vmatprep.subr.bf16.mxu0 0
        %3204 = vmatpush1.bf16.msra.mxu0 0
        %3205 = vmatprep.subr.bf16.mxu0 0
        %3206 = vmatpush1.bf16.msra.mxu0 0
        %3207 = vmatprep.subr.bf16.mxu0 0
        %3208 = vmatpush1.bf16.msra.mxu0 0
        %3209 = vmatprep.subr.bf16.mxu0 0
        %3210 = vmatpush1.bf16.msra.mxu0 0
        %3211 = vmatprep.mubr.bf16.mxu0 0
        %3212 = vmatmul.mubr.bf16.gmra.mrb[0].mxu0 %v3177
        %v3213 = vpop.f32.mrb[0].mxu0
        %v3214 = vadd.f32 0.0, %v3213
        %v3215 = vpop.f32.mrb[0].mxu0
        %v3216 = vpop.f32.mrb[0].mxu0
        %v3217 = vadd.f32 0.0, %v3216
        %v3218 = vpop.f32.mrb[0].mxu0
        %3219 = vdwg.mxu0
        %v3224 = vunpack.c.l.b16 %v2664
        %v3225 = vunpack.c.l.b16 %v2665
        %v3226 = vunpack.c.l.b16 %v2666
        %v3227 = vunpack.c.l.b16 %v2667
        %v3228 = vpack.c.b16 %v3225, %v3224
        %v3229 = vpack.c.b16 %v3227, %v3226
        %v3233 = vsel %vm883, %v3106, 0
        %3235 = vmatprep.subr.bf16.mxu0 0
        %3236 = vmatpush1.bf16.msra.mxu0 %v3228
        %3237 = vmatprep.subr.bf16.mxu0 0
        %3238 = vmatpush1.bf16.msra.mxu0 %v3229
        %3239 = vmatprep.subr.bf16.mxu0 0
        %3240 = vmatpush1.bf16.msra.mxu0 0
        %3241 = vmatprep.subr.bf16.mxu0 0
        %3242 = vmatpush1.bf16.msra.mxu0 0
        %3243 = vmatprep.subr.bf16.mxu0 0
        %3244 = vmatpush1.bf16.msra.mxu0 0
        %3245 = vmatprep.subr.bf16.mxu0 0
        %3246 = vmatpush1.bf16.msra.mxu0 0
        %3247 = vmatprep.subr.bf16.mxu0 0
        %3248 = vmatpush1.bf16.msra.mxu0 0
        %3249 = vmatprep.subr.bf16.mxu0 0
        %3250 = vmatpush1.bf16.msra.mxu0 0
        %3251 = vmatprep.subr.bf16.mxu0 0
        %3252 = vmatpush1.bf16.msra.mxu0 0
        %3253 = vmatprep.subr.bf16.mxu0 0
        %3254 = vmatpush1.bf16.msra.mxu0 0
        %3255 = vmatprep.subr.bf16.mxu0 0
        %3256 = vmatpush1.bf16.msra.mxu0 0
        %3257 = vmatprep.subr.bf16.mxu0 0
        %3258 = vmatpush1.bf16.msra.mxu0 0
        %3259 = vmatprep.subr.bf16.mxu0 0
        %3260 = vmatpush1.bf16.msra.mxu0 0
        %3261 = vmatprep.subr.bf16.mxu0 0
        %3262 = vmatpush1.bf16.msra.mxu0 0
        %3263 = vmatprep.subr.bf16.mxu0 0
        %3264 = vmatpush1.bf16.msra.mxu0 0
        %3265 = vmatprep.subr.bf16.mxu0 0
        %3266 = vmatpush1.bf16.msra.mxu0 0
        %3267 = vmatprep.mubr.bf16.mxu0 0
        %3268 = vmatmul.mubr.bf16.gmra.mrb[0].mxu0 %v3233
        %v3269 = vpop.f32.mrb[0].mxu0
        %v3270 = vadd.f32 0.0, %v3269
        %v3271 = vpop.f32.mrb[0].mxu0
        %v3272 = vpop.f32.mrb[0].mxu0
        %v3273 = vadd.f32 0.0, %v3272
        %v3274 = vpop.f32.mrb[0].mxu0
        %3275 = vdwg.mxu0
        %v3280 = vunpack.c.l.b16 %v2668
        %v3281 = vunpack.c.l.b16 %v2669
        %v3282 = vunpack.c.l.b16 %v2670
        %v3283 = vunpack.c.l.b16 %v2671
        %v3284 = vpack.c.b16 %v3281, %v3280
        %v3285 = vpack.c.b16 %v3283, %v3282
        %v3289 = vsel %vm883, %v3107, 0
        %3291 = vmatprep.subr.bf16.mxu0 0
        %3292 = vmatpush1.bf16.msra.mxu0 %v3284
        %3293 = vmatprep.subr.bf16.mxu0 0
        %3294 = vmatpush1.bf16.msra.mxu0 %v3285
        %3295 = vmatprep.subr.bf16.mxu0 0
        %3296 = vmatpush1.bf16.msra.mxu0 0
        %3297 = vmatprep.subr.bf16.mxu0 0
        %3298 = vmatpush1.bf16.msra.mxu0 0
        %3299 = vmatprep.subr.bf16.mxu0 0
        %3300 = vmatpush1.bf16.msra.mxu0 0
        %3301 = vmatprep.subr.bf16.mxu0 0
        %3302 = vmatpush1.bf16.msra.mxu0 0
        %3303 = vmatprep.subr.bf16.mxu0 0
        %3304 = vmatpush1.bf16.msra.mxu0 0
        %3305 = vmatprep.subr.bf16.mxu0 0
        %3306 = vmatpush1.bf16.msra.mxu0 0
        %3307 = vmatprep.subr.bf16.mxu0 0
        %3308 = vmatpush1.bf16.msra.mxu0 0
        %3309 = vmatprep.subr.bf16.mxu0 0
        %3310 = vmatpush1.bf16.msra.mxu0 0
        %3311 = vmatprep.subr.bf16.mxu0 0
        %3312 = vmatpush1.bf16.msra.mxu0 0
        %3313 = vmatprep.subr.bf16.mxu0 0
        %3314 = vmatpush1.bf16.msra.mxu0 0
        %3315 = vmatprep.subr.bf16.mxu0 0
        %3316 = vmatpush1.bf16.msra.mxu0 0
        %3317 = vmatprep.subr.bf16.mxu0 0
        %3318 = vmatpush1.bf16.msra.mxu0 0
        %3319 = vmatprep.subr.bf16.mxu0 0
        %3320 = vmatpush1.bf16.msra.mxu0 0
        %3321 = vmatprep.subr.bf16.mxu0 0
        %3322 = vmatpush1.bf16.msra.mxu0 0
        %3323 = vmatprep.mubr.bf16.mxu0 0
        %3324 = vmatmul.mubr.bf16.gmra.mrb[0].mxu0 %v3289
        %v3325 = vpop.f32.mrb[0].mxu0
        %v3326 = vadd.f32 0.0, %v3325
        %v3327 = vpop.f32.mrb[0].mxu0
        %v3328 = vpop.f32.mrb[0].mxu0
        %v3329 = vadd.f32 0.0, %v3328
        %v3330 = vpop.f32.mrb[0].mxu0
        %3331 = vdwg.mxu0
        %v3332 = vpack.c.bf16 %v3161, %v3158
        %v3333 = vpack.c.bf16 %v3217, %v3214
        %v3334 = vpack.c.bf16 %v3273, %v3270
        %v3335 = vpack.c.bf16 %v3329, %v3326
        %3336 = vmatprep.subr.bf16.mxu0 0
        %3337 = vmatpush1.bf16.msra.mxu0 %v3332
        %3338 = vmatprep.subr.bf16.mxu0 0
        %3339 = vmatpush1.bf16.msra.mxu0 0
        %3340 = vmatprep.subr.bf16.mxu0 0
        %3341 = vmatpush1.bf16.msra.mxu0 0
        %3342 = vmatprep.subr.bf16.mxu0 0
        %3343 = vmatpush1.bf16.msra.mxu0 0
        %3344 = vmatprep.subr.bf16.mxu0 0
        %3345 = vmatpush1.bf16.msra.mxu0 0
        %3346 = vmatprep.subr.bf16.mxu0 0
        %3347 = vmatpush1.bf16.msra.mxu0 0
        %3348 = vmatprep.subr.bf16.mxu0 0
        %3349 = vmatpush1.bf16.msra.mxu0 0
        %3350 = vmatprep.subr.bf16.mxu0 0
        %3351 = vmatpush1.bf16.msra.mxu0 0
        %3352 = vmatprep.subr.bf16.mxu0 0
        %3353 = vmatpush1.bf16.msra.mxu0 0
        %3354 = vmatprep.subr.bf16.mxu0 0
        %3355 = vmatpush1.bf16.msra.mxu0 0
        %3356 = vmatprep.subr.bf16.mxu0 0
        %3357 = vmatpush1.bf16.msra.mxu0 0
        %3358 = vmatprep.subr.bf16.mxu0 0
        %3359 = vmatpush1.bf16.msra.mxu0 0
        %3360 = vmatprep.subr.bf16.mxu0 0
        %3361 = vmatpush1.bf16.msra.mxu0 0
        %3362 = vmatprep.subr.bf16.mxu0 0
        %3363 = vmatpush1.bf16.msra.mxu0 0
        %3364 = vmatprep.subr.bf16.mxu0 0
        %3365 = vmatpush1.bf16.msra.mxu0 0
        %3366 = vmatprep.subr.bf16.mxu0 0
        %3367 = vmatpush1.bf16.msra.mxu0 0
        %3368 = vmatprep.mubr.bf16.mxu0 0
        %3369 = vmatmul.mubr.bf16.gmra.mrb[0].mxu0 %v2906
        %v3370 = vpop.f32.mrb[0].mxu0
        %v3371 = vadd.f32 0.0, %v3370
        %v3372 = vpop.f32.mrb[0].mxu0
        %v3373 = vpop.f32.mrb[0].mxu0
        %v3374 = vadd.f32 0.0, %v3373
        %v3375 = vpop.f32.mrb[0].mxu0
        %3376 = vdwg.mxu0
        %3377 = vmatprep.subr.bf16.mxu0 0
        %3378 = vmatpush1.bf16.msra.mxu0 %v3333
        %3379 = vmatprep.subr.bf16.mxu0 0
        %3380 = vmatpush1.bf16.msra.mxu0 0
        %3381 = vmatprep.subr.bf16.mxu0 0
        %3382 = vmatpush1.bf16.msra.mxu0 0
        %3383 = vmatprep.subr.bf16.mxu0 0
        %3384 = vmatpush1.bf16.msra.mxu0 0
        %3385 = vmatprep.subr.bf16.mxu0 0
        %3386 = vmatpush1.bf16.msra.mxu0 0
        %3387 = vmatprep.subr.bf16.mxu0 0
        %3388 = vmatpush1.bf16.msra.mxu0 0
        %3389 = vmatprep.subr.bf16.mxu0 0
        %3390 = vmatpush1.bf16.msra.mxu0 0
        %3391 = vmatprep.subr.bf16.mxu0 0
        %3392 = vmatpush1.bf16.msra.mxu0 0
        %3393 = vmatprep.subr.bf16.mxu0 0
        %3394 = vmatpush1.bf16.msra.mxu0 0
        %3395 = vmatprep.subr.bf16.mxu0 0
        %3396 = vmatpush1.bf16.msra.mxu0 0
        %3397 = vmatprep.subr.bf16.mxu0 0
        %3398 = vmatpush1.bf16.msra.mxu0 0
        %3399 = vmatprep.subr.bf16.mxu0 0
        %3400 = vmatpush1.bf16.msra.mxu0 0
        %3401 = vmatprep.subr.bf16.mxu0 0
        %3402 = vmatpush1.bf16.msra.mxu0 0
        %3403 = vmatprep.subr.bf16.mxu0 0
        %3404 = vmatpush1.bf16.msra.mxu0 0
        %3405 = vmatprep.subr.bf16.mxu0 0
        %3406 = vmatpush1.bf16.msra.mxu0 0
        %3407 = vmatprep.subr.bf16.mxu0 0
        %3408 = vmatpush1.bf16.msra.mxu0 0
        %3409 = vmatprep.mubr.bf16.mxu0 0
        %3410 = vmatmul.mubr.bf16.gmra.mrb[0].mxu0 %v2955
        %v3411 = vpop.f32.mrb[0].mxu0
        %v3412 = vadd.f32 0.0, %v3411
        %v3413 = vpop.f32.mrb[0].mxu0
        %v3414 = vpop.f32.mrb[0].mxu0
        %v3415 = vadd.f32 0.0, %v3414
        %v3416 = vpop.f32.mrb[0].mxu0
        %3417 = vdwg.mxu0
        %3418 = vmatprep.subr.bf16.mxu0 0
        %3419 = vmatpush1.bf16.msra.mxu0 %v3334
        %3420 = vmatprep.subr.bf16.mxu0 0
        %3421 = vmatpush1.bf16.msra.mxu0 0
        %3422 = vmatprep.subr.bf16.mxu0 0
        %3423 = vmatpush1.bf16.msra.mxu0 0
        %3424 = vmatprep.subr.bf16.mxu0 0
        %3425 = vmatpush1.bf16.msra.mxu0 0
        %3426 = vmatprep.subr.bf16.mxu0 0
        %3427 = vmatpush1.bf16.msra.mxu0 0
        %3428 = vmatprep.subr.bf16.mxu0 0
        %3429 = vmatpush1.bf16.msra.mxu0 0
        %3430 = vmatprep.subr.bf16.mxu0 0
        %3431 = vmatpush1.bf16.msra.mxu0 0
        %3432 = vmatprep.subr.bf16.mxu0 0
        %3433 = vmatpush1.bf16.msra.mxu0 0
        %3434 = vmatprep.subr.bf16.mxu0 0
        %3435 = vmatpush1.bf16.msra.mxu0 0
        %3436 = vmatprep.subr.bf16.mxu0 0
        %3437 = vmatpush1.bf16.msra.mxu0 0
        %3438 = vmatprep.subr.bf16.mxu0 0
        %3439 = vmatpush1.bf16.msra.mxu0 0
        %3440 = vmatprep.subr.bf16.mxu0 0
        %3441 = vmatpush1.bf16.msra.mxu0 0
        %3442 = vmatprep.subr.bf16.mxu0 0
        %3443 = vmatpush1.bf16.msra.mxu0 0
        %3444 = vmatprep.subr.bf16.mxu0 0
        %3445 = vmatpush1.bf16.msra.mxu0 0
        %3446 = vmatprep.subr.bf16.mxu0 0
        %3447 = vmatpush1.bf16.msra.mxu0 0
        %3448 = vmatprep.subr.bf16.mxu0 0
        %3449 = vmatpush1.bf16.msra.mxu0 0
        %3450 = vmatprep.mubr.bf16.mxu0 0
        %3451 = vmatmul.mubr.bf16.gmra.mrb[0].mxu0 %v3004
        %v3452 = vpop.f32.mrb[0].mxu0
        %v3453 = vadd.f32 0.0, %v3452
        %v3454 = vpop.f32.mrb[0].mxu0
        %v3455 = vpop.f32.mrb[0].mxu0
        %v3456 = vadd.f32 0.0, %v3455
        %v3457 = vpop.f32.mrb[0].mxu0
        %3458 = vdwg.mxu0
        %3459 = vmatprep.subr.bf16.mxu0 0
        %3460 = vmatpush1.bf16.msra.mxu0 %v3335
        %3461 = vmatprep.subr.bf16.mxu0 0
        %3462 = vmatpush1.bf16.msra.mxu0 0
        %3463 = vmatprep.subr.bf16.mxu0 0
        %3464 = vmatpush1.bf16.msra.mxu0 0
        %3465 = vmatprep.subr.bf16.mxu0 0
        %3466 = vmatpush1.bf16.msra.mxu0 0
        %3467 = vmatprep.subr.bf16.mxu0 0
        %3468 = vmatpush1.bf16.msra.mxu0 0
        %3469 = vmatprep.subr.bf16.mxu0 0
        %3470 = vmatpush1.bf16.msra.mxu0 0
        %3471 = vmatprep.subr.bf16.mxu0 0
        %3472 = vmatpush1.bf16.msra.mxu0 0
        %3473 = vmatprep.subr.bf16.mxu0 0
        %3474 = vmatpush1.bf16.msra.mxu0 0
        %3475 = vmatprep.subr.bf16.mxu0 0
        %3476 = vmatpush1.bf16.msra.mxu0 0
        %3477 = vmatprep.subr.bf16.mxu0 0
        %3478 = vmatpush1.bf16.msra.mxu0 0
        %3479 = vmatprep.subr.bf16.mxu0 0
        %3480 = vmatpush1.bf16.msra.mxu0 0
        %3481 = vmatprep.subr.bf16.mxu0 0
        %3482 = vmatpush1.bf16.msra.mxu0 0
        %3483 = vmatprep.subr.bf16.mxu0 0
        %3484 = vmatpush1.bf16.msra.mxu0 0
        %3485 = vmatprep.subr.bf16.mxu0 0
        %3486 = vmatpush1.bf16.msra.mxu0 0
        %3487 = vmatprep.subr.bf16.mxu0 0
        %3488 = vmatpush1.bf16.msra.mxu0 0
        %3489 = vmatprep.subr.bf16.mxu0 0
        %3490 = vmatpush1.bf16.msra.mxu0 0
        %3491 = vmatprep.mubr.bf16.mxu0 0
        %3492 = vmatmul.mubr.bf16.gmra.mrb[0].mxu0 %v3053
        %v3493 = vpop.f32.mrb[0].mxu0
        %v3494 = vadd.f32 0.0, %v3493
        %v3495 = vpop.f32.mrb[0].mxu0
        %v3496 = vpop.f32.mrb[0].mxu0
        %v3497 = vadd.f32 0.0, %v3496
        %v3498 = vpop.f32.mrb[0].mxu0
        %3499 = vdwg.mxu0
        %v3500 = vmax.f32 %v3371, 0.0
        %v3501 = vmax.f32 %v3374, 0.0
        %v3502 = vmax.f32 %v3412, 0.0
        %v3503 = vmax.f32 %v3415, 0.0
        %v3504 = vmax.f32 %v3453, 0.0
        %v3505 = vmax.f32 %v3456, 0.0
        %v3506 = vmax.f32 %v3494, 0.0
        %v3507 = vmax.f32 %v3497, 0.0
        %v3508 = vadd.f32 %v3500, %v3096
        %v3509 = vadd.f32 %v3501, %v3097
        %v3510 = vadd.f32 %v3502, %v3098
        %v3511 = vadd.f32 %v3503, %v3099
        %v3512 = vadd.f32 %v3504, %v3100
        %v3513 = vadd.f32 %v3505, %v3101
        %v3514 = vadd.f32 %v3506, %v3102
        %v3515 = vadd.f32 %v3507, %v3103
        %v3516 = vmul.f32 %v3508, 0.7
        %v3517 = vmul.f32 %v3509, 0.7
        %v3518 = vmul.f32 %v3510, 0.7
        %v3519 = vmul.f32 %v3511, 0.7
        %v3520 = vmul.f32 %v3512, 0.7
        %v3521 = vmul.f32 %v3513, 0.7
        %v3522 = vmul.f32 %v3514, 0.7
        %v3523 = vmul.f32 %v3515, 0.7
        %v3524 = vadd.f32 %v2628, %v3516
        %v3525 = vadd.f32 %v2629, %v3517
        %v3526 = vadd.f32 %v2630, %v3518
        %v3527 = vadd.f32 %v2631, %v3519
        %v3528 = vadd.f32 %v2632, %v3520
        %v3529 = vadd.f32 %v2633, %v3521
        %v3530 = vadd.f32 %v2634, %v3522
        %v3531 = vadd.f32 %v2635, %v3523
        %v3532 = vpack.c.bf16 %v3525, %v3524
        %v3533 = vpack.c.bf16 %v3527, %v3526
        %v3534 = vpack.c.bf16 %v3529, %v3528
        %v3535 = vpack.c.bf16 %v3531, %v3530
        %v3536 = vld [vmem:[%s10] sm:$0xf]
        %v3537 = vld [vmem:[%s10 + $0x4] sm:$0xf]
        %v3538 = vld [vmem:[%s10 + $0x8] sm:$0xf]
        %v3539 = vld [vmem:[%s10 + $0xc] sm:$0xf]
        %v3540 = vld [vmem:[%s11] sm:$0x1]
        %v3542 = vlaneseq
        %v3543 = vshrl.u32 %v3542, 7
        %v3544 = vsub.s32 0, %v3543
        %v3545 = vrot.slane %v3540, %v3544
        %v3551 = vunpack.c.l.b16 %v3536
        %v3552 = vunpack.c.l.b16 %v3537
        %v3553 = vunpack.c.l.b16 %v3538
        %v3554 = vunpack.c.l.b16 %v3539
        %v3555 = vpack.c.b16 %v3552, %v3551
        %v3556 = vpack.c.b16 %v3554, %v3553
        %v3560 = vsel %vm883, %v3532, 0
        %v3563 = vsel %vm883, %v3533, 0
        %v3566 = vsel %vm883, %v3534, 0
        %v3569 = vsel %vm883, %v3535, 0
        %3571 = vmatprep.subr.bf16.mxu0 0
        %3572 = vmatpush1.bf16.msra.mxu0 %v3555
        %3573 = vmatprep.subr.bf16.mxu0 0
        %3574 = vmatpush1.bf16.msra.mxu0 %v3556
        %3575 = vmatprep.subr.bf16.mxu0 0
        %3576 = vmatpush1.bf16.msra.mxu0 0
        %3577 = vmatprep.subr.bf16.mxu0 0
        %3578 = vmatpush1.bf16.msra.mxu0 0
        %3579 = vmatprep.subr.bf16.mxu0 0
        %3580 = vmatpush1.bf16.msra.mxu0 0
        %3581 = vmatprep.subr.bf16.mxu0 0
        %3582 = vmatpush1.bf16.msra.mxu0 0
        %3583 = vmatprep.subr.bf16.mxu0 0
        %3584 = vmatpush1.bf16.msra.mxu0 0
        %3585 = vmatprep.subr.bf16.mxu0 0
        %3586 = vmatpush1.bf16.msra.mxu0 0
        %3587 = vmatprep.subr.bf16.mxu0 0
        %3588 = vmatpush1.bf16.msra.mxu0 0
        %3589 = vmatprep.subr.bf16.mxu0 0
        %3590 = vmatpush1.bf16.msra.mxu0 0
        %3591 = vmatprep.subr.bf16.mxu0 0
        %3592 = vmatpush1.bf16.msra.mxu0 0
        %3593 = vmatprep.subr.bf16.mxu0 0
        %3594 = vmatpush1.bf16.msra.mxu0 0
        %3595 = vmatprep.subr.bf16.mxu0 0
        %3596 = vmatpush1.bf16.msra.mxu0 0
        %3597 = vmatprep.subr.bf16.mxu0 0
        %3598 = vmatpush1.bf16.msra.mxu0 0
        %3599 = vmatprep.subr.bf16.mxu0 0
        %3600 = vmatpush1.bf16.msra.mxu0 0
        %3601 = vmatprep.subr.bf16.mxu0 0
        %3602 = vmatpush1.bf16.msra.mxu0 0
        %3603 = vmatprep.mubr.bf16.mxu0 0
        %3604 = vmatmul.mubr.bf16.gmra.mrb[0].mxu0 %v3560
        %v3605 = vpop.f32.mrb[0].mxu0
        %v3606 = vadd.f32 %v3545, %v3605
        %v3607 = vpop.f32.mrb[0].mxu0
        %v3608 = vpop.f32.mrb[0].mxu0
        %v3609 = vadd.f32 %v3545, %v3608
        %v3610 = vpop.f32.mrb[0].mxu0
        %3611 = vmatprep.mubr.bf16.mxu0 0
        %3612 = vmatmul.mubr.bf16.gmra.mrb[0].mxu0 %v3563
        %v3613 = vpop.f32.mrb[0].mxu0
        %v3614 = vadd.f32 %v3545, %v3613
        %v3615 = vpop.f32.mrb[0].mxu0
        %v3616 = vpop.f32.mrb[0].mxu0
        %v3617 = vadd.f32 %v3545, %v3616
        %v3618 = vpop.f32.mrb[0].mxu0
        %3619 = vmatprep.mubr.bf16.mxu0 0
        %3620 = vmatmul.mubr.bf16.gmra.mrb[0].mxu0 %v3566
        %v3621 = vpop.f32.mrb[0].mxu0
        %v3622 = vadd.f32 %v3545, %v3621
        %v3623 = vpop.f32.mrb[0].mxu0
        %v3624 = vpop.f32.mrb[0].mxu0
        %v3625 = vadd.f32 %v3545, %v3624
        %v3626 = vpop.f32.mrb[0].mxu0
        %3627 = vmatprep.mubr.bf16.mxu0 0
        %3628 = vmatmul.mubr.bf16.gmra.mrb[0].mxu0 %v3569
        %v3629 = vpop.f32.mrb[0].mxu0
        %v3630 = vadd.f32 %v3545, %v3629
        %v3631 = vpop.f32.mrb[0].mxu0
        %v3632 = vpop.f32.mrb[0].mxu0
        %v3633 = vadd.f32 %v3545, %v3632
        %v3634 = vpop.f32.mrb[0].mxu0
        %3635 = vdwg.mxu0
        %3636 = vst.msk [vmem:[%s789] sm:$0xff] %vm883, %v3606
        %3637 = vst.msk [vmem:[%s789 + $0x8] sm:$0xff] %vm883, %v3609
        %3638 = vst.msk [vmem:[%s789 + $0x10] sm:$0xff] %vm883, %v3614
        %3639 = vst.msk [vmem:[%s789 + $0x18] sm:$0xff] %vm883, %v3617
        %3640 = vst.msk [vmem:[%s789 + $0x20] sm:$0xff] %vm883, %v3622
        %3641 = vst.msk [vmem:[%s789 + $0x28] sm:$0xff] %vm883, %v3625
        %3642 = vst.msk [vmem:[%s789 + $0x30] sm:$0xff] %vm883, %v3630
        %3643 = vst.msk [vmem:[%s789 + $0x38] sm:$0xff] %vm883, %v3633
        %s3644 = sand.u32 %s354, 1
        %s3645 = scalar_lea.sflag [#allocation4], %s3644
        %s3646 = sand.u32 %s354, 1
        %s3647 = smul.addr %s3646, 64
        %s3648 = scalar_lea.vmem [#allocation19], %s3647
        // Predicated region
        $region109: #{tpu_custom_call.1} parent=67 // pred_check
          %p3649 = pneg %p364
        $region110: #{tpu_custom_call.1} parent=67 // pred_check_branch
          %3651 = sbr.rel (%p3649) target = $region112
        $region111: #{tpu_custom_call.1} parent=67 // pred_region
          %s3652 = smul.u32 4, %s44
          %s3654 = ssub.s32 1024, 1024
          %3655 = vsyncadd %s3645, %s3654
          %s3656 = smul.addr %s3652, 2
          %s3657 = smul.addr %s3656, 128
          %s3658 = scalar_lea.hbm %s12, %s3657
          %s3659 = sshll.u32 %s3648, 4
          %s3660 = int_to_ptr.vmem [resolvable:$true] %s3659
          %3665 = dma.vmem_to_hbm [thread:$0]  %s3660, 1024, %s3658, %s3645, 128, 128, 8
        $region112: #{tpu_custom_call.1} parent=67 // pred_fallthru
          _
      $region68: #{tpu_custom_call.1} parent=5 // pred_fallthru
        _
      %p3666 = scmp.le.s32.totalorder 2, %s39
      // Predicated region
      $region113: #{tpu_custom_call.1} parent=5 // pred_check
        %p3667 = pneg %p3666
      $region114: #{tpu_custom_call.1} parent=5 // pred_check_branch
        %3669 = sbr.rel (%p3667) target = $region116
      $region115: #{tpu_custom_call.1} parent=5 // pred_region
        %s3670 = ssub.s32 %s39, 2
        // Predicated region
        $region117: #{tpu_custom_call.1} parent=115 // pred_check
          %p3671 = pneg %p370
        $region118: #{tpu_custom_call.1} parent=115 // pred_check_branch
          %3673 = sbr.rel (%p3671) target = $region120
        $region119: #{tpu_custom_call.1} parent=115 // pred_region
          %s3674 = sand.u32 %s355, 1
          %s3675 = scalar_lea.sflag [#allocation4], %s3674
          %s3676 = sand.u32 %s355, 1
          %s3677 = smul.addr %s3676, 64
          %s3678 = scalar_lea.vmem [#allocation19], %s3677
          %3679 = dma.done %s3675, 1024
        $region120: #{tpu_custom_call.1} parent=115 // pred_fallthru
          _
      $region116: #{tpu_custom_call.1} parent=5 // pred_fallthru
        _
    $region6: #{tpu_custom_call.1} parent=1 // loop_footer
      %s43 = sadd.s32 1, %s39
    $region7: #{tpu_custom_call.1} parent=1 // loop_footer_branch
      %38 = sbr.rel target = $region3
    $region8: #{tpu_custom_call.1} parent=1 // loop_exit
      _
    %3680 = vsyncpa [#allocation3], 1
    %s3681 = scalar_lea.sflag [#allocation3], 1
    %3682 = vsyncpa %s3681, 1
    %3683 = vsyncpa [#allocation6], 1
    %s3684 = scalar_lea.sflag [#allocation6], 1
    %3685 = vsyncpa %s3684, 1
    %3686 = vsyncpa [#allocation9], 1
    %s3687 = scalar_lea.sflag [#allocation9], 1
    %3688 = vsyncpa %s3687, 1
    %3689 = vsyncpa [#allocation12], 1
    %s3690 = scalar_lea.sflag [#allocation12], 1
    %3691 = vsyncpa %s3690, 1
    %3692 = vsyncpa [#allocation15], 1
    %s3693 = scalar_lea.sflag [#allocation15], 1
    %3694 = vsyncpa %s3693, 1
    %3695 = vsyncpa [#allocation18], 1
    %s3696 = scalar_lea.sflag [#allocation18], 1
    %3697 = vsyncpa %s3696, 1
    %3698 = vsyncpa [#allocation4], 1
    %s3699 = scalar_lea.sflag [#allocation4], 1
    %3700 = vsyncpa %s3699, 1

</llo_original>
